<compile_context>
chip_gen: v6e
topology: v6e:2x2x1
jax: 0.10.0
libtpu: 0.0.40
codegen_flags: <defaults>
</compile_context>

<pallas_src>
import functools

import jax
import jax.numpy as jnp
from jax.experimental import pallas as pl
from jax.experimental.pallas import tpu as pltpu


NEG_SLOPE = 0.01   # F.leaky_relu default negative_slope
BN_EPS = 1e-5      # nn.BatchNorm1d default eps
LANE = 128
SUBLANE = 8


def _round_up(x, m):
    return ((x + m - 1) // m) * m


def _leaky_relu(h):
    return jnp.where(h > 0, h, NEG_SLOPE * h)


def classifier_kernel(x_ref,
                      w1_ref, b1_ref,
                      w2_ref, b2_ref,
                      w3_ref, b3_ref,
                      w4_ref, b4_ref,
                      o_ref):
    """One batch tile of the folded MLP.

    Matmuls run on the MXU with f32 accumulation; bias / LeakyReLU / sigmoid
    stay in f32 on the VPU/EUP.  Weights may be bf16 (activations are cast
    right before each dot); biases are always f32.
    """
    def hidden(h, w_ref, b_ref):
        h = jnp.dot(h.astype(w_ref.dtype), w_ref[...],
                    preferred_element_type=jnp.float32)
        return _leaky_relu(h + b_ref[...])

    h = x_ref[...]
    h = hidden(h, w1_ref, b1_ref)     # fc1 + bn1 + leaky_relu  (dropout = id)
    h = hidden(h, w2_ref, b2_ref)     # fc2 + bn2 + leaky_relu
    h = hidden(h, w3_ref, b3_ref)     # fc3 + bn3 + leaky_relu

    h = jnp.dot(h.astype(w4_ref.dtype), w4_ref[...],
                preferred_element_type=jnp.float32) + b4_ref[...]
    # sigmoid: exp on the EUP, exact reciprocal for the denominator.
    o_ref[...] = pl.reciprocal(1.0 + jnp.exp(-h)).astype(o_ref.dtype)


@functools.partial(jax.jit, static_argnames=("out_features", "block_b"))
def classifier_new_forward(x, folded, *, out_features, block_b=512):
    """x: (B, in_features) float32.  folded: dict from fold_params()."""
    B, F = x.shape
    padded_out = folded["w4"].shape[1]          # lane-dense (multiple of 128)
    w_dtype = folded["w1"].dtype

    # Batch tile: as large as allowed (multiple of 8 sublanes).  For sizable B
    # this yields >=2 grid steps so the "parallel" axis can shard across the
    # two v7x TensorCores while each tile keeps the MXU well fed.
    eff_block = min(block_b, _round_up(B, SUBLANE))
    n_blocks = pl.cdiv(B, eff_block)
    padded_b = n_blocks * eff_block

    x = x.astype(w_dtype)
    if padded_b != B:                            # ragged batch -> zero-pad
        x = jnp.pad(x, ((0, padded_b - B), (0, 0)))

    def const_spec(shape):                       # constants: same block each step
        return pl.BlockSpec(shape, lambda i: (0, 0))

    operands = []
    in_specs = [pl.BlockSpec((eff_block, F), lambda i: (i, 0))]
    for li in (1, 2, 3, 4):
        w = folded[f"w{li}"]
        b = folded[f"b{li}"]
        operands += [w, b]
        in_specs += [const_spec(w.shape), const_spec(b.shape)]

    out = pl.pallas_call(
        classifier_kernel,
        out_shape=jax.ShapeDtypeStruct((padded_b, padded_out), jnp.float32),
        grid_spec=pltpu.PrefetchScalarGridSpec(
            num_scalar_prefetch=0,
            grid=(n_blocks,),
            in_specs=in_specs,
            out_specs=pl.BlockSpec((eff_block, padded_out), lambda i: (i, 0)),
        ),
        compiler_params=pltpu.CompilerParams(
            dimension_semantics=("parallel",)),
    )(x, *operands)

    return out[:B, :out_features]


def init_raw_params(key, in_features, out_features):
    """PyTorch-layout params: Linear weights (out, in) & bias (out,);
    BatchNorm gamma/beta and running mean/var per layer (synthetic but
    non-trivial so the BN fold is actually exercised)."""
    dims = [(in_features, 512), (512, 128), (128, 32), (32, out_features)]
    raw = {}
    keys = jax.random.split(key, 16)
    ki = 0
    for li, (fan_in, fan_out) in enumerate(dims, start=1):
        bound = 1.0 / jnp.sqrt(fan_in)
        raw[f"w{li}"] = jax.random.uniform(
            keys[ki], (fan_out, fan_in), jnp.float32, -bound, bound); ki += 1
        raw[f"b{li}"] = jax.random.uniform(
            keys[ki], (fan_out,), jnp.float32, -bound, bound); ki += 1
        if li <= 3:
            raw[f"gamma{li}"] = 1.0 + 0.1 * jax.random.normal(
                keys[ki], (fan_out,), jnp.float32); ki += 1
            raw[f"beta{li}"] = 0.1 * jax.random.normal(
                keys[ki], (fan_out,), jnp.float32); ki += 1
            idx = jnp.arange(fan_out, dtype=jnp.float32) / fan_out
            raw[f"mean{li}"] = 0.05 * idx
            raw[f"var{li}"] = 1.0 + 0.1 * idx
    return raw


def fold_params(raw, dtype=jnp.float32):
    """Fold eval-mode BatchNorm + fc bias into each hidden layer:
         bn(fc(x)) = x @ (W.T * s) + (b * s + t),   s = gamma/sqrt(var+eps),
                                                    t = beta - mean * s.
    Transposes weights to (in, out) for row-major x @ W, keeps biases in f32,
    and lane-pads fc4's output dim to a multiple of 128 so the kernel's final
    store is lane-dense."""
    folded = {}
    for li in (1, 2, 3):
        w = raw[f"w{li}"].T                                 # (in, out)
        b = raw[f"b{li}"]
        s = raw[f"gamma{li}"] / jnp.sqrt(raw[f"var{li}"] + BN_EPS)
        t = raw[f"beta{li}"] - raw[f"mean{li}"] * s
        folded[f"w{li}"] = (w * s[None, :]).astype(dtype)
        folded[f"b{li}"] = (b * s + t)[None, :].astype(jnp.float32)

    out_features = raw["w4"].shape[0]
    padded_out = _round_up(out_features, LANE)
    w4 = jnp.pad(raw["w4"].T, ((0, 0), (0, padded_out - out_features)))
    b4 = jnp.pad(raw["b4"], ((0, padded_out - out_features),))
    folded["w4"] = w4.astype(dtype)
    folded["b4"] = b4[None, :].astype(jnp.float32)
    return folded


def reference_forward(x, raw):
    """Pure-JAX reference with unfolded PyTorch eval-mode semantics."""
    h = x
    for li in (1, 2, 3):
        h = h @ raw[f"w{li}"].T + raw[f"b{li}"]
        s = raw[f"gamma{li}"] / jnp.sqrt(raw[f"var{li}"] + BN_EPS)
        h = (h - raw[f"mean{li}"]) * s + raw[f"beta{li}"]
        h = jnp.where(h > 0, h, NEG_SLOPE * h)
    h = h @ raw["w4"].T + raw["b4"]
    return jax.nn.sigmoid(h)


if __name__ == "__main__":
    key = jax.random.PRNGKey(0)
    k_x, k_p = jax.random.split(key)

    in_features, out_features, batch = 64, 10, 600
    x = jax.random.normal(k_x, (batch, in_features), jnp.float32)
    raw = init_raw_params(k_p, in_features, out_features)
    ref = reference_forward(x, raw)

    # f32 weights: exercises 2 grid steps of 512 rows and the ragged-batch pad.
    out_f32 = classifier_new_forward(
        x, fold_params(raw, jnp.float32), out_features=out_features)
    out_f32 = jax.block_until_ready(out_f32)
    assert out_f32.shape == (batch, out_features)
    assert jnp.allclose(out_f32, ref, atol=1e-4, rtol=1e-4), \
        "f32 mismatch vs reference"

    # bf16 weights/activations on the MXU (v5e/v6e/v7x fast path), f32 epilogue.
    out_bf16 = classifier_new_forward(
        x, fold_params(raw, jnp.bfloat16), out_features=out_features)
    out_bf16 = jax.block_until_ready(out_bf16)
    assert out_bf16.shape == (batch, out_features)
    assert jnp.allclose(out_bf16, ref, atol=3e-2, rtol=3e-2), \
        "bf16 mismatch vs reference"

    print("KERNEL_OK")
</pallas_src>

<mosaic_0001>
module attributes {stable_mosaic.version = 11 : i64} {
  func.func @classifier_kernel(%arg0: i32, %arg1: memref<512x64xf32, #tpu.memory_space<vmem>>, %arg2: memref<64x512xf32, #tpu.memory_space<vmem>>, %arg3: memref<1x512xf32, #tpu.memory_space<vmem>>, %arg4: memref<512x128xf32, #tpu.memory_space<vmem>>, %arg5: memref<1x128xf32, #tpu.memory_space<vmem>>, %arg6: memref<128x32xf32, #tpu.memory_space<vmem>>, %arg7: memref<1x32xf32, #tpu.memory_space<vmem>>, %arg8: memref<32x128xf32, #tpu.memory_space<vmem>>, %arg9: memref<1x128xf32, #tpu.memory_space<vmem>>, %arg10: memref<512x128xf32, #tpu.memory_space<vmem>>) attributes {dimension_semantics = [#tpu.dimension_semantics<parallel>], iteration_bounds = array<i64: 2>, scalar_prefetch = 0 : i64, scratch_operands = 0 : i64, tpu.core_type = #tpu.core_type<tc>, window_params = [{transform_indices = @transform_0, window_bounds = array<i64: 512, 64>}, {pipeline_mode = #tpu.pipeline_mode<synchronous>, transform_indices = @transform_1, window_bounds = array<i64: 64, 512>}, {pipeline_mode = #tpu.pipeline_mode<synchronous>, transform_indices = @transform_2, window_bounds = array<i64: 1, 512>}, {pipeline_mode = #tpu.pipeline_mode<synchronous>, transform_indices = @transform_3, window_bounds = array<i64: 512, 128>}, {pipeline_mode = #tpu.pipeline_mode<synchronous>, transform_indices = @transform_4, window_bounds = array<i64: 1, 128>}, {pipeline_mode = #tpu.pipeline_mode<synchronous>, transform_indices = @transform_5, window_bounds = array<i64: 128, 32>}, {pipeline_mode = #tpu.pipeline_mode<synchronous>, transform_indices = @transform_6, window_bounds = array<i64: 1, 32>}, {pipeline_mode = #tpu.pipeline_mode<synchronous>, transform_indices = @transform_7, window_bounds = array<i64: 32, 128>}, {pipeline_mode = #tpu.pipeline_mode<synchronous>, transform_indices = @transform_8, window_bounds = array<i64: 1, 128>}, {transform_indices = @transform_9, window_bounds = array<i64: 512, 128>}]} {
    %c0 = arith.constant 0 : index
    %c0_0 = arith.constant 0 : index
    %0 = vector.load %arg1[%c0, %c0_0] : memref<512x64xf32, #tpu.memory_space<vmem>>, vector<512x64xf32>
    %c0_1 = arith.constant 0 : index
    %c0_2 = arith.constant 0 : index
    %1 = vector.load %arg2[%c0_1, %c0_2] : memref<64x512xf32, #tpu.memory_space<vmem>>, vector<64x512xf32>
    %cst = arith.constant dense<0.000000e+00> : vector<512x512xf32>
    %2 = tpu.matmul %0, %1, %cst {dimension_numbers = #tpu.dot_dimension_numbers<[1], [0], [0], [1], [0, 0, 1, 1], [], []>} : vector<512x64xf32>, vector<64x512xf32>, vector<512x512xf32> -> vector<512x512xf32>
    %c0_3 = arith.constant 0 : index
    %c0_4 = arith.constant 0 : index
    %3 = vector.load %arg3[%c0_3, %c0_4] : memref<1x512xf32, #tpu.memory_space<vmem>>, vector<1x512xf32>
    %4 = vector.broadcast %3 : vector<1x512xf32> to vector<512x512xf32>
    %5 = arith.addf %2, %4 : vector<512x512xf32>
    %cst_5 = arith.constant 0.000000e+00 : f32
    %6 = vector.broadcast %cst_5 : f32 to vector<512x512xf32>
    %7 = arith.cmpf ogt, %5, %6 : vector<512x512xf32>
    %cst_6 = arith.constant 0.00999999977 : f32
    %8 = vector.broadcast %cst_6 : f32 to vector<512x512xf32>
    %9 = arith.mulf %8, %5 : vector<512x512xf32>
    %10 = arith.select %7, %5, %9 : vector<512x512xi1>, vector<512x512xf32>
    %c0_7 = arith.constant 0 : index
    %c0_8 = arith.constant 0 : index
    %11 = vector.load %arg4[%c0_7, %c0_8] : memref<512x128xf32, #tpu.memory_space<vmem>>, vector<512x128xf32>
    %cst_9 = arith.constant dense<0.000000e+00> : vector<512x128xf32>
    %12 = tpu.matmul %10, %11, %cst_9 {dimension_numbers = #tpu.dot_dimension_numbers<[1], [0], [0], [1], [0, 0, 1, 1], [], []>} : vector<512x512xf32>, vector<512x128xf32>, vector<512x128xf32> -> vector<512x128xf32>
    %c0_10 = arith.constant 0 : index
    %c0_11 = arith.constant 0 : index
    %13 = vector.load %arg5[%c0_10, %c0_11] : memref<1x128xf32, #tpu.memory_space<vmem>>, vector<1x128xf32>
    %14 = vector.broadcast %13 : vector<1x128xf32> to vector<512x128xf32>
    %15 = arith.addf %12, %14 : vector<512x128xf32>
    %cst_12 = arith.constant 0.000000e+00 : f32
    %16 = vector.broadcast %cst_12 : f32 to vector<512x128xf32>
    %17 = arith.cmpf ogt, %15, %16 : vector<512x128xf32>
    %cst_13 = arith.constant 0.00999999977 : f32
    %18 = vector.broadcast %cst_13 : f32 to vector<512x128xf32>
    %19 = arith.mulf %18, %15 : vector<512x128xf32>
    %20 = arith.select %17, %15, %19 : vector<512x128xi1>, vector<512x128xf32>
    %c0_14 = arith.constant 0 : index
    %c0_15 = arith.constant 0 : index
    %21 = vector.load %arg6[%c0_14, %c0_15] : memref<128x32xf32, #tpu.memory_space<vmem>>, vector<128x32xf32>
    %cst_16 = arith.constant dense<0.000000e+00> : vector<512x32xf32>
    %22 = tpu.matmul %20, %21, %cst_16 {dimension_numbers = #tpu.dot_dimension_numbers<[1], [0], [0], [1], [0, 0, 1, 1], [], []>} : vector<512x128xf32>, vector<128x32xf32>, vector<512x32xf32> -> vector<512x32xf32>
    %c0_17 = arith.constant 0 : index
    %c0_18 = arith.constant 0 : index
    %23 = vector.load %arg7[%c0_17, %c0_18] : memref<1x32xf32, #tpu.memory_space<vmem>>, vector<1x32xf32>
    %24 = vector.broadcast %23 : vector<1x32xf32> to vector<512x32xf32>
    %25 = arith.addf %22, %24 : vector<512x32xf32>
    %cst_19 = arith.constant 0.000000e+00 : f32
    %26 = vector.broadcast %cst_19 : f32 to vector<512x32xf32>
    %27 = arith.cmpf ogt, %25, %26 : vector<512x32xf32>
    %cst_20 = arith.constant 0.00999999977 : f32
    %28 = vector.broadcast %cst_20 : f32 to vector<512x32xf32>
    %29 = arith.mulf %28, %25 : vector<512x32xf32>
    %30 = arith.select %27, %25, %29 : vector<512x32xi1>, vector<512x32xf32>
    %c0_21 = arith.constant 0 : index
    %c0_22 = arith.constant 0 : index
    %31 = vector.load %arg8[%c0_21, %c0_22] : memref<32x128xf32, #tpu.memory_space<vmem>>, vector<32x128xf32>
    %cst_23 = arith.constant dense<0.000000e+00> : vector<512x128xf32>
    %32 = tpu.matmul %30, %31, %cst_23 {dimension_numbers = #tpu.dot_dimension_numbers<[1], [0], [0], [1], [0, 0, 1, 1], [], []>} : vector<512x32xf32>, vector<32x128xf32>, vector<512x128xf32> -> vector<512x128xf32>
    %c0_24 = arith.constant 0 : index
    %c0_25 = arith.constant 0 : index
    %33 = vector.load %arg9[%c0_24, %c0_25] : memref<1x128xf32, #tpu.memory_space<vmem>>, vector<1x128xf32>
    %34 = vector.broadcast %33 : vector<1x128xf32> to vector<512x128xf32>
    %35 = arith.addf %32, %34 : vector<512x128xf32>
    %cst_26 = arith.constant 0.000000e+00 : f32
    %36 = vector.broadcast %cst_26 : f32 to vector<512x128xf32>
    %37 = arith.subf %36, %35 : vector<512x128xf32>
    %38 = math.exp %37 : vector<512x128xf32>
    %cst_27 = arith.constant 1.000000e+00 : f32
    %39 = vector.broadcast %cst_27 : f32 to vector<512x128xf32>
    %40 = arith.addf %39, %38 : vector<512x128xf32>
    %41 = tpu.reciprocal %40 : vector<512x128xf32> -> vector<512x128xf32>
    %c0_28 = arith.constant 0 : index
    %c0_29 = arith.constant 0 : index
    %42 = vector.load %arg10[%c0_28, %c0_29] : memref<512x128xf32, #tpu.memory_space<vmem>>, vector<512x128xf32>
    tpu.vector_store %arg10[%c0_28, %c0_29], %41 {strides = array<i32>} : memref<512x128xf32, #tpu.memory_space<vmem>>, vector<512x128xf32>,
    return
  }
  func.func @transform_0(%arg0: i32) -> (i32, i32) {
    %c0_i32 = arith.constant 0 : i32
    %c0_i32_0 = arith.constant 0 : i32
    return %arg0, %c0_i32 : i32, i32
  }
  func.func @transform_1(%arg0: i32) -> (i32, i32) {
    %c0_i32 = arith.constant 0 : i32
    %c0_i32_0 = arith.constant 0 : i32
    %c0_i32_1 = arith.constant 0 : i32
    return %c0_i32, %c0_i32_0 : i32, i32
  }
  func.func @transform_2(%arg0: i32) -> (i32, i32) {
    %c0_i32 = arith.constant 0 : i32
    %c0_i32_0 = arith.constant 0 : i32
    %c0_i32_1 = arith.constant 0 : i32
    return %c0_i32, %c0_i32_0 : i32, i32
  }
  func.func @transform_3(%arg0: i32) -> (i32, i32) {
    %c0_i32 = arith.constant 0 : i32
    %c0_i32_0 = arith.constant 0 : i32
    %c0_i32_1 = arith.constant 0 : i32
    return %c0_i32, %c0_i32_0 : i32, i32
  }
  func.func @transform_4(%arg0: i32) -> (i32, i32) {
    %c0_i32 = arith.constant 0 : i32
    %c0_i32_0 = arith.constant 0 : i32
    %c0_i32_1 = arith.constant 0 : i32
    return %c0_i32, %c0_i32_0 : i32, i32
  }
  func.func @transform_5(%arg0: i32) -> (i32, i32) {
    %c0_i32 = arith.constant 0 : i32
    %c0_i32_0 = arith.constant 0 : i32
    %c0_i32_1 = arith.constant 0 : i32
    return %c0_i32, %c0_i32_0 : i32, i32
  }
  func.func @transform_6(%arg0: i32) -> (i32, i32) {
    %c0_i32 = arith.constant 0 : i32
    %c0_i32_0 = arith.constant 0 : i32
    %c0_i32_1 = arith.constant 0 : i32
    return %c0_i32, %c0_i32_0 : i32, i32
  }
  func.func @transform_7(%arg0: i32) -> (i32, i32) {
    %c0_i32 = arith.constant 0 : i32
    %c0_i32_0 = arith.constant 0 : i32
    %c0_i32_1 = arith.constant 0 : i32
    return %c0_i32, %c0_i32_0 : i32, i32
  }
  func.func @transform_8(%arg0: i32) -> (i32, i32) {
    %c0_i32 = arith.constant 0 : i32
    %c0_i32_0 = arith.constant 0 : i32
    %c0_i32_1 = arith.constant 0 : i32
    return %c0_i32, %c0_i32_0 : i32, i32
  }
  func.func @transform_9(%arg0: i32) -> (i32, i32) {
    %c0_i32 = arith.constant 0 : i32
    %c0_i32_0 = arith.constant 0 : i32
    return %arg0, %c0_i32 : i32, i32
  }
}

</mosaic_0001>

<llo_original>
// kernel: classifier_new_forward.1
$region0: #{classifier_new_forward.1}
  #allocation0 [shape = 'u32[]', space=smem, size = 0x4, offset = 0x4, fixed_abs, tag = 'smem constant byte address 0x4 - core index']
  #allocation1 [shape = 'u32[144,128]{1,0:T(1,128)}', space=vmem, size = 0x12000, scoped, tag = 'internal scratch']
  %s0 = inlined_call_operand.vmem [shape: f32[1024,64], index: 0, kind: input, shape index: {}]
  %s1 = inlined_call_operand.vmem [shape: f32[64,512], index: 1, kind: input, shape index: {}]
  %s2 = inlined_call_operand.vmem [shape: f32[1,512], index: 2, kind: input, shape index: {}]
  %s3 = inlined_call_operand.vmem [shape: f32[512,128], index: 3, kind: input, shape index: {}]
  %s4 = inlined_call_operand.vmem [shape: f32[1,128], index: 4, kind: input, shape index: {}]
  %s5 = inlined_call_operand.vmem [shape: f32[128,32], index: 5, kind: input, shape index: {}]
  %s6 = inlined_call_operand.vmem [shape: f32[1,32], index: 6, kind: input, shape index: {}]
  %s7 = inlined_call_operand.vmem [shape: f32[32,128], index: 7, kind: input, shape index: {}]
  %s8 = inlined_call_operand.vmem [shape: f32[1,128], index: 8, kind: input, shape index: {}]
  %s9 = inlined_call_operand.vmem [shape: f32[1024,128], index: 9, kind: output, shape index: {}]
  %s10 = sld [smem:[#allocation0]]
  $region69: #{classifier_new_forward.1} parent=0
    _
  %s12 = ssub.s32 1, %s10
  %s13 = scalar_select 0, %s12, %s10
  loop: start=0, step=1, limit=4
  $region2: #{classifier_new_forward.1} parent=0 // loop_pre_header
    _
  $region3: #{classifier_new_forward.1} parent=0 // loop_header
    %s15 = sphi 0, %s19
    %p16 = scmp.ge.s32.totalorder %s15, 4
    %s25 = sphi 0, %s27
    %s28 = sphi 0, %s25
    %s29 = sphi 0, %s28
    %s45 = sphi 0, %s29
    %s49 = sphi 0, %s49
    %s51 = sphi 0, %s49
    %s52 = sphi 0, %s51
    %s66 = sphi 0, %s52
    %s70 = sphi 0, %s70
    %s72 = sphi 0, %s70
    %s73 = sphi 0, %s72
    %s87 = sphi 0, %s73
    %s91 = sphi 0, %s91
    %s93 = sphi 0, %s91
    %s94 = sphi 0, %s93
    %s108 = sphi 0, %s94
    %s112 = sphi 0, %s112
    %s114 = sphi 0, %s112
    %s115 = sphi 0, %s114
    %s129 = sphi 0, %s115
    %s133 = sphi 0, %s133
    %s135 = sphi 0, %s133
    %s136 = sphi 0, %s135
    %s150 = sphi 0, %s136
    %s154 = sphi 0, %s154
    %s156 = sphi 0, %s154
    %s157 = sphi 0, %s156
    %s171 = sphi 0, %s157
    %s175 = sphi 0, %s175
    %s177 = sphi 0, %s175
    %s178 = sphi 0, %s177
    %s192 = sphi 0, %s178
    %s196 = sphi 0, %s196
    %s198 = sphi 0, %s196
    %s199 = sphi 0, %s198
    %s213 = sphi 0, %s199
    %s219 = sphi 0, %s221
    %s222 = sphi 0, %s219
    %s223 = sphi 0, %s222
    %s239 = sphi 0, %s223
  $region4: #{classifier_new_forward.1} parent=0 // loop_header_branch
    %18 = sbr.rel (%p16) target = $region8
  $region5: #{classifier_new_forward.1} parent=0 // loop_body
    %s20 = ssub.s32 %s15, 1
    %s21 = ssub.s32 %s15, 2
    %s22 = sadd.s32 %s15, 1
    %s23 = ssub.s32 %s15, %s22
    %p24 = scmp.eq.s32.totalorder %s23, 0
    %s26 = sadd.s32 %s25, 1
    %s27 = scalar_select %p24, %s25, %s26
    %p30 = pneg %p24
    %p31 = scmp.eq.s32.totalorder %s15, 1
    %p32 = por %p30, %p31
    %p33 = scmp.ne.s32.totalorder %s25, %s28
    %p34 = scmp.eq.s32.totalorder %s15, 0
    %p35 = por %p33, %p34
    %p36 = scmp.ne.s32.totalorder %s25, %s28
    %p37 = scmp.eq.s32.totalorder %s20, 1
    %p38 = por %p36, %p37
    %p39 = scmp.ne.s32.totalorder %s28, %s29
    %p40 = scmp.eq.s32.totalorder %s20, 0
    %p41 = por %p39, %p40
    %p42 = scmp.ne.s32.totalorder %s28, %s29
    %p43 = scmp.eq.s32.totalorder %s21, 1
    %p44 = por %p42, %p43
    %p46 = scmp.ne.s32.totalorder %s29, %s45
    %p47 = scmp.eq.s32.totalorder %s21, 0
    %p48 = por %p46, %p47
    %s50 = sadd.s32 %s49, 1
    %p53 = scmp.eq.s32.totalorder %s15, 1
    %p54 = scmp.ne.s32.totalorder %s49, %s51
    %p55 = scmp.eq.s32.totalorder %s15, 0
    %p56 = por %p54, %p55
    %p57 = scmp.ne.s32.totalorder %s49, %s51
    %p58 = scmp.eq.s32.totalorder %s20, 1
    %p59 = por %p57, %p58
    %p60 = scmp.ne.s32.totalorder %s51, %s52
    %p61 = scmp.eq.s32.totalorder %s20, 0
    %p62 = por %p60, %p61
    %p63 = scmp.ne.s32.totalorder %s51, %s52
    %p64 = scmp.eq.s32.totalorder %s21, 1
    %p65 = por %p63, %p64
    %p67 = scmp.ne.s32.totalorder %s52, %s66
    %p68 = scmp.eq.s32.totalorder %s21, 0
    %p69 = por %p67, %p68
    %s71 = sadd.s32 %s70, 1
    %p74 = scmp.eq.s32.totalorder %s15, 1
    %p75 = scmp.ne.s32.totalorder %s70, %s72
    %p76 = scmp.eq.s32.totalorder %s15, 0
    %p77 = por %p75, %p76
    %p78 = scmp.ne.s32.totalorder %s70, %s72
    %p79 = scmp.eq.s32.totalorder %s20, 1
    %p80 = por %p78, %p79
    %p81 = scmp.ne.s32.totalorder %s72, %s73
    %p82 = scmp.eq.s32.totalorder %s20, 0
    %p83 = por %p81, %p82
    %p84 = scmp.ne.s32.totalorder %s72, %s73
    %p85 = scmp.eq.s32.totalorder %s21, 1
    %p86 = por %p84, %p85
    %p88 = scmp.ne.s32.totalorder %s73, %s87
    %p89 = scmp.eq.s32.totalorder %s21, 0
    %p90 = por %p88, %p89
    %s92 = sadd.s32 %s91, 1
    %p95 = scmp.eq.s32.totalorder %s15, 1
    %p96 = scmp.ne.s32.totalorder %s91, %s93
    %p97 = scmp.eq.s32.totalorder %s15, 0
    %p98 = por %p96, %p97
    %p99 = scmp.ne.s32.totalorder %s91, %s93
    %p100 = scmp.eq.s32.totalorder %s20, 1
    %p101 = por %p99, %p100
    %p102 = scmp.ne.s32.totalorder %s93, %s94
    %p103 = scmp.eq.s32.totalorder %s20, 0
    %p104 = por %p102, %p103
    %p105 = scmp.ne.s32.totalorder %s93, %s94
    %p106 = scmp.eq.s32.totalorder %s21, 1
    %p107 = por %p105, %p106
    %p109 = scmp.ne.s32.totalorder %s94, %s108
    %p110 = scmp.eq.s32.totalorder %s21, 0
    %p111 = por %p109, %p110
    %s113 = sadd.s32 %s112, 1
    %p116 = scmp.eq.s32.totalorder %s15, 1
    %p117 = scmp.ne.s32.totalorder %s112, %s114
    %p118 = scmp.eq.s32.totalorder %s15, 0
    %p119 = por %p117, %p118
    %p120 = scmp.ne.s32.totalorder %s112, %s114
    %p121 = scmp.eq.s32.totalorder %s20, 1
    %p122 = por %p120, %p121
    %p123 = scmp.ne.s32.totalorder %s114, %s115
    %p124 = scmp.eq.s32.totalorder %s20, 0
    %p125 = por %p123, %p124
    %p126 = scmp.ne.s32.totalorder %s114, %s115
    %p127 = scmp.eq.s32.totalorder %s21, 1
    %p128 = por %p126, %p127
    %p130 = scmp.ne.s32.totalorder %s115, %s129
    %p131 = scmp.eq.s32.totalorder %s21, 0
    %p132 = por %p130, %p131
    %s134 = sadd.s32 %s133, 1
    %p137 = scmp.eq.s32.totalorder %s15, 1
    %p138 = scmp.ne.s32.totalorder %s133, %s135
    %p139 = scmp.eq.s32.totalorder %s15, 0
    %p140 = por %p138, %p139
    %p141 = scmp.ne.s32.totalorder %s133, %s135
    %p142 = scmp.eq.s32.totalorder %s20, 1
    %p143 = por %p141, %p142
    %p144 = scmp.ne.s32.totalorder %s135, %s136
    %p145 = scmp.eq.s32.totalorder %s20, 0
    %p146 = por %p144, %p145
    %p147 = scmp.ne.s32.totalorder %s135, %s136
    %p148 = scmp.eq.s32.totalorder %s21, 1
    %p149 = por %p147, %p148
    %p151 = scmp.ne.s32.totalorder %s136, %s150
    %p152 = scmp.eq.s32.totalorder %s21, 0
    %p153 = por %p151, %p152
    %s155 = sadd.s32 %s154, 1
    %p158 = scmp.eq.s32.totalorder %s15, 1
    %p159 = scmp.ne.s32.totalorder %s154, %s156
    %p160 = scmp.eq.s32.totalorder %s15, 0
    %p161 = por %p159, %p160
    %p162 = scmp.ne.s32.totalorder %s154, %s156
    %p163 = scmp.eq.s32.totalorder %s20, 1
    %p164 = por %p162, %p163
    %p165 = scmp.ne.s32.totalorder %s156, %s157
    %p166 = scmp.eq.s32.totalorder %s20, 0
    %p167 = por %p165, %p166
    %p168 = scmp.ne.s32.totalorder %s156, %s157
    %p169 = scmp.eq.s32.totalorder %s21, 1
    %p170 = por %p168, %p169
    %p172 = scmp.ne.s32.totalorder %s157, %s171
    %p173 = scmp.eq.s32.totalorder %s21, 0
    %p174 = por %p172, %p173
    %s176 = sadd.s32 %s175, 1
    %p179 = scmp.eq.s32.totalorder %s15, 1
    %p180 = scmp.ne.s32.totalorder %s175, %s177
    %p181 = scmp.eq.s32.totalorder %s15, 0
    %p182 = por %p180, %p181
    %p183 = scmp.ne.s32.totalorder %s175, %s177
    %p184 = scmp.eq.s32.totalorder %s20, 1
    %p185 = por %p183, %p184
    %p186 = scmp.ne.s32.totalorder %s177, %s178
    %p187 = scmp.eq.s32.totalorder %s20, 0
    %p188 = por %p186, %p187
    %p189 = scmp.ne.s32.totalorder %s177, %s178
    %p190 = scmp.eq.s32.totalorder %s21, 1
    %p191 = por %p189, %p190
    %p193 = scmp.ne.s32.totalorder %s178, %s192
    %p194 = scmp.eq.s32.totalorder %s21, 0
    %p195 = por %p193, %p194
    %s197 = sadd.s32 %s196, 1
    %p200 = scmp.eq.s32.totalorder %s15, 1
    %p201 = scmp.ne.s32.totalorder %s196, %s198
    %p202 = scmp.eq.s32.totalorder %s15, 0
    %p203 = por %p201, %p202
    %p204 = scmp.ne.s32.totalorder %s196, %s198
    %p205 = scmp.eq.s32.totalorder %s20, 1
    %p206 = por %p204, %p205
    %p207 = scmp.ne.s32.totalorder %s198, %s199
    %p208 = scmp.eq.s32.totalorder %s20, 0
    %p209 = por %p207, %p208
    %p210 = scmp.ne.s32.totalorder %s198, %s199
    %p211 = scmp.eq.s32.totalorder %s21, 1
    %p212 = por %p210, %p211
    %p214 = scmp.ne.s32.totalorder %s199, %s213
    %p215 = scmp.eq.s32.totalorder %s21, 0
    %p216 = por %p214, %p215
    %s217 = ssub.s32 %s15, %s22
    %p218 = scmp.eq.s32.totalorder %s217, 0
    %s220 = sadd.s32 %s219, 1
    %s221 = scalar_select %p218, %s219, %s220
    %p224 = pneg %p218
    %p225 = scmp.eq.s32.totalorder %s15, 1
    %p226 = por %p224, %p225
    %p227 = scmp.ne.s32.totalorder %s219, %s222
    %p228 = scmp.eq.s32.totalorder %s15, 0
    %p229 = por %p227, %p228
    %p230 = scmp.ne.s32.totalorder %s219, %s222
    %p231 = scmp.eq.s32.totalorder %s20, 1
    %p232 = por %p230, %p231
    %p233 = scmp.ne.s32.totalorder %s222, %s223
    %p234 = scmp.eq.s32.totalorder %s20, 0
    %p235 = por %p233, %p234
    %p236 = scmp.ne.s32.totalorder %s222, %s223
    %p237 = scmp.eq.s32.totalorder %s21, 1
    %p238 = por %p236, %p237
    %p240 = scmp.ne.s32.totalorder %s223, %s239
    %p241 = scmp.eq.s32.totalorder %s21, 0
    %p242 = por %p240, %p241
    %p243 = scmp.le.s32.totalorder 1, %s15
    %p244 = scmp.lt.s32.totalorder %s15, 3
    %p245 = pnand %p243, %p244
    %p246 = pneg %p245
    // Predicated region
    $region9: #{classifier_new_forward.1} parent=5 // pred_check
      _
    $region10: #{classifier_new_forward.1} parent=5 // pred_check_branch
      %248 = sbr.rel (%p245) target = $region12
    $region11: #{classifier_new_forward.1} parent=5 // pred_region
      %s249 = ssub.s32 %s15, 1
      // Predicated region
      $region13: #{classifier_new_forward.1} parent=11 // pred_check
        %p250 = pneg %p62
      $region14: #{classifier_new_forward.1} parent=11 // pred_check_branch
        %252 = sbr.rel (%p250) target = $region16
      $region15: #{classifier_new_forward.1} parent=11 // pred_region
        _
      $region16: #{classifier_new_forward.1} parent=11 // pred_fallthru
        _
      // Predicated region
      $region17: #{classifier_new_forward.1} parent=11 // pred_check
        %p253 = pneg %p83
      $region18: #{classifier_new_forward.1} parent=11 // pred_check_branch
        %255 = sbr.rel (%p253) target = $region20
      $region19: #{classifier_new_forward.1} parent=11 // pred_region
        _
      $region20: #{classifier_new_forward.1} parent=11 // pred_fallthru
        _
      // Predicated region
      $region21: #{classifier_new_forward.1} parent=11 // pred_check
        %p256 = pneg %p104
      $region22: #{classifier_new_forward.1} parent=11 // pred_check_branch
        %258 = sbr.rel (%p256) target = $region24
      $region23: #{classifier_new_forward.1} parent=11 // pred_region
        _
      $region24: #{classifier_new_forward.1} parent=11 // pred_fallthru
        _
      // Predicated region
      $region25: #{classifier_new_forward.1} parent=11 // pred_check
        %p259 = pneg %p125
      $region26: #{classifier_new_forward.1} parent=11 // pred_check_branch
        %261 = sbr.rel (%p259) target = $region28
      $region27: #{classifier_new_forward.1} parent=11 // pred_region
        _
      $region28: #{classifier_new_forward.1} parent=11 // pred_fallthru
        _
      // Predicated region
      $region29: #{classifier_new_forward.1} parent=11 // pred_check
        %p262 = pneg %p146
      $region30: #{classifier_new_forward.1} parent=11 // pred_check_branch
        %264 = sbr.rel (%p262) target = $region32
      $region31: #{classifier_new_forward.1} parent=11 // pred_region
        _
      $region32: #{classifier_new_forward.1} parent=11 // pred_fallthru
        _
      // Predicated region
      $region33: #{classifier_new_forward.1} parent=11 // pred_check
        %p265 = pneg %p167
      $region34: #{classifier_new_forward.1} parent=11 // pred_check_branch
        %267 = sbr.rel (%p265) target = $region36
      $region35: #{classifier_new_forward.1} parent=11 // pred_region
        _
      $region36: #{classifier_new_forward.1} parent=11 // pred_fallthru
        _
      // Predicated region
      $region37: #{classifier_new_forward.1} parent=11 // pred_check
        %p268 = pneg %p188
      $region38: #{classifier_new_forward.1} parent=11 // pred_check_branch
        %270 = sbr.rel (%p268) target = $region40
      $region39: #{classifier_new_forward.1} parent=11 // pred_region
        _
      $region40: #{classifier_new_forward.1} parent=11 // pred_fallthru
        _
      // Predicated region
      $region41: #{classifier_new_forward.1} parent=11 // pred_check
        %p271 = pneg %p209
      $region42: #{classifier_new_forward.1} parent=11 // pred_check_branch
        %273 = sbr.rel (%p271) target = $region44
      $region43: #{classifier_new_forward.1} parent=11 // pred_region
        _
      $region44: #{classifier_new_forward.1} parent=11 // pred_fallthru
        _
    $region12: #{classifier_new_forward.1} parent=5 // pred_fallthru
      _
    %p274 = scmp.lt.s32.totalorder %s15, 2
    // Predicated region
    $region45: #{classifier_new_forward.1} parent=5 // pred_check
      %p275 = pneg %p274
    $region46: #{classifier_new_forward.1} parent=5 // pred_check_branch
      %277 = sbr.rel (%p275) target = $region48
    $region47: #{classifier_new_forward.1} parent=5 // pred_region
      // Predicated region
      $region49: #{classifier_new_forward.1} parent=47 // pred_check
        %p278 = pneg %p35
      $region50: #{classifier_new_forward.1} parent=47 // pred_check_branch
        %280 = sbr.rel (%p278) target = $region52
      $region51: #{classifier_new_forward.1} parent=47 // pred_region
        %s281 = smul.u32 64, %s15
        %p282 = scmp.lt.s32.totalorder %s281, 127
        %s283 = scalar_select %p282, %s281, 127
        %s284 = smul.addr %s283, 8
        %s285 = scalar_lea.vmem %s0, %s284
        %s286 = smul.u32 64, %s15
      $region52: #{classifier_new_forward.1} parent=47 // pred_fallthru
        _
    $region48: #{classifier_new_forward.1} parent=5 // pred_fallthru
      _
    %p287 = scmp.le.s32.totalorder 1, %s15
    %p288 = scmp.lt.s32.totalorder %s15, 3
    %p289 = pnand %p287, %p288
    %p290 = pneg %p289
    // Predicated region
    $region53: #{classifier_new_forward.1} parent=5 // pred_check
      _
    $region54: #{classifier_new_forward.1} parent=5 // pred_check_branch
      %292 = sbr.rel (%p289) target = $region56
    $region55: #{classifier_new_forward.1} parent=5 // pred_region
      %s293 = ssub.s32 %s15, 1
      %s294 = smul.u32 64, %s20
      %p295 = scmp.lt.s32.totalorder %s294, 127
      %s296 = scalar_select %p295, %s294, 127
      %s297 = smul.addr %s296, 8
      %s298 = scalar_lea.vmem %s0, %s297
      %p299 = pneg %p41
      %p300 = pneg %p38
      %p301 = pneg %p62
      %p302 = pneg %p59
      %p303 = pneg %p83
      %p304 = pneg %p80
      %p305 = pneg %p104
      %p306 = pneg %p101
      %p307 = pneg %p125
      %p308 = pneg %p122
      %p309 = pneg %p146
      %p310 = pneg %p143
      %p311 = pneg %p167
      %p312 = pneg %p164
      %p313 = pneg %p188
      %p314 = pneg %p185
      %p315 = pneg %p209
      %p316 = pneg %p206
      %p317 = pneg %p235
      %p318 = pneg %p232
      %s319 = smul.u32 64, %s20
      %p320 = scmp.lt.s32.totalorder %s319, 127
      %s321 = scalar_select %p320, %s319, 127
      %s322 = smul.addr %s321, 8
      %s323 = scalar_lea.vmem %s9, %s322
      %s324 = smul.u32 64, %s20
      %p325 = scmp.lt.s32.totalorder %s324, 127
      %s326 = scalar_select %p325, %s324, 127
      %s327 = smul.addr %s326, 8
      %s328 = scalar_lea.vmem %s0, %s327
      %s329 = smul.u32 64, %s20
      %s330 = smul.u32 64, %s20
      %p331 = scmp.lt.s32.totalorder %s330, 127
      %s332 = scalar_select %p331, %s330, 127
      %s333 = smul.addr %s332, 8
      %s334 = scalar_lea.vmem %s9, %s333
      %s335 = smul.u32 64, %s20
      %v336 = vld [vmem:[%s328] sm:$0xff]
      %v337 = vld [vmem:[%s328 + $0x8] sm:$0xff]
      %v338 = vld [vmem:[%s328 + $0x10] sm:$0xff]
      %v339 = vld [vmem:[%s328 + $0x18] sm:$0xff]
      %v340 = vld [vmem:[%s328 + $0x20] sm:$0xff]
      %v341 = vld [vmem:[%s328 + $0x28] sm:$0xff]
      %v342 = vld [vmem:[%s328 + $0x30] sm:$0xff]
      %v343 = vld [vmem:[%s328 + $0x38] sm:$0xff]
      %v344 = vld [vmem:[%s328 + $0x40] sm:$0xff]
      %v345 = vld [vmem:[%s328 + $0x48] sm:$0xff]
      %v346 = vld [vmem:[%s328 + $0x50] sm:$0xff]
      %v347 = vld [vmem:[%s328 + $0x58] sm:$0xff]
      %v348 = vld [vmem:[%s328 + $0x60] sm:$0xff]
      %v349 = vld [vmem:[%s328 + $0x68] sm:$0xff]
      %v350 = vld [vmem:[%s328 + $0x70] sm:$0xff]
      %v351 = vld [vmem:[%s328 + $0x78] sm:$0xff]
      %v352 = vld [vmem:[%s328 + $0x80] sm:$0xff]
      %v353 = vld [vmem:[%s328 + $0x88] sm:$0xff]
      %v354 = vld [vmem:[%s328 + $0x90] sm:$0xff]
      %v355 = vld [vmem:[%s328 + $0x98] sm:$0xff]
      %v356 = vld [vmem:[%s328 + $0xa0] sm:$0xff]
      %v357 = vld [vmem:[%s328 + $0xa8] sm:$0xff]
      %v358 = vld [vmem:[%s328 + $0xb0] sm:$0xff]
      %v359 = vld [vmem:[%s328 + $0xb8] sm:$0xff]
      %v360 = vld [vmem:[%s328 + $0xc0] sm:$0xff]
      %v361 = vld [vmem:[%s328 + $0xc8] sm:$0xff]
      %v362 = vld [vmem:[%s328 + $0xd0] sm:$0xff]
      %v363 = vld [vmem:[%s328 + $0xd8] sm:$0xff]
      %v364 = vld [vmem:[%s328 + $0xe0] sm:$0xff]
      %v365 = vld [vmem:[%s328 + $0xe8] sm:$0xff]
      %v366 = vld [vmem:[%s328 + $0xf0] sm:$0xff]
      %v367 = vld [vmem:[%s328 + $0xf8] sm:$0xff]
      %v368 = vld [vmem:[%s328 + $0x100] sm:$0xff]
      %v369 = vld [vmem:[%s328 + $0x108] sm:$0xff]
      %v370 = vld [vmem:[%s328 + $0x110] sm:$0xff]
      %v371 = vld [vmem:[%s328 + $0x118] sm:$0xff]
      %v372 = vld [vmem:[%s328 + $0x120] sm:$0xff]
      %v373 = vld [vmem:[%s328 + $0x128] sm:$0xff]
      %v374 = vld [vmem:[%s328 + $0x130] sm:$0xff]
      %v375 = vld [vmem:[%s328 + $0x138] sm:$0xff]
      %v376 = vld [vmem:[%s328 + $0x140] sm:$0xff]
      %v377 = vld [vmem:[%s328 + $0x148] sm:$0xff]
      %v378 = vld [vmem:[%s328 + $0x150] sm:$0xff]
      %v379 = vld [vmem:[%s328 + $0x158] sm:$0xff]
      %v380 = vld [vmem:[%s328 + $0x160] sm:$0xff]
      %v381 = vld [vmem:[%s328 + $0x168] sm:$0xff]
      %v382 = vld [vmem:[%s328 + $0x170] sm:$0xff]
      %v383 = vld [vmem:[%s328 + $0x178] sm:$0xff]
      %v384 = vld [vmem:[%s328 + $0x180] sm:$0xff]
      %v385 = vld [vmem:[%s328 + $0x188] sm:$0xff]
      %v386 = vld [vmem:[%s328 + $0x190] sm:$0xff]
      %v387 = vld [vmem:[%s328 + $0x198] sm:$0xff]
      %v388 = vld [vmem:[%s328 + $0x1a0] sm:$0xff]
      %v389 = vld [vmem:[%s328 + $0x1a8] sm:$0xff]
      %v390 = vld [vmem:[%s328 + $0x1b0] sm:$0xff]
      %v391 = vld [vmem:[%s328 + $0x1b8] sm:$0xff]
      %v392 = vld [vmem:[%s328 + $0x1c0] sm:$0xff]
      %v393 = vld [vmem:[%s328 + $0x1c8] sm:$0xff]
      %v394 = vld [vmem:[%s328 + $0x1d0] sm:$0xff]
      %v395 = vld [vmem:[%s328 + $0x1d8] sm:$0xff]
      %v396 = vld [vmem:[%s328 + $0x1e0] sm:$0xff]
      %v397 = vld [vmem:[%s328 + $0x1e8] sm:$0xff]
      %v398 = vld [vmem:[%s328 + $0x1f0] sm:$0xff]
      %v399 = vld [vmem:[%s328 + $0x1f8] sm:$0xff]
      %v400 = vld [vmem:[%s1] sm:$0xff]
      %v401 = vld [vmem:[%s1 + $0x8] sm:$0xff]
      %v402 = vld [vmem:[%s1 + $0x10] sm:$0xff]
      %v403 = vld [vmem:[%s1 + $0x18] sm:$0xff]
      %v404 = vld [vmem:[%s1 + $0x20] sm:$0xff]
      %v405 = vld [vmem:[%s1 + $0x28] sm:$0xff]
      %v406 = vld [vmem:[%s1 + $0x30] sm:$0xff]
      %v407 = vld [vmem:[%s1 + $0x38] sm:$0xff]
      %v408 = vld [vmem:[%s1 + $0x40] sm:$0xff]
      %v409 = vld [vmem:[%s1 + $0x48] sm:$0xff]
      %v410 = vld [vmem:[%s1 + $0x50] sm:$0xff]
      %v411 = vld [vmem:[%s1 + $0x58] sm:$0xff]
      %v412 = vld [vmem:[%s1 + $0x60] sm:$0xff]
      %v413 = vld [vmem:[%s1 + $0x68] sm:$0xff]
      %v414 = vld [vmem:[%s1 + $0x70] sm:$0xff]
      %v415 = vld [vmem:[%s1 + $0x78] sm:$0xff]
      %v416 = vld [vmem:[%s1 + $0x80] sm:$0xff]
      %v417 = vld [vmem:[%s1 + $0x88] sm:$0xff]
      %v418 = vld [vmem:[%s1 + $0x90] sm:$0xff]
      %v419 = vld [vmem:[%s1 + $0x98] sm:$0xff]
      %v420 = vld [vmem:[%s1 + $0xa0] sm:$0xff]
      %v421 = vld [vmem:[%s1 + $0xa8] sm:$0xff]
      %v422 = vld [vmem:[%s1 + $0xb0] sm:$0xff]
      %v423 = vld [vmem:[%s1 + $0xb8] sm:$0xff]
      %v424 = vld [vmem:[%s1 + $0xc0] sm:$0xff]
      %v425 = vld [vmem:[%s1 + $0xc8] sm:$0xff]
      %v426 = vld [vmem:[%s1 + $0xd0] sm:$0xff]
      %v427 = vld [vmem:[%s1 + $0xd8] sm:$0xff]
      %v428 = vld [vmem:[%s1 + $0xe0] sm:$0xff]
      %v429 = vld [vmem:[%s1 + $0xe8] sm:$0xff]
      %v430 = vld [vmem:[%s1 + $0xf0] sm:$0xff]
      %v431 = vld [vmem:[%s1 + $0xf8] sm:$0xff]
      %v432 = vld [vmem:[%s2] sm:$0xf]
      %v434 = vlaneseq
      %v435 = vshrl.u32 %v434, 7
      %v436 = vsub.s32 0, %v435
      %v437 = vrot.slane %v432, %v436
      %v438 = vlaneseq
      %v439 = vshrl.u32 %v438, 7
      %v440 = vsub.s32 1, %v439
      %v441 = vrot.slane %v432, %v440
      %v442 = vlaneseq
      %v443 = vshrl.u32 %v442, 7
      %v444 = vsub.s32 2, %v443
      %v445 = vrot.slane %v432, %v444
      %v446 = vlaneseq
      %v447 = vshrl.u32 %v446, 7
      %v448 = vsub.s32 3, %v447
      %v449 = vrot.slane %v432, %v448
      %vm454 = vcmask 523264
      %v456 = vsel %vm454, %v336, 0
      %v459 = vsel %vm454, %v337, 0
      %v462 = vsel %vm454, %v338, 0
      %v465 = vsel %vm454, %v339, 0
      %v468 = vsel %vm454, %v340, 0
      %v471 = vsel %vm454, %v341, 0
      %v474 = vsel %vm454, %v342, 0
      %v477 = vsel %vm454, %v343, 0
      %v480 = vsel %vm454, %v344, 0
      %v483 = vsel %vm454, %v345, 0
      %v486 = vsel %vm454, %v346, 0
      %v489 = vsel %vm454, %v347, 0
      %v492 = vsel %vm454, %v348, 0
      %v495 = vsel %vm454, %v349, 0
      %v498 = vsel %vm454, %v350, 0
      %v501 = vsel %vm454, %v351, 0
      %v504 = vsel %vm454, %v352, 0
      %v507 = vsel %vm454, %v353, 0
      %v510 = vsel %vm454, %v354, 0
      %v513 = vsel %vm454, %v355, 0
      %v516 = vsel %vm454, %v356, 0
      %v519 = vsel %vm454, %v357, 0
      %v522 = vsel %vm454, %v358, 0
      %v525 = vsel %vm454, %v359, 0
      %v528 = vsel %vm454, %v360, 0
      %v531 = vsel %vm454, %v361, 0
      %v534 = vsel %vm454, %v362, 0
      %v537 = vsel %vm454, %v363, 0
      %v540 = vsel %vm454, %v364, 0
      %v543 = vsel %vm454, %v365, 0
      %v546 = vsel %vm454, %v366, 0
      %v549 = vsel %vm454, %v367, 0
      %v552 = vsel %vm454, %v368, 0
      %v555 = vsel %vm454, %v369, 0
      %v558 = vsel %vm454, %v370, 0
      %v561 = vsel %vm454, %v371, 0
      %v564 = vsel %vm454, %v372, 0
      %v567 = vsel %vm454, %v373, 0
      %v570 = vsel %vm454, %v374, 0
      %v573 = vsel %vm454, %v375, 0
      %v576 = vsel %vm454, %v376, 0
      %v579 = vsel %vm454, %v377, 0
      %v582 = vsel %vm454, %v378, 0
      %v585 = vsel %vm454, %v379, 0
      %v588 = vsel %vm454, %v380, 0
      %v591 = vsel %vm454, %v381, 0
      %v594 = vsel %vm454, %v382, 0
      %v597 = vsel %vm454, %v383, 0
      %v600 = vsel %vm454, %v384, 0
      %v603 = vsel %vm454, %v385, 0
      %v606 = vsel %vm454, %v386, 0
      %v609 = vsel %vm454, %v387, 0
      %v612 = vsel %vm454, %v388, 0
      %v615 = vsel %vm454, %v389, 0
      %v618 = vsel %vm454, %v390, 0
      %v621 = vsel %vm454, %v391, 0
      %v624 = vsel %vm454, %v392, 0
      %v627 = vsel %vm454, %v393, 0
      %v630 = vsel %vm454, %v394, 0
      %v633 = vsel %vm454, %v395, 0
      %v636 = vsel %vm454, %v396, 0
      %v639 = vsel %vm454, %v397, 0
      %v642 = vsel %vm454, %v398, 0
      %v645 = vsel %vm454, %v399, 0
      %647 = vmatprep.subr.mxu0 0.0
      %648 = vmatpush1.msra.mxu0 0.0
      %649 = vmatprep.subr.mxu0 0.0
      %650 = vmatpush1.msra.mxu0 0.0
      %651 = vmatprep.subr.mxu0 0.0
      %652 = vmatpush1.msra.mxu0 0.0
      %653 = vmatprep.subr.mxu0 0.0
      %654 = vmatpush1.msra.mxu0 0.0
      %655 = vmatprep.subr.mxu0 0.0
      %656 = vmatpush1.msra.mxu0 0.0
      %657 = vmatprep.subr.mxu0 0.0
      %658 = vmatpush1.msra.mxu0 0.0
      %659 = vmatprep.subr.mxu0 0.0
      %660 = vmatpush1.msra.mxu0 0.0
      %661 = vmatprep.subr.mxu0 0.0
      %662 = vmatpush1.msra.mxu0 0.0
      %663 = vmatprep.subr.mxu0 %v429
      %664 = vmatpush1.msra.mxu0 %v428
      %665 = vmatprep.subr.mxu0 %v425
      %666 = vmatpush1.msra.mxu0 %v424
      %667 = vmatprep.subr.mxu0 %v421
      %668 = vmatpush1.msra.mxu0 %v420
      %669 = vmatprep.subr.mxu0 %v417
      %670 = vmatpush1.msra.mxu0 %v416
      %671 = vmatprep.subr.mxu0 %v413
      %672 = vmatpush1.msra.mxu0 %v412
      %673 = vmatprep.subr.mxu0 %v409
      %674 = vmatpush1.msra.mxu0 %v408
      %675 = vmatprep.subr.mxu0 %v405
      %676 = vmatpush1.msra.mxu0 %v404
      %677 = vmatprep.subr.mxu0 %v401
      %678 = vmatpush1.msra.mxu0 %v400
      %679 = vmatprep.subr.mxu0 0.0
      %680 = vmatpush2.msra.mxu0 0.0
      %681 = vmatprep.subr.mxu0 0.0
      %682 = vmatpush2.msra.mxu0 0.0
      %683 = vmatprep.subr.mxu0 0.0
      %684 = vmatpush2.msra.mxu0 0.0
      %685 = vmatprep.subr.mxu0 0.0
      %686 = vmatpush2.msra.mxu0 0.0
      %687 = vmatprep.subr.mxu0 0.0
      %688 = vmatpush2.msra.mxu0 0.0
      %689 = vmatprep.subr.mxu0 0.0
      %690 = vmatpush2.msra.mxu0 0.0
      %691 = vmatprep.subr.mxu0 0.0
      %692 = vmatpush2.msra.mxu0 0.0
      %693 = vmatprep.subr.mxu0 0.0
      %694 = vmatpush2.msra.mxu0 0.0
      %695 = vmatprep.subr.mxu0 0.0
      %696 = vmatpush2.msra.mxu0 0.0
      %697 = vmatprep.subr.mxu0 0.0
      %698 = vmatpush2.msra.mxu0 0.0
      %699 = vmatprep.subr.mxu0 0.0
      %700 = vmatpush2.msra.mxu0 0.0
      %701 = vmatprep.subr.mxu0 0.0
      %702 = vmatpush2.msra.mxu0 0.0
      %703 = vmatprep.subr.mxu0 0.0
      %704 = vmatpush2.msra.mxu0 0.0
      %705 = vmatprep.subr.mxu0 0.0
      %706 = vmatpush2.msra.mxu0 0.0
      %707 = vmatprep.subr.mxu0 0.0
      %708 = vmatpush2.msra.mxu0 0.0
      %709 = vmatprep.subr.mxu0 0.0
      %710 = vmatpush2.msra.mxu0 0.0
      %711 = vmatprep.mubr.f32.mxu0 0.0
      %712 = vmatmul.mubr.f32.gmra.mxu0 %v456
      %v713 = vpop.f32.mrf.mxu0
      %v714 = vadd.f32 %v437, %v713
      %v715 = vpop.f32.mrf.mxu0
      %v716 = vadd.f32 %v441, %v715
      %717 = vmatprep.mubr.f32.mxu0 0.0
      %718 = vmatmul.mubr.f32.gmra.mxu0 %v459
      %v719 = vpop.f32.mrf.mxu0
      %v720 = vadd.f32 %v437, %v719
      %v721 = vpop.f32.mrf.mxu0
      %v722 = vadd.f32 %v441, %v721
      %723 = vmatprep.mubr.f32.mxu0 0.0
      %724 = vmatmul.mubr.f32.gmra.mxu0 %v462
      %v725 = vpop.f32.mrf.mxu0
      %v726 = vadd.f32 %v437, %v725
      %v727 = vpop.f32.mrf.mxu0
      %v728 = vadd.f32 %v441, %v727
      %729 = vmatprep.mubr.f32.mxu0 0.0
      %730 = vmatmul.mubr.f32.gmra.mxu0 %v465
      %v731 = vpop.f32.mrf.mxu0
      %v732 = vadd.f32 %v437, %v731
      %v733 = vpop.f32.mrf.mxu0
      %v734 = vadd.f32 %v441, %v733
      %735 = vmatprep.mubr.f32.mxu0 0.0
      %736 = vmatmul.mubr.f32.gmra.mxu0 %v468
      %v737 = vpop.f32.mrf.mxu0
      %v738 = vadd.f32 %v437, %v737
      %v739 = vpop.f32.mrf.mxu0
      %v740 = vadd.f32 %v441, %v739
      %741 = vmatprep.mubr.f32.mxu0 0.0
      %742 = vmatmul.mubr.f32.gmra.mxu0 %v471
      %v743 = vpop.f32.mrf.mxu0
      %v744 = vadd.f32 %v437, %v743
      %v745 = vpop.f32.mrf.mxu0
      %v746 = vadd.f32 %v441, %v745
      %747 = vmatprep.mubr.f32.mxu0 0.0
      %748 = vmatmul.mubr.f32.gmra.mxu0 %v474
      %v749 = vpop.f32.mrf.mxu0
      %v750 = vadd.f32 %v437, %v749
      %v751 = vpop.f32.mrf.mxu0
      %v752 = vadd.f32 %v441, %v751
      %753 = vmatprep.mubr.f32.mxu0 0.0
      %754 = vmatmul.mubr.f32.gmra.mxu0 %v477
      %v755 = vpop.f32.mrf.mxu0
      %v756 = vadd.f32 %v437, %v755
      %v757 = vpop.f32.mrf.mxu0
      %v758 = vadd.f32 %v441, %v757
      %759 = vmatprep.mubr.f32.mxu0 0.0
      %760 = vmatmul.mubr.f32.gmra.mxu0 %v480
      %v761 = vpop.f32.mrf.mxu0
      %v762 = vadd.f32 %v437, %v761
      %v763 = vpop.f32.mrf.mxu0
      %v764 = vadd.f32 %v441, %v763
      %765 = vmatprep.mubr.f32.mxu0 0.0
      %766 = vmatmul.mubr.f32.gmra.mxu0 %v483
      %v767 = vpop.f32.mrf.mxu0
      %v768 = vadd.f32 %v437, %v767
      %v769 = vpop.f32.mrf.mxu0
      %v770 = vadd.f32 %v441, %v769
      %771 = vmatprep.mubr.f32.mxu0 0.0
      %772 = vmatmul.mubr.f32.gmra.mxu0 %v486
      %v773 = vpop.f32.mrf.mxu0
      %v774 = vadd.f32 %v437, %v773
      %v775 = vpop.f32.mrf.mxu0
      %v776 = vadd.f32 %v441, %v775
      %777 = vmatprep.mubr.f32.mxu0 0.0
      %778 = vmatmul.mubr.f32.gmra.mxu0 %v489
      %v779 = vpop.f32.mrf.mxu0
      %v780 = vadd.f32 %v437, %v779
      %v781 = vpop.f32.mrf.mxu0
      %v782 = vadd.f32 %v441, %v781
      %783 = vmatprep.mubr.f32.mxu0 0.0
      %784 = vmatmul.mubr.f32.gmra.mxu0 %v492
      %v785 = vpop.f32.mrf.mxu0
      %v786 = vadd.f32 %v437, %v785
      %v787 = vpop.f32.mrf.mxu0
      %v788 = vadd.f32 %v441, %v787
      %789 = vmatprep.mubr.f32.mxu0 0.0
      %790 = vmatmul.mubr.f32.gmra.mxu0 %v495
      %v791 = vpop.f32.mrf.mxu0
      %v792 = vadd.f32 %v437, %v791
      %v793 = vpop.f32.mrf.mxu0
      %v794 = vadd.f32 %v441, %v793
      %795 = vmatprep.mubr.f32.mxu0 0.0
      %796 = vmatmul.mubr.f32.gmra.mxu0 %v498
      %v797 = vpop.f32.mrf.mxu0
      %v798 = vadd.f32 %v437, %v797
      %v799 = vpop.f32.mrf.mxu0
      %v800 = vadd.f32 %v441, %v799
      %801 = vmatprep.mubr.f32.mxu0 0.0
      %802 = vmatmul.mubr.f32.gmra.mxu0 %v501
      %v803 = vpop.f32.mrf.mxu0
      %v804 = vadd.f32 %v437, %v803
      %v805 = vpop.f32.mrf.mxu0
      %v806 = vadd.f32 %v441, %v805
      %807 = vmatprep.mubr.f32.mxu0 0.0
      %808 = vmatmul.mubr.f32.gmra.mxu0 %v504
      %v809 = vpop.f32.mrf.mxu0
      %v810 = vadd.f32 %v437, %v809
      %v811 = vpop.f32.mrf.mxu0
      %v812 = vadd.f32 %v441, %v811
      %813 = vmatprep.mubr.f32.mxu0 0.0
      %814 = vmatmul.mubr.f32.gmra.mxu0 %v507
      %v815 = vpop.f32.mrf.mxu0
      %v816 = vadd.f32 %v437, %v815
      %v817 = vpop.f32.mrf.mxu0
      %v818 = vadd.f32 %v441, %v817
      %819 = vmatprep.mubr.f32.mxu0 0.0
      %820 = vmatmul.mubr.f32.gmra.mxu0 %v510
      %v821 = vpop.f32.mrf.mxu0
      %v822 = vadd.f32 %v437, %v821
      %v823 = vpop.f32.mrf.mxu0
      %v824 = vadd.f32 %v441, %v823
      %825 = vmatprep.mubr.f32.mxu0 0.0
      %826 = vmatmul.mubr.f32.gmra.mxu0 %v513
      %v827 = vpop.f32.mrf.mxu0
      %v828 = vadd.f32 %v437, %v827
      %v829 = vpop.f32.mrf.mxu0
      %v830 = vadd.f32 %v441, %v829
      %831 = vmatprep.mubr.f32.mxu0 0.0
      %832 = vmatmul.mubr.f32.gmra.mxu0 %v516
      %v833 = vpop.f32.mrf.mxu0
      %v834 = vadd.f32 %v437, %v833
      %v835 = vpop.f32.mrf.mxu0
      %v836 = vadd.f32 %v441, %v835
      %837 = vmatprep.mubr.f32.mxu0 0.0
      %838 = vmatmul.mubr.f32.gmra.mxu0 %v519
      %v839 = vpop.f32.mrf.mxu0
      %v840 = vadd.f32 %v437, %v839
      %v841 = vpop.f32.mrf.mxu0
      %v842 = vadd.f32 %v441, %v841
      %843 = vmatprep.mubr.f32.mxu0 0.0
      %844 = vmatmul.mubr.f32.gmra.mxu0 %v522
      %v845 = vpop.f32.mrf.mxu0
      %v846 = vadd.f32 %v437, %v845
      %v847 = vpop.f32.mrf.mxu0
      %v848 = vadd.f32 %v441, %v847
      %849 = vmatprep.mubr.f32.mxu0 0.0
      %850 = vmatmul.mubr.f32.gmra.mxu0 %v525
      %v851 = vpop.f32.mrf.mxu0
      %v852 = vadd.f32 %v437, %v851
      %v853 = vpop.f32.mrf.mxu0
      %v854 = vadd.f32 %v441, %v853
      %855 = vmatprep.mubr.f32.mxu0 0.0
      %856 = vmatmul.mubr.f32.gmra.mxu0 %v528
      %v857 = vpop.f32.mrf.mxu0
      %v858 = vadd.f32 %v437, %v857
      %v859 = vpop.f32.mrf.mxu0
      %v860 = vadd.f32 %v441, %v859
      %861 = vmatprep.mubr.f32.mxu0 0.0
      %862 = vmatmul.mubr.f32.gmra.mxu0 %v531
      %v863 = vpop.f32.mrf.mxu0
      %v864 = vadd.f32 %v437, %v863
      %v865 = vpop.f32.mrf.mxu0
      %v866 = vadd.f32 %v441, %v865
      %867 = vmatprep.mubr.f32.mxu0 0.0
      %868 = vmatmul.mubr.f32.gmra.mxu0 %v534
      %v869 = vpop.f32.mrf.mxu0
      %v870 = vadd.f32 %v437, %v869
      %v871 = vpop.f32.mrf.mxu0
      %v872 = vadd.f32 %v441, %v871
      %873 = vmatprep.mubr.f32.mxu0 0.0
      %874 = vmatmul.mubr.f32.gmra.mxu0 %v537
      %v875 = vpop.f32.mrf.mxu0
      %v876 = vadd.f32 %v437, %v875
      %v877 = vpop.f32.mrf.mxu0
      %v878 = vadd.f32 %v441, %v877
      %879 = vmatprep.mubr.f32.mxu0 0.0
      %880 = vmatmul.mubr.f32.gmra.mxu0 %v540
      %v881 = vpop.f32.mrf.mxu0
      %v882 = vadd.f32 %v437, %v881
      %v883 = vpop.f32.mrf.mxu0
      %v884 = vadd.f32 %v441, %v883
      %885 = vmatprep.mubr.f32.mxu0 0.0
      %886 = vmatmul.mubr.f32.gmra.mxu0 %v543
      %v887 = vpop.f32.mrf.mxu0
      %v888 = vadd.f32 %v437, %v887
      %v889 = vpop.f32.mrf.mxu0
      %v890 = vadd.f32 %v441, %v889
      %891 = vmatprep.mubr.f32.mxu0 0.0
      %892 = vmatmul.mubr.f32.gmra.mxu0 %v546
      %v893 = vpop.f32.mrf.mxu0
      %v894 = vadd.f32 %v437, %v893
      %v895 = vpop.f32.mrf.mxu0
      %v896 = vadd.f32 %v441, %v895
      %897 = vmatprep.mubr.f32.mxu0 0.0
      %898 = vmatmul.mubr.f32.gmra.mxu0 %v549
      %v899 = vpop.f32.mrf.mxu0
      %v900 = vadd.f32 %v437, %v899
      %v901 = vpop.f32.mrf.mxu0
      %v902 = vadd.f32 %v441, %v901
      %903 = vmatprep.mubr.f32.mxu0 0.0
      %904 = vmatmul.mubr.f32.gmra.mxu0 %v552
      %v905 = vpop.f32.mrf.mxu0
      %v906 = vadd.f32 %v437, %v905
      %v907 = vpop.f32.mrf.mxu0
      %v908 = vadd.f32 %v441, %v907
      %909 = vmatprep.mubr.f32.mxu0 0.0
      %910 = vmatmul.mubr.f32.gmra.mxu0 %v555
      %v911 = vpop.f32.mrf.mxu0
      %v912 = vadd.f32 %v437, %v911
      %v913 = vpop.f32.mrf.mxu0
      %v914 = vadd.f32 %v441, %v913
      %915 = vmatprep.mubr.f32.mxu0 0.0
      %916 = vmatmul.mubr.f32.gmra.mxu0 %v558
      %v917 = vpop.f32.mrf.mxu0
      %v918 = vadd.f32 %v437, %v917
      %v919 = vpop.f32.mrf.mxu0
      %v920 = vadd.f32 %v441, %v919
      %921 = vmatprep.mubr.f32.mxu0 0.0
      %922 = vmatmul.mubr.f32.gmra.mxu0 %v561
      %v923 = vpop.f32.mrf.mxu0
      %v924 = vadd.f32 %v437, %v923
      %v925 = vpop.f32.mrf.mxu0
      %v926 = vadd.f32 %v441, %v925
      %927 = vmatprep.mubr.f32.mxu0 0.0
      %928 = vmatmul.mubr.f32.gmra.mxu0 %v564
      %v929 = vpop.f32.mrf.mxu0
      %v930 = vadd.f32 %v437, %v929
      %v931 = vpop.f32.mrf.mxu0
      %v932 = vadd.f32 %v441, %v931
      %933 = vmatprep.mubr.f32.mxu0 0.0
      %934 = vmatmul.mubr.f32.gmra.mxu0 %v567
      %v935 = vpop.f32.mrf.mxu0
      %v936 = vadd.f32 %v437, %v935
      %v937 = vpop.f32.mrf.mxu0
      %v938 = vadd.f32 %v441, %v937
      %939 = vmatprep.mubr.f32.mxu0 0.0
      %940 = vmatmul.mubr.f32.gmra.mxu0 %v570
      %v941 = vpop.f32.mrf.mxu0
      %v942 = vadd.f32 %v437, %v941
      %v943 = vpop.f32.mrf.mxu0
      %v944 = vadd.f32 %v441, %v943
      %945 = vmatprep.mubr.f32.mxu0 0.0
      %946 = vmatmul.mubr.f32.gmra.mxu0 %v573
      %v947 = vpop.f32.mrf.mxu0
      %v948 = vadd.f32 %v437, %v947
      %v949 = vpop.f32.mrf.mxu0
      %v950 = vadd.f32 %v441, %v949
      %951 = vmatprep.mubr.f32.mxu0 0.0
      %952 = vmatmul.mubr.f32.gmra.mxu0 %v576
      %v953 = vpop.f32.mrf.mxu0
      %v954 = vadd.f32 %v437, %v953
      %v955 = vpop.f32.mrf.mxu0
      %v956 = vadd.f32 %v441, %v955
      %957 = vmatprep.mubr.f32.mxu0 0.0
      %958 = vmatmul.mubr.f32.gmra.mxu0 %v579
      %v959 = vpop.f32.mrf.mxu0
      %v960 = vadd.f32 %v437, %v959
      %v961 = vpop.f32.mrf.mxu0
      %v962 = vadd.f32 %v441, %v961
      %963 = vmatprep.mubr.f32.mxu0 0.0
      %964 = vmatmul.mubr.f32.gmra.mxu0 %v582
      %v965 = vpop.f32.mrf.mxu0
      %v966 = vadd.f32 %v437, %v965
      %v967 = vpop.f32.mrf.mxu0
      %v968 = vadd.f32 %v441, %v967
      %969 = vmatprep.mubr.f32.mxu0 0.0
      %970 = vmatmul.mubr.f32.gmra.mxu0 %v585
      %v971 = vpop.f32.mrf.mxu0
      %v972 = vadd.f32 %v437, %v971
      %v973 = vpop.f32.mrf.mxu0
      %v974 = vadd.f32 %v441, %v973
      %975 = vmatprep.mubr.f32.mxu0 0.0
      %976 = vmatmul.mubr.f32.gmra.mxu0 %v588
      %v977 = vpop.f32.mrf.mxu0
      %v978 = vadd.f32 %v437, %v977
      %v979 = vpop.f32.mrf.mxu0
      %v980 = vadd.f32 %v441, %v979
      %981 = vmatprep.mubr.f32.mxu0 0.0
      %982 = vmatmul.mubr.f32.gmra.mxu0 %v591
      %v983 = vpop.f32.mrf.mxu0
      %v984 = vadd.f32 %v437, %v983
      %v985 = vpop.f32.mrf.mxu0
      %v986 = vadd.f32 %v441, %v985
      %987 = vmatprep.mubr.f32.mxu0 0.0
      %988 = vmatmul.mubr.f32.gmra.mxu0 %v594
      %v989 = vpop.f32.mrf.mxu0
      %v990 = vadd.f32 %v437, %v989
      %v991 = vpop.f32.mrf.mxu0
      %v992 = vadd.f32 %v441, %v991
      %993 = vmatprep.mubr.f32.mxu0 0.0
      %994 = vmatmul.mubr.f32.gmra.mxu0 %v597
      %v995 = vpop.f32.mrf.mxu0
      %v996 = vadd.f32 %v437, %v995
      %v997 = vpop.f32.mrf.mxu0
      %v998 = vadd.f32 %v441, %v997
      %999 = vmatprep.mubr.f32.mxu0 0.0
      %1000 = vmatmul.mubr.f32.gmra.mxu0 %v600
      %v1001 = vpop.f32.mrf.mxu0
      %v1002 = vadd.f32 %v437, %v1001
      %v1003 = vpop.f32.mrf.mxu0
      %v1004 = vadd.f32 %v441, %v1003
      %1005 = vmatprep.mubr.f32.mxu0 0.0
      %1006 = vmatmul.mubr.f32.gmra.mxu0 %v603
      %v1007 = vpop.f32.mrf.mxu0
      %v1008 = vadd.f32 %v437, %v1007
      %v1009 = vpop.f32.mrf.mxu0
      %v1010 = vadd.f32 %v441, %v1009
      %1011 = vmatprep.mubr.f32.mxu0 0.0
      %1012 = vmatmul.mubr.f32.gmra.mxu0 %v606
      %v1013 = vpop.f32.mrf.mxu0
      %v1014 = vadd.f32 %v437, %v1013
      %v1015 = vpop.f32.mrf.mxu0
      %v1016 = vadd.f32 %v441, %v1015
      %1017 = vmatprep.mubr.f32.mxu0 0.0
      %1018 = vmatmul.mubr.f32.gmra.mxu0 %v609
      %v1019 = vpop.f32.mrf.mxu0
      %v1020 = vadd.f32 %v437, %v1019
      %v1021 = vpop.f32.mrf.mxu0
      %v1022 = vadd.f32 %v441, %v1021
      %1023 = vmatprep.mubr.f32.mxu0 0.0
      %1024 = vmatmul.mubr.f32.gmra.mxu0 %v612
      %v1025 = vpop.f32.mrf.mxu0
      %v1026 = vadd.f32 %v437, %v1025
      %v1027 = vpop.f32.mrf.mxu0
      %v1028 = vadd.f32 %v441, %v1027
      %1029 = vmatprep.mubr.f32.mxu0 0.0
      %1030 = vmatmul.mubr.f32.gmra.mxu0 %v615
      %v1031 = vpop.f32.mrf.mxu0
      %v1032 = vadd.f32 %v437, %v1031
      %v1033 = vpop.f32.mrf.mxu0
      %v1034 = vadd.f32 %v441, %v1033
      %1035 = vmatprep.mubr.f32.mxu0 0.0
      %1036 = vmatmul.mubr.f32.gmra.mxu0 %v618
      %v1037 = vpop.f32.mrf.mxu0
      %v1038 = vadd.f32 %v437, %v1037
      %v1039 = vpop.f32.mrf.mxu0
      %v1040 = vadd.f32 %v441, %v1039
      %1041 = vmatprep.mubr.f32.mxu0 0.0
      %1042 = vmatmul.mubr.f32.gmra.mxu0 %v621
      %v1043 = vpop.f32.mrf.mxu0
      %v1044 = vadd.f32 %v437, %v1043
      %v1045 = vpop.f32.mrf.mxu0
      %v1046 = vadd.f32 %v441, %v1045
      %1047 = vmatprep.mubr.f32.mxu0 0.0
      %1048 = vmatmul.mubr.f32.gmra.mxu0 %v624
      %v1049 = vpop.f32.mrf.mxu0
      %v1050 = vadd.f32 %v437, %v1049
      %v1051 = vpop.f32.mrf.mxu0
      %v1052 = vadd.f32 %v441, %v1051
      %1053 = vmatprep.mubr.f32.mxu0 0.0
      %1054 = vmatmul.mubr.f32.gmra.mxu0 %v627
      %v1055 = vpop.f32.mrf.mxu0
      %v1056 = vadd.f32 %v437, %v1055
      %v1057 = vpop.f32.mrf.mxu0
      %v1058 = vadd.f32 %v441, %v1057
      %1059 = vmatprep.mubr.f32.mxu0 0.0
      %1060 = vmatmul.mubr.f32.gmra.mxu0 %v630
      %v1061 = vpop.f32.mrf.mxu0
      %v1062 = vadd.f32 %v437, %v1061
      %v1063 = vpop.f32.mrf.mxu0
      %v1064 = vadd.f32 %v441, %v1063
      %1065 = vmatprep.mubr.f32.mxu0 0.0
      %1066 = vmatmul.mubr.f32.gmra.mxu0 %v633
      %v1067 = vpop.f32.mrf.mxu0
      %v1068 = vadd.f32 %v437, %v1067
      %v1069 = vpop.f32.mrf.mxu0
      %v1070 = vadd.f32 %v441, %v1069
      %1071 = vmatprep.mubr.f32.mxu0 0.0
      %1072 = vmatmul.mubr.f32.gmra.mxu0 %v636
      %v1073 = vpop.f32.mrf.mxu0
      %v1074 = vadd.f32 %v437, %v1073
      %v1075 = vpop.f32.mrf.mxu0
      %v1076 = vadd.f32 %v441, %v1075
      %1077 = vmatprep.mubr.f32.mxu0 0.0
      %1078 = vmatmul.mubr.f32.gmra.mxu0 %v639
      %v1079 = vpop.f32.mrf.mxu0
      %v1080 = vadd.f32 %v437, %v1079
      %v1081 = vpop.f32.mrf.mxu0
      %v1082 = vadd.f32 %v441, %v1081
      %1083 = vmatprep.mubr.f32.mxu0 0.0
      %1084 = vmatmul.mubr.f32.gmra.mxu0 %v642
      %v1085 = vpop.f32.mrf.mxu0
      %v1086 = vadd.f32 %v437, %v1085
      %v1087 = vpop.f32.mrf.mxu0
      %v1088 = vadd.f32 %v441, %v1087
      %1089 = vmatprep.mubr.f32.mxu0 0.0
      %1090 = vmatmul.mubr.f32.gmra.mxu0 %v645
      %v1091 = vpop.f32.mrf.mxu0
      %v1092 = vadd.f32 %v437, %v1091
      %v1093 = vpop.f32.mrf.mxu0
      %v1094 = vadd.f32 %v441, %v1093
      %1095 = vdwg.mxu0
      %1096 = vmatprep.subr.mxu0 0.0
      %1097 = vmatpush1.msra.mxu0 0.0
      %1098 = vmatprep.subr.mxu0 0.0
      %1099 = vmatpush1.msra.mxu0 0.0
      %1100 = vmatprep.subr.mxu0 0.0
      %1101 = vmatpush1.msra.mxu0 0.0
      %1102 = vmatprep.subr.mxu0 0.0
      %1103 = vmatpush1.msra.mxu0 0.0
      %1104 = vmatprep.subr.mxu0 0.0
      %1105 = vmatpush1.msra.mxu0 0.0
      %1106 = vmatprep.subr.mxu0 0.0
      %1107 = vmatpush1.msra.mxu0 0.0
      %1108 = vmatprep.subr.mxu0 0.0
      %1109 = vmatpush1.msra.mxu0 0.0
      %1110 = vmatprep.subr.mxu0 0.0
      %1111 = vmatpush1.msra.mxu0 0.0
      %1112 = vmatprep.subr.mxu0 %v431
      %1113 = vmatpush1.msra.mxu0 %v430
      %1114 = vmatprep.subr.mxu0 %v427
      %1115 = vmatpush1.msra.mxu0 %v426
      %1116 = vmatprep.subr.mxu0 %v423
      %1117 = vmatpush1.msra.mxu0 %v422
      %1118 = vmatprep.subr.mxu0 %v419
      %1119 = vmatpush1.msra.mxu0 %v418
      %1120 = vmatprep.subr.mxu0 %v415
      %1121 = vmatpush1.msra.mxu0 %v414
      %1122 = vmatprep.subr.mxu0 %v411
      %1123 = vmatpush1.msra.mxu0 %v410
      %1124 = vmatprep.subr.mxu0 %v407
      %1125 = vmatpush1.msra.mxu0 %v406
      %1126 = vmatprep.subr.mxu0 %v403
      %1127 = vmatpush1.msra.mxu0 %v402
      %1128 = vmatprep.subr.mxu0 0.0
      %1129 = vmatpush2.msra.mxu0 0.0
      %1130 = vmatprep.subr.mxu0 0.0
      %1131 = vmatpush2.msra.mxu0 0.0
      %1132 = vmatprep.subr.mxu0 0.0
      %1133 = vmatpush2.msra.mxu0 0.0
      %1134 = vmatprep.subr.mxu0 0.0
      %1135 = vmatpush2.msra.mxu0 0.0
      %1136 = vmatprep.subr.mxu0 0.0
      %1137 = vmatpush2.msra.mxu0 0.0
      %1138 = vmatprep.subr.mxu0 0.0
      %1139 = vmatpush2.msra.mxu0 0.0
      %1140 = vmatprep.subr.mxu0 0.0
      %1141 = vmatpush2.msra.mxu0 0.0
      %1142 = vmatprep.subr.mxu0 0.0
      %1143 = vmatpush2.msra.mxu0 0.0
      %1144 = vmatprep.subr.mxu0 0.0
      %1145 = vmatpush2.msra.mxu0 0.0
      %1146 = vmatprep.subr.mxu0 0.0
      %1147 = vmatpush2.msra.mxu0 0.0
      %1148 = vmatprep.subr.mxu0 0.0
      %1149 = vmatpush2.msra.mxu0 0.0
      %1150 = vmatprep.subr.mxu0 0.0
      %1151 = vmatpush2.msra.mxu0 0.0
      %1152 = vmatprep.subr.mxu0 0.0
      %1153 = vmatpush2.msra.mxu0 0.0
      %1154 = vmatprep.subr.mxu0 0.0
      %1155 = vmatpush2.msra.mxu0 0.0
      %1156 = vmatprep.subr.mxu0 0.0
      %1157 = vmatpush2.msra.mxu0 0.0
      %1158 = vmatprep.subr.mxu0 0.0
      %1159 = vmatpush2.msra.mxu0 0.0
      %1160 = vmatprep.mubr.f32.mxu0 0.0
      %1161 = vmatmul.mubr.f32.gmra.mxu0 %v456
      %v1162 = vpop.f32.mrf.mxu0
      %v1163 = vadd.f32 %v445, %v1162
      %v1164 = vpop.f32.mrf.mxu0
      %v1165 = vadd.f32 %v449, %v1164
      %1166 = vmatprep.mubr.f32.mxu0 0.0
      %1167 = vmatmul.mubr.f32.gmra.mxu0 %v459
      %v1168 = vpop.f32.mrf.mxu0
      %v1169 = vadd.f32 %v445, %v1168
      %v1170 = vpop.f32.mrf.mxu0
      %v1171 = vadd.f32 %v449, %v1170
      %1172 = vmatprep.mubr.f32.mxu0 0.0
      %1173 = vmatmul.mubr.f32.gmra.mxu0 %v462
      %v1174 = vpop.f32.mrf.mxu0
      %v1175 = vadd.f32 %v445, %v1174
      %v1176 = vpop.f32.mrf.mxu0
      %v1177 = vadd.f32 %v449, %v1176
      %1178 = vmatprep.mubr.f32.mxu0 0.0
      %1179 = vmatmul.mubr.f32.gmra.mxu0 %v465
      %v1180 = vpop.f32.mrf.mxu0
      %v1181 = vadd.f32 %v445, %v1180
      %v1182 = vpop.f32.mrf.mxu0
      %v1183 = vadd.f32 %v449, %v1182
      %1184 = vmatprep.mubr.f32.mxu0 0.0
      %1185 = vmatmul.mubr.f32.gmra.mxu0 %v468
      %v1186 = vpop.f32.mrf.mxu0
      %v1187 = vadd.f32 %v445, %v1186
      %v1188 = vpop.f32.mrf.mxu0
      %v1189 = vadd.f32 %v449, %v1188
      %1190 = vmatprep.mubr.f32.mxu0 0.0
      %1191 = vmatmul.mubr.f32.gmra.mxu0 %v471
      %v1192 = vpop.f32.mrf.mxu0
      %v1193 = vadd.f32 %v445, %v1192
      %v1194 = vpop.f32.mrf.mxu0
      %v1195 = vadd.f32 %v449, %v1194
      %1196 = vmatprep.mubr.f32.mxu0 0.0
      %1197 = vmatmul.mubr.f32.gmra.mxu0 %v474
      %v1198 = vpop.f32.mrf.mxu0
      %v1199 = vadd.f32 %v445, %v1198
      %v1200 = vpop.f32.mrf.mxu0
      %v1201 = vadd.f32 %v449, %v1200
      %1202 = vmatprep.mubr.f32.mxu0 0.0
      %1203 = vmatmul.mubr.f32.gmra.mxu0 %v477
      %v1204 = vpop.f32.mrf.mxu0
      %v1205 = vadd.f32 %v445, %v1204
      %v1206 = vpop.f32.mrf.mxu0
      %v1207 = vadd.f32 %v449, %v1206
      %1208 = vmatprep.mubr.f32.mxu0 0.0
      %1209 = vmatmul.mubr.f32.gmra.mxu0 %v480
      %v1210 = vpop.f32.mrf.mxu0
      %v1211 = vadd.f32 %v445, %v1210
      %v1212 = vpop.f32.mrf.mxu0
      %v1213 = vadd.f32 %v449, %v1212
      %1214 = vmatprep.mubr.f32.mxu0 0.0
      %1215 = vmatmul.mubr.f32.gmra.mxu0 %v483
      %v1216 = vpop.f32.mrf.mxu0
      %v1217 = vadd.f32 %v445, %v1216
      %v1218 = vpop.f32.mrf.mxu0
      %v1219 = vadd.f32 %v449, %v1218
      %1220 = vmatprep.mubr.f32.mxu0 0.0
      %1221 = vmatmul.mubr.f32.gmra.mxu0 %v486
      %v1222 = vpop.f32.mrf.mxu0
      %v1223 = vadd.f32 %v445, %v1222
      %v1224 = vpop.f32.mrf.mxu0
      %v1225 = vadd.f32 %v449, %v1224
      %1226 = vmatprep.mubr.f32.mxu0 0.0
      %1227 = vmatmul.mubr.f32.gmra.mxu0 %v489
      %v1228 = vpop.f32.mrf.mxu0
      %v1229 = vadd.f32 %v445, %v1228
      %v1230 = vpop.f32.mrf.mxu0
      %v1231 = vadd.f32 %v449, %v1230
      %1232 = vmatprep.mubr.f32.mxu0 0.0
      %1233 = vmatmul.mubr.f32.gmra.mxu0 %v492
      %v1234 = vpop.f32.mrf.mxu0
      %v1235 = vadd.f32 %v445, %v1234
      %v1236 = vpop.f32.mrf.mxu0
      %v1237 = vadd.f32 %v449, %v1236
      %1238 = vmatprep.mubr.f32.mxu0 0.0
      %1239 = vmatmul.mubr.f32.gmra.mxu0 %v495
      %v1240 = vpop.f32.mrf.mxu0
      %v1241 = vadd.f32 %v445, %v1240
      %v1242 = vpop.f32.mrf.mxu0
      %v1243 = vadd.f32 %v449, %v1242
      %1244 = vmatprep.mubr.f32.mxu0 0.0
      %1245 = vmatmul.mubr.f32.gmra.mxu0 %v498
      %v1246 = vpop.f32.mrf.mxu0
      %v1247 = vadd.f32 %v445, %v1246
      %v1248 = vpop.f32.mrf.mxu0
      %v1249 = vadd.f32 %v449, %v1248
      %1250 = vmatprep.mubr.f32.mxu0 0.0
      %1251 = vmatmul.mubr.f32.gmra.mxu0 %v501
      %v1252 = vpop.f32.mrf.mxu0
      %v1253 = vadd.f32 %v445, %v1252
      %v1254 = vpop.f32.mrf.mxu0
      %v1255 = vadd.f32 %v449, %v1254
      %1256 = vmatprep.mubr.f32.mxu0 0.0
      %1257 = vmatmul.mubr.f32.gmra.mxu0 %v504
      %v1258 = vpop.f32.mrf.mxu0
      %v1259 = vadd.f32 %v445, %v1258
      %v1260 = vpop.f32.mrf.mxu0
      %v1261 = vadd.f32 %v449, %v1260
      %1262 = vmatprep.mubr.f32.mxu0 0.0
      %1263 = vmatmul.mubr.f32.gmra.mxu0 %v507
      %v1264 = vpop.f32.mrf.mxu0
      %v1265 = vadd.f32 %v445, %v1264
      %v1266 = vpop.f32.mrf.mxu0
      %v1267 = vadd.f32 %v449, %v1266
      %1268 = vmatprep.mubr.f32.mxu0 0.0
      %1269 = vmatmul.mubr.f32.gmra.mxu0 %v510
      %v1270 = vpop.f32.mrf.mxu0
      %v1271 = vadd.f32 %v445, %v1270
      %v1272 = vpop.f32.mrf.mxu0
      %v1273 = vadd.f32 %v449, %v1272
      %1274 = vmatprep.mubr.f32.mxu0 0.0
      %1275 = vmatmul.mubr.f32.gmra.mxu0 %v513
      %v1276 = vpop.f32.mrf.mxu0
      %v1277 = vadd.f32 %v445, %v1276
      %v1278 = vpop.f32.mrf.mxu0
      %v1279 = vadd.f32 %v449, %v1278
      %1280 = vmatprep.mubr.f32.mxu0 0.0
      %1281 = vmatmul.mubr.f32.gmra.mxu0 %v516
      %v1282 = vpop.f32.mrf.mxu0
      %v1283 = vadd.f32 %v445, %v1282
      %v1284 = vpop.f32.mrf.mxu0
      %v1285 = vadd.f32 %v449, %v1284
      %1286 = vmatprep.mubr.f32.mxu0 0.0
      %1287 = vmatmul.mubr.f32.gmra.mxu0 %v519
      %v1288 = vpop.f32.mrf.mxu0
      %v1289 = vadd.f32 %v445, %v1288
      %v1290 = vpop.f32.mrf.mxu0
      %v1291 = vadd.f32 %v449, %v1290
      %1292 = vmatprep.mubr.f32.mxu0 0.0
      %1293 = vmatmul.mubr.f32.gmra.mxu0 %v522
      %v1294 = vpop.f32.mrf.mxu0
      %v1295 = vadd.f32 %v445, %v1294
      %v1296 = vpop.f32.mrf.mxu0
      %v1297 = vadd.f32 %v449, %v1296
      %1298 = vmatprep.mubr.f32.mxu0 0.0
      %1299 = vmatmul.mubr.f32.gmra.mxu0 %v525
      %v1300 = vpop.f32.mrf.mxu0
      %v1301 = vadd.f32 %v445, %v1300
      %v1302 = vpop.f32.mrf.mxu0
      %v1303 = vadd.f32 %v449, %v1302
      %1304 = vmatprep.mubr.f32.mxu0 0.0
      %1305 = vmatmul.mubr.f32.gmra.mxu0 %v528
      %v1306 = vpop.f32.mrf.mxu0
      %v1307 = vadd.f32 %v445, %v1306
      %v1308 = vpop.f32.mrf.mxu0
      %v1309 = vadd.f32 %v449, %v1308
      %1310 = vmatprep.mubr.f32.mxu0 0.0
      %1311 = vmatmul.mubr.f32.gmra.mxu0 %v531
      %v1312 = vpop.f32.mrf.mxu0
      %v1313 = vadd.f32 %v445, %v1312
      %v1314 = vpop.f32.mrf.mxu0
      %v1315 = vadd.f32 %v449, %v1314
      %1316 = vmatprep.mubr.f32.mxu0 0.0
      %1317 = vmatmul.mubr.f32.gmra.mxu0 %v534
      %v1318 = vpop.f32.mrf.mxu0
      %v1319 = vadd.f32 %v445, %v1318
      %v1320 = vpop.f32.mrf.mxu0
      %v1321 = vadd.f32 %v449, %v1320
      %1322 = vmatprep.mubr.f32.mxu0 0.0
      %1323 = vmatmul.mubr.f32.gmra.mxu0 %v537
      %v1324 = vpop.f32.mrf.mxu0
      %v1325 = vadd.f32 %v445, %v1324
      %v1326 = vpop.f32.mrf.mxu0
      %v1327 = vadd.f32 %v449, %v1326
      %1328 = vmatprep.mubr.f32.mxu0 0.0
      %1329 = vmatmul.mubr.f32.gmra.mxu0 %v540
      %v1330 = vpop.f32.mrf.mxu0
      %v1331 = vadd.f32 %v445, %v1330
      %v1332 = vpop.f32.mrf.mxu0
      %v1333 = vadd.f32 %v449, %v1332
      %1334 = vmatprep.mubr.f32.mxu0 0.0
      %1335 = vmatmul.mubr.f32.gmra.mxu0 %v543
      %v1336 = vpop.f32.mrf.mxu0
      %v1337 = vadd.f32 %v445, %v1336
      %v1338 = vpop.f32.mrf.mxu0
      %v1339 = vadd.f32 %v449, %v1338
      %1340 = vmatprep.mubr.f32.mxu0 0.0
      %1341 = vmatmul.mubr.f32.gmra.mxu0 %v546
      %v1342 = vpop.f32.mrf.mxu0
      %v1343 = vadd.f32 %v445, %v1342
      %v1344 = vpop.f32.mrf.mxu0
      %v1345 = vadd.f32 %v449, %v1344
      %1346 = vmatprep.mubr.f32.mxu0 0.0
      %1347 = vmatmul.mubr.f32.gmra.mxu0 %v549
      %v1348 = vpop.f32.mrf.mxu0
      %v1349 = vadd.f32 %v445, %v1348
      %v1350 = vpop.f32.mrf.mxu0
      %v1351 = vadd.f32 %v449, %v1350
      %1352 = vmatprep.mubr.f32.mxu0 0.0
      %1353 = vmatmul.mubr.f32.gmra.mxu0 %v552
      %v1354 = vpop.f32.mrf.mxu0
      %v1355 = vadd.f32 %v445, %v1354
      %v1356 = vpop.f32.mrf.mxu0
      %v1357 = vadd.f32 %v449, %v1356
      %1358 = vmatprep.mubr.f32.mxu0 0.0
      %1359 = vmatmul.mubr.f32.gmra.mxu0 %v555
      %v1360 = vpop.f32.mrf.mxu0
      %v1361 = vadd.f32 %v445, %v1360
      %v1362 = vpop.f32.mrf.mxu0
      %v1363 = vadd.f32 %v449, %v1362
      %1364 = vmatprep.mubr.f32.mxu0 0.0
      %1365 = vmatmul.mubr.f32.gmra.mxu0 %v558
      %v1366 = vpop.f32.mrf.mxu0
      %v1367 = vadd.f32 %v445, %v1366
      %v1368 = vpop.f32.mrf.mxu0
      %v1369 = vadd.f32 %v449, %v1368
      %1370 = vmatprep.mubr.f32.mxu0 0.0
      %1371 = vmatmul.mubr.f32.gmra.mxu0 %v561
      %v1372 = vpop.f32.mrf.mxu0
      %v1373 = vadd.f32 %v445, %v1372
      %v1374 = vpop.f32.mrf.mxu0
      %v1375 = vadd.f32 %v449, %v1374
      %1376 = vmatprep.mubr.f32.mxu0 0.0
      %1377 = vmatmul.mubr.f32.gmra.mxu0 %v564
      %v1378 = vpop.f32.mrf.mxu0
      %v1379 = vadd.f32 %v445, %v1378
      %v1380 = vpop.f32.mrf.mxu0
      %v1381 = vadd.f32 %v449, %v1380
      %1382 = vmatprep.mubr.f32.mxu0 0.0
      %1383 = vmatmul.mubr.f32.gmra.mxu0 %v567
      %v1384 = vpop.f32.mrf.mxu0
      %v1385 = vadd.f32 %v445, %v1384
      %v1386 = vpop.f32.mrf.mxu0
      %v1387 = vadd.f32 %v449, %v1386
      %1388 = vmatprep.mubr.f32.mxu0 0.0
      %1389 = vmatmul.mubr.f32.gmra.mxu0 %v570
      %v1390 = vpop.f32.mrf.mxu0
      %v1391 = vadd.f32 %v445, %v1390
      %v1392 = vpop.f32.mrf.mxu0
      %v1393 = vadd.f32 %v449, %v1392
      %1394 = vmatprep.mubr.f32.mxu0 0.0
      %1395 = vmatmul.mubr.f32.gmra.mxu0 %v573
      %v1396 = vpop.f32.mrf.mxu0
      %v1397 = vadd.f32 %v445, %v1396
      %v1398 = vpop.f32.mrf.mxu0
      %v1399 = vadd.f32 %v449, %v1398
      %1400 = vmatprep.mubr.f32.mxu0 0.0
      %1401 = vmatmul.mubr.f32.gmra.mxu0 %v576
      %v1402 = vpop.f32.mrf.mxu0
      %v1403 = vadd.f32 %v445, %v1402
      %v1404 = vpop.f32.mrf.mxu0
      %v1405 = vadd.f32 %v449, %v1404
      %1406 = vmatprep.mubr.f32.mxu0 0.0
      %1407 = vmatmul.mubr.f32.gmra.mxu0 %v579
      %v1408 = vpop.f32.mrf.mxu0
      %v1409 = vadd.f32 %v445, %v1408
      %v1410 = vpop.f32.mrf.mxu0
      %v1411 = vadd.f32 %v449, %v1410
      %1412 = vmatprep.mubr.f32.mxu0 0.0
      %1413 = vmatmul.mubr.f32.gmra.mxu0 %v582
      %v1414 = vpop.f32.mrf.mxu0
      %v1415 = vadd.f32 %v445, %v1414
      %v1416 = vpop.f32.mrf.mxu0
      %v1417 = vadd.f32 %v449, %v1416
      %1418 = vmatprep.mubr.f32.mxu0 0.0
      %1419 = vmatmul.mubr.f32.gmra.mxu0 %v585
      %v1420 = vpop.f32.mrf.mxu0
      %v1421 = vadd.f32 %v445, %v1420
      %v1422 = vpop.f32.mrf.mxu0
      %v1423 = vadd.f32 %v449, %v1422
      %1424 = vmatprep.mubr.f32.mxu0 0.0
      %1425 = vmatmul.mubr.f32.gmra.mxu0 %v588
      %v1426 = vpop.f32.mrf.mxu0
      %v1427 = vadd.f32 %v445, %v1426
      %v1428 = vpop.f32.mrf.mxu0
      %v1429 = vadd.f32 %v449, %v1428
      %1430 = vmatprep.mubr.f32.mxu0 0.0
      %1431 = vmatmul.mubr.f32.gmra.mxu0 %v591
      %v1432 = vpop.f32.mrf.mxu0
      %v1433 = vadd.f32 %v445, %v1432
      %v1434 = vpop.f32.mrf.mxu0
      %v1435 = vadd.f32 %v449, %v1434
      %1436 = vmatprep.mubr.f32.mxu0 0.0
      %1437 = vmatmul.mubr.f32.gmra.mxu0 %v594
      %v1438 = vpop.f32.mrf.mxu0
      %v1439 = vadd.f32 %v445, %v1438
      %v1440 = vpop.f32.mrf.mxu0
      %v1441 = vadd.f32 %v449, %v1440
      %1442 = vmatprep.mubr.f32.mxu0 0.0
      %1443 = vmatmul.mubr.f32.gmra.mxu0 %v597
      %v1444 = vpop.f32.mrf.mxu0
      %v1445 = vadd.f32 %v445, %v1444
      %v1446 = vpop.f32.mrf.mxu0
      %v1447 = vadd.f32 %v449, %v1446
      %1448 = vmatprep.mubr.f32.mxu0 0.0
      %1449 = vmatmul.mubr.f32.gmra.mxu0 %v600
      %v1450 = vpop.f32.mrf.mxu0
      %v1451 = vadd.f32 %v445, %v1450
      %v1452 = vpop.f32.mrf.mxu0
      %v1453 = vadd.f32 %v449, %v1452
      %1454 = vmatprep.mubr.f32.mxu0 0.0
      %1455 = vmatmul.mubr.f32.gmra.mxu0 %v603
      %v1456 = vpop.f32.mrf.mxu0
      %v1457 = vadd.f32 %v445, %v1456
      %v1458 = vpop.f32.mrf.mxu0
      %v1459 = vadd.f32 %v449, %v1458
      %1460 = vmatprep.mubr.f32.mxu0 0.0
      %1461 = vmatmul.mubr.f32.gmra.mxu0 %v606
      %v1462 = vpop.f32.mrf.mxu0
      %v1463 = vadd.f32 %v445, %v1462
      %v1464 = vpop.f32.mrf.mxu0
      %v1465 = vadd.f32 %v449, %v1464
      %1466 = vmatprep.mubr.f32.mxu0 0.0
      %1467 = vmatmul.mubr.f32.gmra.mxu0 %v609
      %v1468 = vpop.f32.mrf.mxu0
      %v1469 = vadd.f32 %v445, %v1468
      %v1470 = vpop.f32.mrf.mxu0
      %v1471 = vadd.f32 %v449, %v1470
      %1472 = vmatprep.mubr.f32.mxu0 0.0
      %1473 = vmatmul.mubr.f32.gmra.mxu0 %v612
      %v1474 = vpop.f32.mrf.mxu0
      %v1475 = vadd.f32 %v445, %v1474
      %v1476 = vpop.f32.mrf.mxu0
      %v1477 = vadd.f32 %v449, %v1476
      %1478 = vmatprep.mubr.f32.mxu0 0.0
      %1479 = vmatmul.mubr.f32.gmra.mxu0 %v615
      %v1480 = vpop.f32.mrf.mxu0
      %v1481 = vadd.f32 %v445, %v1480
      %v1482 = vpop.f32.mrf.mxu0
      %v1483 = vadd.f32 %v449, %v1482
      %1484 = vmatprep.mubr.f32.mxu0 0.0
      %1485 = vmatmul.mubr.f32.gmra.mxu0 %v618
      %v1486 = vpop.f32.mrf.mxu0
      %v1487 = vadd.f32 %v445, %v1486
      %v1488 = vpop.f32.mrf.mxu0
      %v1489 = vadd.f32 %v449, %v1488
      %1490 = vmatprep.mubr.f32.mxu0 0.0
      %1491 = vmatmul.mubr.f32.gmra.mxu0 %v621
      %v1492 = vpop.f32.mrf.mxu0
      %v1493 = vadd.f32 %v445, %v1492
      %v1494 = vpop.f32.mrf.mxu0
      %v1495 = vadd.f32 %v449, %v1494
      %1496 = vmatprep.mubr.f32.mxu0 0.0
      %1497 = vmatmul.mubr.f32.gmra.mxu0 %v624
      %v1498 = vpop.f32.mrf.mxu0
      %v1499 = vadd.f32 %v445, %v1498
      %v1500 = vpop.f32.mrf.mxu0
      %v1501 = vadd.f32 %v449, %v1500
      %1502 = vmatprep.mubr.f32.mxu0 0.0
      %1503 = vmatmul.mubr.f32.gmra.mxu0 %v627
      %v1504 = vpop.f32.mrf.mxu0
      %v1505 = vadd.f32 %v445, %v1504
      %v1506 = vpop.f32.mrf.mxu0
      %v1507 = vadd.f32 %v449, %v1506
      %1508 = vmatprep.mubr.f32.mxu0 0.0
      %1509 = vmatmul.mubr.f32.gmra.mxu0 %v630
      %v1510 = vpop.f32.mrf.mxu0
      %v1511 = vadd.f32 %v445, %v1510
      %v1512 = vpop.f32.mrf.mxu0
      %v1513 = vadd.f32 %v449, %v1512
      %1514 = vmatprep.mubr.f32.mxu0 0.0
      %1515 = vmatmul.mubr.f32.gmra.mxu0 %v633
      %v1516 = vpop.f32.mrf.mxu0
      %v1517 = vadd.f32 %v445, %v1516
      %v1518 = vpop.f32.mrf.mxu0
      %v1519 = vadd.f32 %v449, %v1518
      %1520 = vmatprep.mubr.f32.mxu0 0.0
      %1521 = vmatmul.mubr.f32.gmra.mxu0 %v636
      %v1522 = vpop.f32.mrf.mxu0
      %v1523 = vadd.f32 %v445, %v1522
      %v1524 = vpop.f32.mrf.mxu0
      %v1525 = vadd.f32 %v449, %v1524
      %1526 = vmatprep.mubr.f32.mxu0 0.0
      %1527 = vmatmul.mubr.f32.gmra.mxu0 %v639
      %v1528 = vpop.f32.mrf.mxu0
      %v1529 = vadd.f32 %v445, %v1528
      %v1530 = vpop.f32.mrf.mxu0
      %v1531 = vadd.f32 %v449, %v1530
      %1532 = vmatprep.mubr.f32.mxu0 0.0
      %1533 = vmatmul.mubr.f32.gmra.mxu0 %v642
      %v1534 = vpop.f32.mrf.mxu0
      %v1535 = vadd.f32 %v445, %v1534
      %v1536 = vpop.f32.mrf.mxu0
      %v1537 = vadd.f32 %v449, %v1536
      %1538 = vmatprep.mubr.f32.mxu0 0.0
      %1539 = vmatmul.mubr.f32.gmra.mxu0 %v645
      %v1540 = vpop.f32.mrf.mxu0
      %v1541 = vadd.f32 %v445, %v1540
      %v1542 = vpop.f32.mrf.mxu0
      %v1543 = vadd.f32 %v449, %v1542
      %1544 = vdwg.mxu0
      %vm1545 = vcmp.gt.f32.partialorder %v714, 0.0
      %vm1546 = vcmp.gt.f32.partialorder %v716, 0.0
      %vm1547 = vcmp.gt.f32.partialorder %v1163, 0.0
      %vm1548 = vcmp.gt.f32.partialorder %v1165, 0.0
      %vm1549 = vcmp.gt.f32.partialorder %v720, 0.0
      %vm1550 = vcmp.gt.f32.partialorder %v722, 0.0
      %vm1551 = vcmp.gt.f32.partialorder %v1169, 0.0
      %vm1552 = vcmp.gt.f32.partialorder %v1171, 0.0
      %vm1553 = vcmp.gt.f32.partialorder %v726, 0.0
      %vm1554 = vcmp.gt.f32.partialorder %v728, 0.0
      %vm1555 = vcmp.gt.f32.partialorder %v1175, 0.0
      %vm1556 = vcmp.gt.f32.partialorder %v1177, 0.0
      %vm1557 = vcmp.gt.f32.partialorder %v732, 0.0
      %vm1558 = vcmp.gt.f32.partialorder %v734, 0.0
      %vm1559 = vcmp.gt.f32.partialorder %v1181, 0.0
      %vm1560 = vcmp.gt.f32.partialorder %v1183, 0.0
      %vm1561 = vcmp.gt.f32.partialorder %v738, 0.0
      %vm1562 = vcmp.gt.f32.partialorder %v740, 0.0
      %vm1563 = vcmp.gt.f32.partialorder %v1187, 0.0
      %vm1564 = vcmp.gt.f32.partialorder %v1189, 0.0
      %vm1565 = vcmp.gt.f32.partialorder %v744, 0.0
      %vm1566 = vcmp.gt.f32.partialorder %v746, 0.0
      %vm1567 = vcmp.gt.f32.partialorder %v1193, 0.0
      %vm1568 = vcmp.gt.f32.partialorder %v1195, 0.0
      %vm1569 = vcmp.gt.f32.partialorder %v750, 0.0
      %vm1570 = vcmp.gt.f32.partialorder %v752, 0.0
      %vm1571 = vcmp.gt.f32.partialorder %v1199, 0.0
      %vm1572 = vcmp.gt.f32.partialorder %v1201, 0.0
      %vm1573 = vcmp.gt.f32.partialorder %v756, 0.0
      %vm1574 = vcmp.gt.f32.partialorder %v758, 0.0
      %vm1575 = vcmp.gt.f32.partialorder %v1205, 0.0
      %vm1576 = vcmp.gt.f32.partialorder %v1207, 0.0
      %vm1577 = vcmp.gt.f32.partialorder %v762, 0.0
      %vm1578 = vcmp.gt.f32.partialorder %v764, 0.0
      %vm1579 = vcmp.gt.f32.partialorder %v1211, 0.0
      %vm1580 = vcmp.gt.f32.partialorder %v1213, 0.0
      %vm1581 = vcmp.gt.f32.partialorder %v768, 0.0
      %vm1582 = vcmp.gt.f32.partialorder %v770, 0.0
      %vm1583 = vcmp.gt.f32.partialorder %v1217, 0.0
      %vm1584 = vcmp.gt.f32.partialorder %v1219, 0.0
      %vm1585 = vcmp.gt.f32.partialorder %v774, 0.0
      %vm1586 = vcmp.gt.f32.partialorder %v776, 0.0
      %vm1587 = vcmp.gt.f32.partialorder %v1223, 0.0
      %vm1588 = vcmp.gt.f32.partialorder %v1225, 0.0
      %vm1589 = vcmp.gt.f32.partialorder %v780, 0.0
      %vm1590 = vcmp.gt.f32.partialorder %v782, 0.0
      %vm1591 = vcmp.gt.f32.partialorder %v1229, 0.0
      %vm1592 = vcmp.gt.f32.partialorder %v1231, 0.0
      %vm1593 = vcmp.gt.f32.partialorder %v786, 0.0
      %vm1594 = vcmp.gt.f32.partialorder %v788, 0.0
      %vm1595 = vcmp.gt.f32.partialorder %v1235, 0.0
      %vm1596 = vcmp.gt.f32.partialorder %v1237, 0.0
      %vm1597 = vcmp.gt.f32.partialorder %v792, 0.0
      %vm1598 = vcmp.gt.f32.partialorder %v794, 0.0
      %vm1599 = vcmp.gt.f32.partialorder %v1241, 0.0
      %vm1600 = vcmp.gt.f32.partialorder %v1243, 0.0
      %vm1601 = vcmp.gt.f32.partialorder %v798, 0.0
      %vm1602 = vcmp.gt.f32.partialorder %v800, 0.0
      %vm1603 = vcmp.gt.f32.partialorder %v1247, 0.0
      %vm1604 = vcmp.gt.f32.partialorder %v1249, 0.0
      %vm1605 = vcmp.gt.f32.partialorder %v804, 0.0
      %vm1606 = vcmp.gt.f32.partialorder %v806, 0.0
      %vm1607 = vcmp.gt.f32.partialorder %v1253, 0.0
      %vm1608 = vcmp.gt.f32.partialorder %v1255, 0.0
      %vm1609 = vcmp.gt.f32.partialorder %v810, 0.0
      %vm1610 = vcmp.gt.f32.partialorder %v812, 0.0
      %vm1611 = vcmp.gt.f32.partialorder %v1259, 0.0
      %vm1612 = vcmp.gt.f32.partialorder %v1261, 0.0
      %vm1613 = vcmp.gt.f32.partialorder %v816, 0.0
      %vm1614 = vcmp.gt.f32.partialorder %v818, 0.0
      %vm1615 = vcmp.gt.f32.partialorder %v1265, 0.0
      %vm1616 = vcmp.gt.f32.partialorder %v1267, 0.0
      %vm1617 = vcmp.gt.f32.partialorder %v822, 0.0
      %vm1618 = vcmp.gt.f32.partialorder %v824, 0.0
      %vm1619 = vcmp.gt.f32.partialorder %v1271, 0.0
      %vm1620 = vcmp.gt.f32.partialorder %v1273, 0.0
      %vm1621 = vcmp.gt.f32.partialorder %v828, 0.0
      %vm1622 = vcmp.gt.f32.partialorder %v830, 0.0
      %vm1623 = vcmp.gt.f32.partialorder %v1277, 0.0
      %vm1624 = vcmp.gt.f32.partialorder %v1279, 0.0
      %vm1625 = vcmp.gt.f32.partialorder %v834, 0.0
      %vm1626 = vcmp.gt.f32.partialorder %v836, 0.0
      %vm1627 = vcmp.gt.f32.partialorder %v1283, 0.0
      %vm1628 = vcmp.gt.f32.partialorder %v1285, 0.0
      %vm1629 = vcmp.gt.f32.partialorder %v840, 0.0
      %vm1630 = vcmp.gt.f32.partialorder %v842, 0.0
      %vm1631 = vcmp.gt.f32.partialorder %v1289, 0.0
      %vm1632 = vcmp.gt.f32.partialorder %v1291, 0.0
      %vm1633 = vcmp.gt.f32.partialorder %v846, 0.0
      %vm1634 = vcmp.gt.f32.partialorder %v848, 0.0
      %vm1635 = vcmp.gt.f32.partialorder %v1295, 0.0
      %vm1636 = vcmp.gt.f32.partialorder %v1297, 0.0
      %vm1637 = vcmp.gt.f32.partialorder %v852, 0.0
      %vm1638 = vcmp.gt.f32.partialorder %v854, 0.0
      %vm1639 = vcmp.gt.f32.partialorder %v1301, 0.0
      %vm1640 = vcmp.gt.f32.partialorder %v1303, 0.0
      %vm1641 = vcmp.gt.f32.partialorder %v858, 0.0
      %vm1642 = vcmp.gt.f32.partialorder %v860, 0.0
      %vm1643 = vcmp.gt.f32.partialorder %v1307, 0.0
      %vm1644 = vcmp.gt.f32.partialorder %v1309, 0.0
      %vm1645 = vcmp.gt.f32.partialorder %v864, 0.0
      %vm1646 = vcmp.gt.f32.partialorder %v866, 0.0
      %vm1647 = vcmp.gt.f32.partialorder %v1313, 0.0
      %vm1648 = vcmp.gt.f32.partialorder %v1315, 0.0
      %vm1649 = vcmp.gt.f32.partialorder %v870, 0.0
      %vm1650 = vcmp.gt.f32.partialorder %v872, 0.0
      %vm1651 = vcmp.gt.f32.partialorder %v1319, 0.0
      %vm1652 = vcmp.gt.f32.partialorder %v1321, 0.0
      %vm1653 = vcmp.gt.f32.partialorder %v876, 0.0
      %vm1654 = vcmp.gt.f32.partialorder %v878, 0.0
      %vm1655 = vcmp.gt.f32.partialorder %v1325, 0.0
      %vm1656 = vcmp.gt.f32.partialorder %v1327, 0.0
      %vm1657 = vcmp.gt.f32.partialorder %v882, 0.0
      %vm1658 = vcmp.gt.f32.partialorder %v884, 0.0
      %vm1659 = vcmp.gt.f32.partialorder %v1331, 0.0
      %vm1660 = vcmp.gt.f32.partialorder %v1333, 0.0
      %vm1661 = vcmp.gt.f32.partialorder %v888, 0.0
      %vm1662 = vcmp.gt.f32.partialorder %v890, 0.0
      %vm1663 = vcmp.gt.f32.partialorder %v1337, 0.0
      %vm1664 = vcmp.gt.f32.partialorder %v1339, 0.0
      %vm1665 = vcmp.gt.f32.partialorder %v894, 0.0
      %vm1666 = vcmp.gt.f32.partialorder %v896, 0.0
      %vm1667 = vcmp.gt.f32.partialorder %v1343, 0.0
      %vm1668 = vcmp.gt.f32.partialorder %v1345, 0.0
      %vm1669 = vcmp.gt.f32.partialorder %v900, 0.0
      %vm1670 = vcmp.gt.f32.partialorder %v902, 0.0
      %vm1671 = vcmp.gt.f32.partialorder %v1349, 0.0
      %vm1672 = vcmp.gt.f32.partialorder %v1351, 0.0
      %vm1673 = vcmp.gt.f32.partialorder %v906, 0.0
      %vm1674 = vcmp.gt.f32.partialorder %v908, 0.0
      %vm1675 = vcmp.gt.f32.partialorder %v1355, 0.0
      %vm1676 = vcmp.gt.f32.partialorder %v1357, 0.0
      %vm1677 = vcmp.gt.f32.partialorder %v912, 0.0
      %vm1678 = vcmp.gt.f32.partialorder %v914, 0.0
      %vm1679 = vcmp.gt.f32.partialorder %v1361, 0.0
      %vm1680 = vcmp.gt.f32.partialorder %v1363, 0.0
      %vm1681 = vcmp.gt.f32.partialorder %v918, 0.0
      %vm1682 = vcmp.gt.f32.partialorder %v920, 0.0
      %vm1683 = vcmp.gt.f32.partialorder %v1367, 0.0
      %vm1684 = vcmp.gt.f32.partialorder %v1369, 0.0
      %vm1685 = vcmp.gt.f32.partialorder %v924, 0.0
      %vm1686 = vcmp.gt.f32.partialorder %v926, 0.0
      %vm1687 = vcmp.gt.f32.partialorder %v1373, 0.0
      %vm1688 = vcmp.gt.f32.partialorder %v1375, 0.0
      %vm1689 = vcmp.gt.f32.partialorder %v930, 0.0
      %vm1690 = vcmp.gt.f32.partialorder %v932, 0.0
      %vm1691 = vcmp.gt.f32.partialorder %v1379, 0.0
      %vm1692 = vcmp.gt.f32.partialorder %v1381, 0.0
      %vm1693 = vcmp.gt.f32.partialorder %v936, 0.0
      %vm1694 = vcmp.gt.f32.partialorder %v938, 0.0
      %vm1695 = vcmp.gt.f32.partialorder %v1385, 0.0
      %vm1696 = vcmp.gt.f32.partialorder %v1387, 0.0
      %vm1697 = vcmp.gt.f32.partialorder %v942, 0.0
      %vm1698 = vcmp.gt.f32.partialorder %v944, 0.0
      %vm1699 = vcmp.gt.f32.partialorder %v1391, 0.0
      %vm1700 = vcmp.gt.f32.partialorder %v1393, 0.0
      %vm1701 = vcmp.gt.f32.partialorder %v948, 0.0
      %vm1702 = vcmp.gt.f32.partialorder %v950, 0.0
      %vm1703 = vcmp.gt.f32.partialorder %v1397, 0.0
      %vm1704 = vcmp.gt.f32.partialorder %v1399, 0.0
      %vm1705 = vcmp.gt.f32.partialorder %v954, 0.0
      %vm1706 = vcmp.gt.f32.partialorder %v956, 0.0
      %vm1707 = vcmp.gt.f32.partialorder %v1403, 0.0
      %vm1708 = vcmp.gt.f32.partialorder %v1405, 0.0
      %vm1709 = vcmp.gt.f32.partialorder %v960, 0.0
      %vm1710 = vcmp.gt.f32.partialorder %v962, 0.0
      %vm1711 = vcmp.gt.f32.partialorder %v1409, 0.0
      %vm1712 = vcmp.gt.f32.partialorder %v1411, 0.0
      %vm1713 = vcmp.gt.f32.partialorder %v966, 0.0
      %vm1714 = vcmp.gt.f32.partialorder %v968, 0.0
      %vm1715 = vcmp.gt.f32.partialorder %v1415, 0.0
      %vm1716 = vcmp.gt.f32.partialorder %v1417, 0.0
      %vm1717 = vcmp.gt.f32.partialorder %v972, 0.0
      %vm1718 = vcmp.gt.f32.partialorder %v974, 0.0
      %vm1719 = vcmp.gt.f32.partialorder %v1421, 0.0
      %vm1720 = vcmp.gt.f32.partialorder %v1423, 0.0
      %vm1721 = vcmp.gt.f32.partialorder %v978, 0.0
      %vm1722 = vcmp.gt.f32.partialorder %v980, 0.0
      %vm1723 = vcmp.gt.f32.partialorder %v1427, 0.0
      %vm1724 = vcmp.gt.f32.partialorder %v1429, 0.0
      %vm1725 = vcmp.gt.f32.partialorder %v984, 0.0
      %vm1726 = vcmp.gt.f32.partialorder %v986, 0.0
      %vm1727 = vcmp.gt.f32.partialorder %v1433, 0.0
      %vm1728 = vcmp.gt.f32.partialorder %v1435, 0.0
      %vm1729 = vcmp.gt.f32.partialorder %v990, 0.0
      %vm1730 = vcmp.gt.f32.partialorder %v992, 0.0
      %vm1731 = vcmp.gt.f32.partialorder %v1439, 0.0
      %vm1732 = vcmp.gt.f32.partialorder %v1441, 0.0
      %vm1733 = vcmp.gt.f32.partialorder %v996, 0.0
      %vm1734 = vcmp.gt.f32.partialorder %v998, 0.0
      %vm1735 = vcmp.gt.f32.partialorder %v1445, 0.0
      %vm1736 = vcmp.gt.f32.partialorder %v1447, 0.0
      %vm1737 = vcmp.gt.f32.partialorder %v1002, 0.0
      %vm1738 = vcmp.gt.f32.partialorder %v1004, 0.0
      %vm1739 = vcmp.gt.f32.partialorder %v1451, 0.0
      %vm1740 = vcmp.gt.f32.partialorder %v1453, 0.0
      %vm1741 = vcmp.gt.f32.partialorder %v1008, 0.0
      %vm1742 = vcmp.gt.f32.partialorder %v1010, 0.0
      %vm1743 = vcmp.gt.f32.partialorder %v1457, 0.0
      %vm1744 = vcmp.gt.f32.partialorder %v1459, 0.0
      %vm1745 = vcmp.gt.f32.partialorder %v1014, 0.0
      %vm1746 = vcmp.gt.f32.partialorder %v1016, 0.0
      %vm1747 = vcmp.gt.f32.partialorder %v1463, 0.0
      %vm1748 = vcmp.gt.f32.partialorder %v1465, 0.0
      %vm1749 = vcmp.gt.f32.partialorder %v1020, 0.0
      %vm1750 = vcmp.gt.f32.partialorder %v1022, 0.0
      %vm1751 = vcmp.gt.f32.partialorder %v1469, 0.0
      %vm1752 = vcmp.gt.f32.partialorder %v1471, 0.0
      %vm1753 = vcmp.gt.f32.partialorder %v1026, 0.0
      %vm1754 = vcmp.gt.f32.partialorder %v1028, 0.0
      %vm1755 = vcmp.gt.f32.partialorder %v1475, 0.0
      %vm1756 = vcmp.gt.f32.partialorder %v1477, 0.0
      %vm1757 = vcmp.gt.f32.partialorder %v1032, 0.0
      %vm1758 = vcmp.gt.f32.partialorder %v1034, 0.0
      %vm1759 = vcmp.gt.f32.partialorder %v1481, 0.0
      %vm1760 = vcmp.gt.f32.partialorder %v1483, 0.0
      %vm1761 = vcmp.gt.f32.partialorder %v1038, 0.0
      %vm1762 = vcmp.gt.f32.partialorder %v1040, 0.0
      %vm1763 = vcmp.gt.f32.partialorder %v1487, 0.0
      %vm1764 = vcmp.gt.f32.partialorder %v1489, 0.0
      %vm1765 = vcmp.gt.f32.partialorder %v1044, 0.0
      %vm1766 = vcmp.gt.f32.partialorder %v1046, 0.0
      %vm1767 = vcmp.gt.f32.partialorder %v1493, 0.0
      %vm1768 = vcmp.gt.f32.partialorder %v1495, 0.0
      %vm1769 = vcmp.gt.f32.partialorder %v1050, 0.0
      %vm1770 = vcmp.gt.f32.partialorder %v1052, 0.0
      %vm1771 = vcmp.gt.f32.partialorder %v1499, 0.0
      %vm1772 = vcmp.gt.f32.partialorder %v1501, 0.0
      %vm1773 = vcmp.gt.f32.partialorder %v1056, 0.0
      %vm1774 = vcmp.gt.f32.partialorder %v1058, 0.0
      %vm1775 = vcmp.gt.f32.partialorder %v1505, 0.0
      %vm1776 = vcmp.gt.f32.partialorder %v1507, 0.0
      %vm1777 = vcmp.gt.f32.partialorder %v1062, 0.0
      %vm1778 = vcmp.gt.f32.partialorder %v1064, 0.0
      %vm1779 = vcmp.gt.f32.partialorder %v1511, 0.0
      %vm1780 = vcmp.gt.f32.partialorder %v1513, 0.0
      %vm1781 = vcmp.gt.f32.partialorder %v1068, 0.0
      %vm1782 = vcmp.gt.f32.partialorder %v1070, 0.0
      %vm1783 = vcmp.gt.f32.partialorder %v1517, 0.0
      %vm1784 = vcmp.gt.f32.partialorder %v1519, 0.0
      %vm1785 = vcmp.gt.f32.partialorder %v1074, 0.0
      %vm1786 = vcmp.gt.f32.partialorder %v1076, 0.0
      %vm1787 = vcmp.gt.f32.partialorder %v1523, 0.0
      %vm1788 = vcmp.gt.f32.partialorder %v1525, 0.0
      %vm1789 = vcmp.gt.f32.partialorder %v1080, 0.0
      %vm1790 = vcmp.gt.f32.partialorder %v1082, 0.0
      %vm1791 = vcmp.gt.f32.partialorder %v1529, 0.0
      %vm1792 = vcmp.gt.f32.partialorder %v1531, 0.0
      %vm1793 = vcmp.gt.f32.partialorder %v1086, 0.0
      %vm1794 = vcmp.gt.f32.partialorder %v1088, 0.0
      %vm1795 = vcmp.gt.f32.partialorder %v1535, 0.0
      %vm1796 = vcmp.gt.f32.partialorder %v1537, 0.0
      %vm1797 = vcmp.gt.f32.partialorder %v1092, 0.0
      %vm1798 = vcmp.gt.f32.partialorder %v1094, 0.0
      %vm1799 = vcmp.gt.f32.partialorder %v1541, 0.0
      %vm1800 = vcmp.gt.f32.partialorder %v1543, 0.0
      %v1801 = vmul.f32 %v714, 0.01
      %v1802 = vmul.f32 %v716, 0.01
      %v1803 = vmul.f32 %v1163, 0.01
      %v1804 = vmul.f32 %v1165, 0.01
      %v1805 = vmul.f32 %v720, 0.01
      %v1806 = vmul.f32 %v722, 0.01
      %v1807 = vmul.f32 %v1169, 0.01
      %v1808 = vmul.f32 %v1171, 0.01
      %v1809 = vmul.f32 %v726, 0.01
      %v1810 = vmul.f32 %v728, 0.01
      %v1811 = vmul.f32 %v1175, 0.01
      %v1812 = vmul.f32 %v1177, 0.01
      %v1813 = vmul.f32 %v732, 0.01
      %v1814 = vmul.f32 %v734, 0.01
      %v1815 = vmul.f32 %v1181, 0.01
      %v1816 = vmul.f32 %v1183, 0.01
      %v1817 = vmul.f32 %v738, 0.01
      %v1818 = vmul.f32 %v740, 0.01
      %v1819 = vmul.f32 %v1187, 0.01
      %v1820 = vmul.f32 %v1189, 0.01
      %v1821 = vmul.f32 %v744, 0.01
      %v1822 = vmul.f32 %v746, 0.01
      %v1823 = vmul.f32 %v1193, 0.01
      %v1824 = vmul.f32 %v1195, 0.01
      %v1825 = vmul.f32 %v750, 0.01
      %v1826 = vmul.f32 %v752, 0.01
      %v1827 = vmul.f32 %v1199, 0.01
      %v1828 = vmul.f32 %v1201, 0.01
      %v1829 = vmul.f32 %v756, 0.01
      %v1830 = vmul.f32 %v758, 0.01
      %v1831 = vmul.f32 %v1205, 0.01
      %v1832 = vmul.f32 %v1207, 0.01
      %v1833 = vmul.f32 %v762, 0.01
      %v1834 = vmul.f32 %v764, 0.01
      %v1835 = vmul.f32 %v1211, 0.01
      %v1836 = vmul.f32 %v1213, 0.01
      %v1837 = vmul.f32 %v768, 0.01
      %v1838 = vmul.f32 %v770, 0.01
      %v1839 = vmul.f32 %v1217, 0.01
      %v1840 = vmul.f32 %v1219, 0.01
      %v1841 = vmul.f32 %v774, 0.01
      %v1842 = vmul.f32 %v776, 0.01
      %v1843 = vmul.f32 %v1223, 0.01
      %v1844 = vmul.f32 %v1225, 0.01
      %v1845 = vmul.f32 %v780, 0.01
      %v1846 = vmul.f32 %v782, 0.01
      %v1847 = vmul.f32 %v1229, 0.01
      %v1848 = vmul.f32 %v1231, 0.01
      %v1849 = vmul.f32 %v786, 0.01
      %v1850 = vmul.f32 %v788, 0.01
      %v1851 = vmul.f32 %v1235, 0.01
      %v1852 = vmul.f32 %v1237, 0.01
      %v1853 = vmul.f32 %v792, 0.01
      %v1854 = vmul.f32 %v794, 0.01
      %v1855 = vmul.f32 %v1241, 0.01
      %v1856 = vmul.f32 %v1243, 0.01
      %v1857 = vmul.f32 %v798, 0.01
      %v1858 = vmul.f32 %v800, 0.01
      %v1859 = vmul.f32 %v1247, 0.01
      %v1860 = vmul.f32 %v1249, 0.01
      %v1861 = vmul.f32 %v804, 0.01
      %v1862 = vmul.f32 %v806, 0.01
      %v1863 = vmul.f32 %v1253, 0.01
      %v1864 = vmul.f32 %v1255, 0.01
      %v1865 = vmul.f32 %v810, 0.01
      %v1866 = vmul.f32 %v812, 0.01
      %v1867 = vmul.f32 %v1259, 0.01
      %v1868 = vmul.f32 %v1261, 0.01
      %v1869 = vmul.f32 %v816, 0.01
      %v1870 = vmul.f32 %v818, 0.01
      %v1871 = vmul.f32 %v1265, 0.01
      %v1872 = vmul.f32 %v1267, 0.01
      %v1873 = vmul.f32 %v822, 0.01
      %v1874 = vmul.f32 %v824, 0.01
      %v1875 = vmul.f32 %v1271, 0.01
      %v1876 = vmul.f32 %v1273, 0.01
      %v1877 = vmul.f32 %v828, 0.01
      %v1878 = vmul.f32 %v830, 0.01
      %v1879 = vmul.f32 %v1277, 0.01
      %v1880 = vmul.f32 %v1279, 0.01
      %v1881 = vmul.f32 %v834, 0.01
      %v1882 = vmul.f32 %v836, 0.01
      %v1883 = vmul.f32 %v1283, 0.01
      %v1884 = vmul.f32 %v1285, 0.01
      %v1885 = vmul.f32 %v840, 0.01
      %v1886 = vmul.f32 %v842, 0.01
      %v1887 = vmul.f32 %v1289, 0.01
      %v1888 = vmul.f32 %v1291, 0.01
      %v1889 = vmul.f32 %v846, 0.01
      %v1890 = vmul.f32 %v848, 0.01
      %v1891 = vmul.f32 %v1295, 0.01
      %v1892 = vmul.f32 %v1297, 0.01
      %v1893 = vmul.f32 %v852, 0.01
      %v1894 = vmul.f32 %v854, 0.01
      %v1895 = vmul.f32 %v1301, 0.01
      %v1896 = vmul.f32 %v1303, 0.01
      %v1897 = vmul.f32 %v858, 0.01
      %v1898 = vmul.f32 %v860, 0.01
      %v1899 = vmul.f32 %v1307, 0.01
      %v1900 = vmul.f32 %v1309, 0.01
      %v1901 = vmul.f32 %v864, 0.01
      %v1902 = vmul.f32 %v866, 0.01
      %v1903 = vmul.f32 %v1313, 0.01
      %v1904 = vmul.f32 %v1315, 0.01
      %v1905 = vmul.f32 %v870, 0.01
      %v1906 = vmul.f32 %v872, 0.01
      %v1907 = vmul.f32 %v1319, 0.01
      %v1908 = vmul.f32 %v1321, 0.01
      %v1909 = vmul.f32 %v876, 0.01
      %v1910 = vmul.f32 %v878, 0.01
      %v1911 = vmul.f32 %v1325, 0.01
      %v1912 = vmul.f32 %v1327, 0.01
      %v1913 = vmul.f32 %v882, 0.01
      %v1914 = vmul.f32 %v884, 0.01
      %v1915 = vmul.f32 %v1331, 0.01
      %v1916 = vmul.f32 %v1333, 0.01
      %v1917 = vmul.f32 %v888, 0.01
      %v1918 = vmul.f32 %v890, 0.01
      %v1919 = vmul.f32 %v1337, 0.01
      %v1920 = vmul.f32 %v1339, 0.01
      %v1921 = vmul.f32 %v894, 0.01
      %v1922 = vmul.f32 %v896, 0.01
      %v1923 = vmul.f32 %v1343, 0.01
      %v1924 = vmul.f32 %v1345, 0.01
      %v1925 = vmul.f32 %v900, 0.01
      %v1926 = vmul.f32 %v902, 0.01
      %v1927 = vmul.f32 %v1349, 0.01
      %v1928 = vmul.f32 %v1351, 0.01
      %v1929 = vmul.f32 %v906, 0.01
      %v1930 = vmul.f32 %v908, 0.01
      %v1931 = vmul.f32 %v1355, 0.01
      %v1932 = vmul.f32 %v1357, 0.01
      %v1933 = vmul.f32 %v912, 0.01
      %v1934 = vmul.f32 %v914, 0.01
      %v1935 = vmul.f32 %v1361, 0.01
      %v1936 = vmul.f32 %v1363, 0.01
      %v1937 = vmul.f32 %v918, 0.01
      %v1938 = vmul.f32 %v920, 0.01
      %v1939 = vmul.f32 %v1367, 0.01
      %v1940 = vmul.f32 %v1369, 0.01
      %v1941 = vmul.f32 %v924, 0.01
      %v1942 = vmul.f32 %v926, 0.01
      %v1943 = vmul.f32 %v1373, 0.01
      %v1944 = vmul.f32 %v1375, 0.01
      %v1945 = vmul.f32 %v930, 0.01
      %v1946 = vmul.f32 %v932, 0.01
      %v1947 = vmul.f32 %v1379, 0.01
      %v1948 = vmul.f32 %v1381, 0.01
      %v1949 = vmul.f32 %v936, 0.01
      %v1950 = vmul.f32 %v938, 0.01
      %v1951 = vmul.f32 %v1385, 0.01
      %v1952 = vmul.f32 %v1387, 0.01
      %v1953 = vmul.f32 %v942, 0.01
      %v1954 = vmul.f32 %v944, 0.01
      %v1955 = vmul.f32 %v1391, 0.01
      %v1956 = vmul.f32 %v1393, 0.01
      %v1957 = vmul.f32 %v948, 0.01
      %v1958 = vmul.f32 %v950, 0.01
      %v1959 = vmul.f32 %v1397, 0.01
      %v1960 = vmul.f32 %v1399, 0.01
      %v1961 = vmul.f32 %v954, 0.01
      %v1962 = vmul.f32 %v956, 0.01
      %v1963 = vmul.f32 %v1403, 0.01
      %v1964 = vmul.f32 %v1405, 0.01
      %v1965 = vmul.f32 %v960, 0.01
      %v1966 = vmul.f32 %v962, 0.01
      %v1967 = vmul.f32 %v1409, 0.01
      %v1968 = vmul.f32 %v1411, 0.01
      %v1969 = vmul.f32 %v966, 0.01
      %v1970 = vmul.f32 %v968, 0.01
      %v1971 = vmul.f32 %v1415, 0.01
      %v1972 = vmul.f32 %v1417, 0.01
      %v1973 = vmul.f32 %v972, 0.01
      %v1974 = vmul.f32 %v974, 0.01
      %v1975 = vmul.f32 %v1421, 0.01
      %v1976 = vmul.f32 %v1423, 0.01
      %v1977 = vmul.f32 %v978, 0.01
      %v1978 = vmul.f32 %v980, 0.01
      %v1979 = vmul.f32 %v1427, 0.01
      %v1980 = vmul.f32 %v1429, 0.01
      %v1981 = vmul.f32 %v984, 0.01
      %v1982 = vmul.f32 %v986, 0.01
      %v1983 = vmul.f32 %v1433, 0.01
      %v1984 = vmul.f32 %v1435, 0.01
      %v1985 = vmul.f32 %v990, 0.01
      %v1986 = vmul.f32 %v992, 0.01
      %v1987 = vmul.f32 %v1439, 0.01
      %v1988 = vmul.f32 %v1441, 0.01
      %v1989 = vmul.f32 %v996, 0.01
      %v1990 = vmul.f32 %v998, 0.01
      %v1991 = vmul.f32 %v1445, 0.01
      %v1992 = vmul.f32 %v1447, 0.01
      %v1993 = vmul.f32 %v1002, 0.01
      %v1994 = vmul.f32 %v1004, 0.01
      %v1995 = vmul.f32 %v1451, 0.01
      %v1996 = vmul.f32 %v1453, 0.01
      %v1997 = vmul.f32 %v1008, 0.01
      %v1998 = vmul.f32 %v1010, 0.01
      %v1999 = vmul.f32 %v1457, 0.01
      %v2000 = vmul.f32 %v1459, 0.01
      %v2001 = vmul.f32 %v1014, 0.01
      %v2002 = vmul.f32 %v1016, 0.01
      %v2003 = vmul.f32 %v1463, 0.01
      %v2004 = vmul.f32 %v1465, 0.01
      %v2005 = vmul.f32 %v1020, 0.01
      %v2006 = vmul.f32 %v1022, 0.01
      %v2007 = vmul.f32 %v1469, 0.01
      %v2008 = vmul.f32 %v1471, 0.01
      %v2009 = vmul.f32 %v1026, 0.01
      %v2010 = vmul.f32 %v1028, 0.01
      %v2011 = vmul.f32 %v1475, 0.01
      %v2012 = vmul.f32 %v1477, 0.01
      %v2013 = vmul.f32 %v1032, 0.01
      %v2014 = vmul.f32 %v1034, 0.01
      %v2015 = vmul.f32 %v1481, 0.01
      %v2016 = vmul.f32 %v1483, 0.01
      %v2017 = vmul.f32 %v1038, 0.01
      %v2018 = vmul.f32 %v1040, 0.01
      %v2019 = vmul.f32 %v1487, 0.01
      %v2020 = vmul.f32 %v1489, 0.01
      %v2021 = vmul.f32 %v1044, 0.01
      %v2022 = vmul.f32 %v1046, 0.01
      %v2023 = vmul.f32 %v1493, 0.01
      %v2024 = vmul.f32 %v1495, 0.01
      %v2025 = vmul.f32 %v1050, 0.01
      %v2026 = vmul.f32 %v1052, 0.01
      %v2027 = vmul.f32 %v1499, 0.01
      %v2028 = vmul.f32 %v1501, 0.01
      %v2029 = vmul.f32 %v1056, 0.01
      %v2030 = vmul.f32 %v1058, 0.01
      %v2031 = vmul.f32 %v1505, 0.01
      %v2032 = vmul.f32 %v1507, 0.01
      %v2033 = vmul.f32 %v1062, 0.01
      %v2034 = vmul.f32 %v1064, 0.01
      %v2035 = vmul.f32 %v1511, 0.01
      %v2036 = vmul.f32 %v1513, 0.01
      %v2037 = vmul.f32 %v1068, 0.01
      %v2038 = vmul.f32 %v1070, 0.01
      %v2039 = vmul.f32 %v1517, 0.01
      %v2040 = vmul.f32 %v1519, 0.01
      %v2041 = vmul.f32 %v1074, 0.01
      %v2042 = vmul.f32 %v1076, 0.01
      %v2043 = vmul.f32 %v1523, 0.01
      %v2044 = vmul.f32 %v1525, 0.01
      %v2045 = vmul.f32 %v1080, 0.01
      %v2046 = vmul.f32 %v1082, 0.01
      %v2047 = vmul.f32 %v1529, 0.01
      %v2048 = vmul.f32 %v1531, 0.01
      %v2049 = vmul.f32 %v1086, 0.01
      %v2050 = vmul.f32 %v1088, 0.01
      %v2051 = vmul.f32 %v1535, 0.01
      %v2052 = vmul.f32 %v1537, 0.01
      %v2053 = vmul.f32 %v1092, 0.01
      %v2054 = vmul.f32 %v1094, 0.01
      %v2055 = vmul.f32 %v1541, 0.01
      %v2056 = vmul.f32 %v1543, 0.01
      %v2057 = vsel %vm1545, %v714, %v1801
      %v2058 = vsel %vm1546, %v716, %v1802
      %v2059 = vsel %vm1547, %v1163, %v1803
      %v2060 = vsel %vm1548, %v1165, %v1804
      %v2061 = vsel %vm1549, %v720, %v1805
      %v2062 = vsel %vm1550, %v722, %v1806
      %v2063 = vsel %vm1551, %v1169, %v1807
      %v2064 = vsel %vm1552, %v1171, %v1808
      %v2065 = vsel %vm1553, %v726, %v1809
      %v2066 = vsel %vm1554, %v728, %v1810
      %v2067 = vsel %vm1555, %v1175, %v1811
      %v2068 = vsel %vm1556, %v1177, %v1812
      %v2069 = vsel %vm1557, %v732, %v1813
      %v2070 = vsel %vm1558, %v734, %v1814
      %v2071 = vsel %vm1559, %v1181, %v1815
      %v2072 = vsel %vm1560, %v1183, %v1816
      %v2073 = vsel %vm1561, %v738, %v1817
      %v2074 = vsel %vm1562, %v740, %v1818
      %v2075 = vsel %vm1563, %v1187, %v1819
      %v2076 = vsel %vm1564, %v1189, %v1820
      %v2077 = vsel %vm1565, %v744, %v1821
      %v2078 = vsel %vm1566, %v746, %v1822
      %v2079 = vsel %vm1567, %v1193, %v1823
      %v2080 = vsel %vm1568, %v1195, %v1824
      %v2081 = vsel %vm1569, %v750, %v1825
      %v2082 = vsel %vm1570, %v752, %v1826
      %v2083 = vsel %vm1571, %v1199, %v1827
      %v2084 = vsel %vm1572, %v1201, %v1828
      %v2085 = vsel %vm1573, %v756, %v1829
      %v2086 = vsel %vm1574, %v758, %v1830
      %v2087 = vsel %vm1575, %v1205, %v1831
      %v2088 = vsel %vm1576, %v1207, %v1832
      %v2089 = vsel %vm1577, %v762, %v1833
      %v2090 = vsel %vm1578, %v764, %v1834
      %v2091 = vsel %vm1579, %v1211, %v1835
      %v2092 = vsel %vm1580, %v1213, %v1836
      %v2093 = vsel %vm1581, %v768, %v1837
      %v2094 = vsel %vm1582, %v770, %v1838
      %v2095 = vsel %vm1583, %v1217, %v1839
      %v2096 = vsel %vm1584, %v1219, %v1840
      %v2097 = vsel %vm1585, %v774, %v1841
      %v2098 = vsel %vm1586, %v776, %v1842
      %v2099 = vsel %vm1587, %v1223, %v1843
      %v2100 = vsel %vm1588, %v1225, %v1844
      %v2101 = vsel %vm1589, %v780, %v1845
      %v2102 = vsel %vm1590, %v782, %v1846
      %v2103 = vsel %vm1591, %v1229, %v1847
      %v2104 = vsel %vm1592, %v1231, %v1848
      %v2105 = vsel %vm1593, %v786, %v1849
      %v2106 = vsel %vm1594, %v788, %v1850
      %v2107 = vsel %vm1595, %v1235, %v1851
      %v2108 = vsel %vm1596, %v1237, %v1852
      %v2109 = vsel %vm1597, %v792, %v1853
      %v2110 = vsel %vm1598, %v794, %v1854
      %v2111 = vsel %vm1599, %v1241, %v1855
      %v2112 = vsel %vm1600, %v1243, %v1856
      %v2113 = vsel %vm1601, %v798, %v1857
      %v2114 = vsel %vm1602, %v800, %v1858
      %v2115 = vsel %vm1603, %v1247, %v1859
      %v2116 = vsel %vm1604, %v1249, %v1860
      %v2117 = vsel %vm1605, %v804, %v1861
      %v2118 = vsel %vm1606, %v806, %v1862
      %v2119 = vsel %vm1607, %v1253, %v1863
      %v2120 = vsel %vm1608, %v1255, %v1864
      %v2121 = vsel %vm1609, %v810, %v1865
      %v2122 = vsel %vm1610, %v812, %v1866
      %v2123 = vsel %vm1611, %v1259, %v1867
      %v2124 = vsel %vm1612, %v1261, %v1868
      %v2125 = vsel %vm1613, %v816, %v1869
      %v2126 = vsel %vm1614, %v818, %v1870
      %v2127 = vsel %vm1615, %v1265, %v1871
      %v2128 = vsel %vm1616, %v1267, %v1872
      %v2129 = vsel %vm1617, %v822, %v1873
      %v2130 = vsel %vm1618, %v824, %v1874
      %v2131 = vsel %vm1619, %v1271, %v1875
      %v2132 = vsel %vm1620, %v1273, %v1876
      %v2133 = vsel %vm1621, %v828, %v1877
      %v2134 = vsel %vm1622, %v830, %v1878
      %v2135 = vsel %vm1623, %v1277, %v1879
      %v2136 = vsel %vm1624, %v1279, %v1880
      %v2137 = vsel %vm1625, %v834, %v1881
      %v2138 = vsel %vm1626, %v836, %v1882
      %v2139 = vsel %vm1627, %v1283, %v1883
      %v2140 = vsel %vm1628, %v1285, %v1884
      %v2141 = vsel %vm1629, %v840, %v1885
      %v2142 = vsel %vm1630, %v842, %v1886
      %v2143 = vsel %vm1631, %v1289, %v1887
      %v2144 = vsel %vm1632, %v1291, %v1888
      %v2145 = vsel %vm1633, %v846, %v1889
      %v2146 = vsel %vm1634, %v848, %v1890
      %v2147 = vsel %vm1635, %v1295, %v1891
      %v2148 = vsel %vm1636, %v1297, %v1892
      %v2149 = vsel %vm1637, %v852, %v1893
      %v2150 = vsel %vm1638, %v854, %v1894
      %v2151 = vsel %vm1639, %v1301, %v1895
      %v2152 = vsel %vm1640, %v1303, %v1896
      %v2153 = vsel %vm1641, %v858, %v1897
      %v2154 = vsel %vm1642, %v860, %v1898
      %v2155 = vsel %vm1643, %v1307, %v1899
      %v2156 = vsel %vm1644, %v1309, %v1900
      %v2157 = vsel %vm1645, %v864, %v1901
      %v2158 = vsel %vm1646, %v866, %v1902
      %v2159 = vsel %vm1647, %v1313, %v1903
      %v2160 = vsel %vm1648, %v1315, %v1904
      %v2161 = vsel %vm1649, %v870, %v1905
      %v2162 = vsel %vm1650, %v872, %v1906
      %v2163 = vsel %vm1651, %v1319, %v1907
      %v2164 = vsel %vm1652, %v1321, %v1908
      %v2165 = vsel %vm1653, %v876, %v1909
      %v2166 = vsel %vm1654, %v878, %v1910
      %v2167 = vsel %vm1655, %v1325, %v1911
      %v2168 = vsel %vm1656, %v1327, %v1912
      %v2169 = vsel %vm1657, %v882, %v1913
      %v2170 = vsel %vm1658, %v884, %v1914
      %v2171 = vsel %vm1659, %v1331, %v1915
      %v2172 = vsel %vm1660, %v1333, %v1916
      %v2173 = vsel %vm1661, %v888, %v1917
      %v2174 = vsel %vm1662, %v890, %v1918
      %v2175 = vsel %vm1663, %v1337, %v1919
      %v2176 = vsel %vm1664, %v1339, %v1920
      %v2177 = vsel %vm1665, %v894, %v1921
      %v2178 = vsel %vm1666, %v896, %v1922
      %v2179 = vsel %vm1667, %v1343, %v1923
      %v2180 = vsel %vm1668, %v1345, %v1924
      %v2181 = vsel %vm1669, %v900, %v1925
      %v2182 = vsel %vm1670, %v902, %v1926
      %v2183 = vsel %vm1671, %v1349, %v1927
      %v2184 = vsel %vm1672, %v1351, %v1928
      %v2185 = vsel %vm1673, %v906, %v1929
      %v2186 = vsel %vm1674, %v908, %v1930
      %v2187 = vsel %vm1675, %v1355, %v1931
      %v2188 = vsel %vm1676, %v1357, %v1932
      %v2189 = vsel %vm1677, %v912, %v1933
      %v2190 = vsel %vm1678, %v914, %v1934
      %v2191 = vsel %vm1679, %v1361, %v1935
      %v2192 = vsel %vm1680, %v1363, %v1936
      %v2193 = vsel %vm1681, %v918, %v1937
      %v2194 = vsel %vm1682, %v920, %v1938
      %v2195 = vsel %vm1683, %v1367, %v1939
      %v2196 = vsel %vm1684, %v1369, %v1940
      %v2197 = vsel %vm1685, %v924, %v1941
      %v2198 = vsel %vm1686, %v926, %v1942
      %v2199 = vsel %vm1687, %v1373, %v1943
      %v2200 = vsel %vm1688, %v1375, %v1944
      %v2201 = vsel %vm1689, %v930, %v1945
      %v2202 = vsel %vm1690, %v932, %v1946
      %v2203 = vsel %vm1691, %v1379, %v1947
      %v2204 = vsel %vm1692, %v1381, %v1948
      %v2205 = vsel %vm1693, %v936, %v1949
      %v2206 = vsel %vm1694, %v938, %v1950
      %v2207 = vsel %vm1695, %v1385, %v1951
      %v2208 = vsel %vm1696, %v1387, %v1952
      %v2209 = vsel %vm1697, %v942, %v1953
      %v2210 = vsel %vm1698, %v944, %v1954
      %v2211 = vsel %vm1699, %v1391, %v1955
      %v2212 = vsel %vm1700, %v1393, %v1956
      %v2213 = vsel %vm1701, %v948, %v1957
      %v2214 = vsel %vm1702, %v950, %v1958
      %v2215 = vsel %vm1703, %v1397, %v1959
      %v2216 = vsel %vm1704, %v1399, %v1960
      %v2217 = vsel %vm1705, %v954, %v1961
      %v2218 = vsel %vm1706, %v956, %v1962
      %v2219 = vsel %vm1707, %v1403, %v1963
      %v2220 = vsel %vm1708, %v1405, %v1964
      %v2221 = vsel %vm1709, %v960, %v1965
      %v2222 = vsel %vm1710, %v962, %v1966
      %v2223 = vsel %vm1711, %v1409, %v1967
      %v2224 = vsel %vm1712, %v1411, %v1968
      %v2225 = vsel %vm1713, %v966, %v1969
      %v2226 = vsel %vm1714, %v968, %v1970
      %v2227 = vsel %vm1715, %v1415, %v1971
      %v2228 = vsel %vm1716, %v1417, %v1972
      %v2229 = vsel %vm1717, %v972, %v1973
      %v2230 = vsel %vm1718, %v974, %v1974
      %v2231 = vsel %vm1719, %v1421, %v1975
      %v2232 = vsel %vm1720, %v1423, %v1976
      %v2233 = vsel %vm1721, %v978, %v1977
      %v2234 = vsel %vm1722, %v980, %v1978
      %v2235 = vsel %vm1723, %v1427, %v1979
      %v2236 = vsel %vm1724, %v1429, %v1980
      %v2237 = vsel %vm1725, %v984, %v1981
      %v2238 = vsel %vm1726, %v986, %v1982
      %v2239 = vsel %vm1727, %v1433, %v1983
      %v2240 = vsel %vm1728, %v1435, %v1984
      %v2241 = vsel %vm1729, %v990, %v1985
      %v2242 = vsel %vm1730, %v992, %v1986
      %v2243 = vsel %vm1731, %v1439, %v1987
      %v2244 = vsel %vm1732, %v1441, %v1988
      %v2245 = vsel %vm1733, %v996, %v1989
      %v2246 = vsel %vm1734, %v998, %v1990
      %v2247 = vsel %vm1735, %v1445, %v1991
      %v2248 = vsel %vm1736, %v1447, %v1992
      %v2249 = vsel %vm1737, %v1002, %v1993
      %v2250 = vsel %vm1738, %v1004, %v1994
      %v2251 = vsel %vm1739, %v1451, %v1995
      %v2252 = vsel %vm1740, %v1453, %v1996
      %v2253 = vsel %vm1741, %v1008, %v1997
      %v2254 = vsel %vm1742, %v1010, %v1998
      %v2255 = vsel %vm1743, %v1457, %v1999
      %v2256 = vsel %vm1744, %v1459, %v2000
      %v2257 = vsel %vm1745, %v1014, %v2001
      %v2258 = vsel %vm1746, %v1016, %v2002
      %v2259 = vsel %vm1747, %v1463, %v2003
      %v2260 = vsel %vm1748, %v1465, %v2004
      %v2261 = vsel %vm1749, %v1020, %v2005
      %v2262 = vsel %vm1750, %v1022, %v2006
      %v2263 = vsel %vm1751, %v1469, %v2007
      %v2264 = vsel %vm1752, %v1471, %v2008
      %v2265 = vsel %vm1753, %v1026, %v2009
      %v2266 = vsel %vm1754, %v1028, %v2010
      %v2267 = vsel %vm1755, %v1475, %v2011
      %v2268 = vsel %vm1756, %v1477, %v2012
      %v2269 = vsel %vm1757, %v1032, %v2013
      %v2270 = vsel %vm1758, %v1034, %v2014
      %v2271 = vsel %vm1759, %v1481, %v2015
      %v2272 = vsel %vm1760, %v1483, %v2016
      %v2273 = vsel %vm1761, %v1038, %v2017
      %v2274 = vsel %vm1762, %v1040, %v2018
      %v2275 = vsel %vm1763, %v1487, %v2019
      %v2276 = vsel %vm1764, %v1489, %v2020
      %v2277 = vsel %vm1765, %v1044, %v2021
      %v2278 = vsel %vm1766, %v1046, %v2022
      %v2279 = vsel %vm1767, %v1493, %v2023
      %v2280 = vsel %vm1768, %v1495, %v2024
      %v2281 = vsel %vm1769, %v1050, %v2025
      %v2282 = vsel %vm1770, %v1052, %v2026
      %v2283 = vsel %vm1771, %v1499, %v2027
      %v2284 = vsel %vm1772, %v1501, %v2028
      %v2285 = vsel %vm1773, %v1056, %v2029
      %v2286 = vsel %vm1774, %v1058, %v2030
      %v2287 = vsel %vm1775, %v1505, %v2031
      %v2288 = vsel %vm1776, %v1507, %v2032
      %v2289 = vsel %vm1777, %v1062, %v2033
      %v2290 = vsel %vm1778, %v1064, %v2034
      %v2291 = vsel %vm1779, %v1511, %v2035
      %v2292 = vsel %vm1780, %v1513, %v2036
      %v2293 = vsel %vm1781, %v1068, %v2037
      %v2294 = vsel %vm1782, %v1070, %v2038
      %v2295 = vsel %vm1783, %v1517, %v2039
      %v2296 = vsel %vm1784, %v1519, %v2040
      %v2297 = vsel %vm1785, %v1074, %v2041
      %v2298 = vsel %vm1786, %v1076, %v2042
      %v2299 = vsel %vm1787, %v1523, %v2043
      %v2300 = vsel %vm1788, %v1525, %v2044
      %v2301 = vsel %vm1789, %v1080, %v2045
      %v2302 = vsel %vm1790, %v1082, %v2046
      %v2303 = vsel %vm1791, %v1529, %v2047
      %v2304 = vsel %vm1792, %v1531, %v2048
      %v2305 = vsel %vm1793, %v1086, %v2049
      %v2306 = vsel %vm1794, %v1088, %v2050
      %v2307 = vsel %vm1795, %v1535, %v2051
      %v2308 = vsel %vm1796, %v1537, %v2052
      %v2309 = vsel %vm1797, %v1092, %v2053
      %v2310 = vsel %vm1798, %v1094, %v2054
      %v2311 = vsel %vm1799, %v1541, %v2055
      %v2312 = vsel %vm1800, %v1543, %v2056
      %v2313 = vld [vmem:[%s3] sm:$0xff]
      %v2314 = vld [vmem:[%s3 + $0x8] sm:$0xff]
      %v2315 = vld [vmem:[%s3 + $0x10] sm:$0xff]
      %v2316 = vld [vmem:[%s3 + $0x18] sm:$0xff]
      %v2317 = vld [vmem:[%s3 + $0x20] sm:$0xff]
      %v2318 = vld [vmem:[%s3 + $0x28] sm:$0xff]
      %v2319 = vld [vmem:[%s3 + $0x30] sm:$0xff]
      %v2320 = vld [vmem:[%s3 + $0x38] sm:$0xff]
      %v2321 = vld [vmem:[%s3 + $0x40] sm:$0xff]
      %v2322 = vld [vmem:[%s3 + $0x48] sm:$0xff]
      %v2323 = vld [vmem:[%s3 + $0x50] sm:$0xff]
      %v2324 = vld [vmem:[%s3 + $0x58] sm:$0xff]
      %v2325 = vld [vmem:[%s3 + $0x60] sm:$0xff]
      %v2326 = vld [vmem:[%s3 + $0x68] sm:$0xff]
      %v2327 = vld [vmem:[%s3 + $0x70] sm:$0xff]
      %v2328 = vld [vmem:[%s3 + $0x78] sm:$0xff]
      %v2329 = vld [vmem:[%s3 + $0x80] sm:$0xff]
      %v2330 = vld [vmem:[%s3 + $0x88] sm:$0xff]
      %v2331 = vld [vmem:[%s3 + $0x90] sm:$0xff]
      %v2332 = vld [vmem:[%s3 + $0x98] sm:$0xff]
      %v2333 = vld [vmem:[%s3 + $0xa0] sm:$0xff]
      %v2334 = vld [vmem:[%s3 + $0xa8] sm:$0xff]
      %v2335 = vld [vmem:[%s3 + $0xb0] sm:$0xff]
      %v2336 = vld [vmem:[%s3 + $0xb8] sm:$0xff]
      %v2337 = vld [vmem:[%s3 + $0xc0] sm:$0xff]
      %v2338 = vld [vmem:[%s3 + $0xc8] sm:$0xff]
      %v2339 = vld [vmem:[%s3 + $0xd0] sm:$0xff]
      %v2340 = vld [vmem:[%s3 + $0xd8] sm:$0xff]
      %v2341 = vld [vmem:[%s3 + $0xe0] sm:$0xff]
      %v2342 = vld [vmem:[%s3 + $0xe8] sm:$0xff]
      %v2343 = vld [vmem:[%s3 + $0xf0] sm:$0xff]
      %v2344 = vld [vmem:[%s3 + $0xf8] sm:$0xff]
      %v2345 = vld [vmem:[%s3 + $0x100] sm:$0xff]
      %v2346 = vld [vmem:[%s3 + $0x108] sm:$0xff]
      %v2347 = vld [vmem:[%s3 + $0x110] sm:$0xff]
      %v2348 = vld [vmem:[%s3 + $0x118] sm:$0xff]
      %v2349 = vld [vmem:[%s3 + $0x120] sm:$0xff]
      %v2350 = vld [vmem:[%s3 + $0x128] sm:$0xff]
      %v2351 = vld [vmem:[%s3 + $0x130] sm:$0xff]
      %v2352 = vld [vmem:[%s3 + $0x138] sm:$0xff]
      %v2353 = vld [vmem:[%s3 + $0x140] sm:$0xff]
      %v2354 = vld [vmem:[%s3 + $0x148] sm:$0xff]
      %v2355 = vld [vmem:[%s3 + $0x150] sm:$0xff]
      %v2356 = vld [vmem:[%s3 + $0x158] sm:$0xff]
      %v2357 = vld [vmem:[%s3 + $0x160] sm:$0xff]
      %v2358 = vld [vmem:[%s3 + $0x168] sm:$0xff]
      %v2359 = vld [vmem:[%s3 + $0x170] sm:$0xff]
      %v2360 = vld [vmem:[%s3 + $0x178] sm:$0xff]
      %v2361 = vld [vmem:[%s3 + $0x180] sm:$0xff]
      %v2362 = vld [vmem:[%s3 + $0x188] sm:$0xff]
      %v2363 = vld [vmem:[%s3 + $0x190] sm:$0xff]
      %v2364 = vld [vmem:[%s3 + $0x198] sm:$0xff]
      %v2365 = vld [vmem:[%s3 + $0x1a0] sm:$0xff]
      %v2366 = vld [vmem:[%s3 + $0x1a8] sm:$0xff]
      %v2367 = vld [vmem:[%s3 + $0x1b0] sm:$0xff]
      %v2368 = vld [vmem:[%s3 + $0x1b8] sm:$0xff]
      %v2369 = vld [vmem:[%s3 + $0x1c0] sm:$0xff]
      %v2370 = vld [vmem:[%s3 + $0x1c8] sm:$0xff]
      %v2371 = vld [vmem:[%s3 + $0x1d0] sm:$0xff]
      %v2372 = vld [vmem:[%s3 + $0x1d8] sm:$0xff]
      %v2373 = vld [vmem:[%s3 + $0x1e0] sm:$0xff]
      %v2374 = vld [vmem:[%s3 + $0x1e8] sm:$0xff]
      %v2375 = vld [vmem:[%s3 + $0x1f0] sm:$0xff]
      %v2376 = vld [vmem:[%s3 + $0x1f8] sm:$0xff]
      %v2377 = vld [vmem:[%s4] sm:$0x1]
      %v2379 = vlaneseq
      %v2380 = vshrl.u32 %v2379, 7
      %v2381 = vsub.s32 0, %v2380
      %v2382 = vrot.slane %v2377, %v2381
      %2384 = vmatprep.subr.mxu0 0.0
      %2385 = vmatpush1.msra.mxu0 %v2328
      %2386 = vmatprep.subr.mxu0 0.0
      %2387 = vmatpush1.msra.mxu0 %v2327
      %2388 = vmatprep.subr.mxu0 0.0
      %2389 = vmatpush1.msra.mxu0 %v2326
      %2390 = vmatprep.subr.mxu0 0.0
      %2391 = vmatpush1.msra.mxu0 %v2325
      %2392 = vmatprep.subr.mxu0 0.0
      %2393 = vmatpush1.msra.mxu0 %v2324
      %2394 = vmatprep.subr.mxu0 0.0
      %2395 = vmatpush1.msra.mxu0 %v2323
      %2396 = vmatprep.subr.mxu0 0.0
      %2397 = vmatpush1.msra.mxu0 %v2322
      %2398 = vmatprep.subr.mxu0 0.0
      %2399 = vmatpush1.msra.mxu0 %v2321
      %2400 = vmatprep.subr.mxu0 0.0
      %2401 = vmatpush1.msra.mxu0 %v2320
      %2402 = vmatprep.subr.mxu0 0.0
      %2403 = vmatpush1.msra.mxu0 %v2319
      %2404 = vmatprep.subr.mxu0 0.0
      %2405 = vmatpush1.msra.mxu0 %v2318
      %2406 = vmatprep.subr.mxu0 0.0
      %2407 = vmatpush1.msra.mxu0 %v2317
      %2408 = vmatprep.subr.mxu0 0.0
      %2409 = vmatpush1.msra.mxu0 %v2316
      %2410 = vmatprep.subr.mxu0 0.0
      %2411 = vmatpush1.msra.mxu0 %v2315
      %2412 = vmatprep.subr.mxu0 0.0
      %2413 = vmatpush1.msra.mxu0 %v2314
      %2414 = vmatprep.subr.mxu0 0.0
      %2415 = vmatpush1.msra.mxu0 %v2313
      %2416 = vmatprep.subr.mxu0 0.0
      %2417 = vmatpush2.msra.mxu0 %v2344
      %2418 = vmatprep.subr.mxu0 0.0
      %2419 = vmatpush2.msra.mxu0 %v2343
      %2420 = vmatprep.subr.mxu0 0.0
      %2421 = vmatpush2.msra.mxu0 %v2342
      %2422 = vmatprep.subr.mxu0 0.0
      %2423 = vmatpush2.msra.mxu0 %v2341
      %2424 = vmatprep.subr.mxu0 0.0
      %2425 = vmatpush2.msra.mxu0 %v2340
      %2426 = vmatprep.subr.mxu0 0.0
      %2427 = vmatpush2.msra.mxu0 %v2339
      %2428 = vmatprep.subr.mxu0 0.0
      %2429 = vmatpush2.msra.mxu0 %v2338
      %2430 = vmatprep.subr.mxu0 0.0
      %2431 = vmatpush2.msra.mxu0 %v2337
      %2432 = vmatprep.subr.mxu0 0.0
      %2433 = vmatpush2.msra.mxu0 %v2336
      %2434 = vmatprep.subr.mxu0 0.0
      %2435 = vmatpush2.msra.mxu0 %v2335
      %2436 = vmatprep.subr.mxu0 0.0
      %2437 = vmatpush2.msra.mxu0 %v2334
      %2438 = vmatprep.subr.mxu0 0.0
      %2439 = vmatpush2.msra.mxu0 %v2333
      %2440 = vmatprep.subr.mxu0 0.0
      %2441 = vmatpush2.msra.mxu0 %v2332
      %2442 = vmatprep.subr.mxu0 0.0
      %2443 = vmatpush2.msra.mxu0 %v2331
      %2444 = vmatprep.subr.mxu0 0.0
      %2445 = vmatpush2.msra.mxu0 %v2330
      %2446 = vmatprep.subr.mxu0 0.0
      %2447 = vmatpush2.msra.mxu0 %v2329
      %2448 = vmatprep.mubr.f32.mxu0 %v2058
      %2449 = vmatmul.mubr.f32.gmra.mxu0 %v2057
      %v2450 = vpop.f32.mrf.mxu0
      %v2451 = vadd.f32 %v2382, %v2450
      %v2452 = vpop.f32.mrf.mxu0
      %2453 = vmatprep.mubr.f32.mxu0 %v2062
      %2454 = vmatmul.mubr.f32.gmra.mxu0 %v2061
      %v2455 = vpop.f32.mrf.mxu0
      %v2456 = vadd.f32 %v2382, %v2455
      %v2457 = vpop.f32.mrf.mxu0
      %2458 = vmatprep.mubr.f32.mxu0 %v2066
      %2459 = vmatmul.mubr.f32.gmra.mxu0 %v2065
      %v2460 = vpop.f32.mrf.mxu0
      %v2461 = vadd.f32 %v2382, %v2460
      %v2462 = vpop.f32.mrf.mxu0
      %2463 = vmatprep.mubr.f32.mxu0 %v2070
      %2464 = vmatmul.mubr.f32.gmra.mxu0 %v2069
      %v2465 = vpop.f32.mrf.mxu0
      %v2466 = vadd.f32 %v2382, %v2465
      %v2467 = vpop.f32.mrf.mxu0
      %2468 = vmatprep.mubr.f32.mxu0 %v2074
      %2469 = vmatmul.mubr.f32.gmra.mxu0 %v2073
      %v2470 = vpop.f32.mrf.mxu0
      %v2471 = vadd.f32 %v2382, %v2470
      %v2472 = vpop.f32.mrf.mxu0
      %2473 = vmatprep.mubr.f32.mxu0 %v2078
      %2474 = vmatmul.mubr.f32.gmra.mxu0 %v2077
      %v2475 = vpop.f32.mrf.mxu0
      %v2476 = vadd.f32 %v2382, %v2475
      %v2477 = vpop.f32.mrf.mxu0
      %2478 = vmatprep.mubr.f32.mxu0 %v2082
      %2479 = vmatmul.mubr.f32.gmra.mxu0 %v2081
      %v2480 = vpop.f32.mrf.mxu0
      %v2481 = vadd.f32 %v2382, %v2480
      %v2482 = vpop.f32.mrf.mxu0
      %2483 = vmatprep.mubr.f32.mxu0 %v2086
      %2484 = vmatmul.mubr.f32.gmra.mxu0 %v2085
      %v2485 = vpop.f32.mrf.mxu0
      %v2486 = vadd.f32 %v2382, %v2485
      %v2487 = vpop.f32.mrf.mxu0
      %2488 = vmatprep.mubr.f32.mxu0 %v2090
      %2489 = vmatmul.mubr.f32.gmra.mxu0 %v2089
      %v2490 = vpop.f32.mrf.mxu0
      %v2491 = vadd.f32 %v2382, %v2490
      %v2492 = vpop.f32.mrf.mxu0
      %2493 = vmatprep.mubr.f32.mxu0 %v2094
      %2494 = vmatmul.mubr.f32.gmra.mxu0 %v2093
      %v2495 = vpop.f32.mrf.mxu0
      %v2496 = vadd.f32 %v2382, %v2495
      %v2497 = vpop.f32.mrf.mxu0
      %2498 = vmatprep.mubr.f32.mxu0 %v2098
      %2499 = vmatmul.mubr.f32.gmra.mxu0 %v2097
      %v2500 = vpop.f32.mrf.mxu0
      %v2501 = vadd.f32 %v2382, %v2500
      %v2502 = vpop.f32.mrf.mxu0
      %2503 = vmatprep.mubr.f32.mxu0 %v2102
      %2504 = vmatmul.mubr.f32.gmra.mxu0 %v2101
      %v2505 = vpop.f32.mrf.mxu0
      %v2506 = vadd.f32 %v2382, %v2505
      %v2507 = vpop.f32.mrf.mxu0
      %2508 = vmatprep.mubr.f32.mxu0 %v2106
      %2509 = vmatmul.mubr.f32.gmra.mxu0 %v2105
      %v2510 = vpop.f32.mrf.mxu0
      %v2511 = vadd.f32 %v2382, %v2510
      %v2512 = vpop.f32.mrf.mxu0
      %2513 = vmatprep.mubr.f32.mxu0 %v2110
      %2514 = vmatmul.mubr.f32.gmra.mxu0 %v2109
      %v2515 = vpop.f32.mrf.mxu0
      %v2516 = vadd.f32 %v2382, %v2515
      %v2517 = vpop.f32.mrf.mxu0
      %2518 = vmatprep.mubr.f32.mxu0 %v2114
      %2519 = vmatmul.mubr.f32.gmra.mxu0 %v2113
      %v2520 = vpop.f32.mrf.mxu0
      %v2521 = vadd.f32 %v2382, %v2520
      %v2522 = vpop.f32.mrf.mxu0
      %2523 = vmatprep.mubr.f32.mxu0 %v2118
      %2524 = vmatmul.mubr.f32.gmra.mxu0 %v2117
      %v2525 = vpop.f32.mrf.mxu0
      %v2526 = vadd.f32 %v2382, %v2525
      %v2527 = vpop.f32.mrf.mxu0
      %2528 = vmatprep.mubr.f32.mxu0 %v2122
      %2529 = vmatmul.mubr.f32.gmra.mxu0 %v2121
      %v2530 = vpop.f32.mrf.mxu0
      %v2531 = vadd.f32 %v2382, %v2530
      %v2532 = vpop.f32.mrf.mxu0
      %2533 = vmatprep.mubr.f32.mxu0 %v2126
      %2534 = vmatmul.mubr.f32.gmra.mxu0 %v2125
      %v2535 = vpop.f32.mrf.mxu0
      %v2536 = vadd.f32 %v2382, %v2535
      %v2537 = vpop.f32.mrf.mxu0
      %2538 = vmatprep.mubr.f32.mxu0 %v2130
      %2539 = vmatmul.mubr.f32.gmra.mxu0 %v2129
      %v2540 = vpop.f32.mrf.mxu0
      %v2541 = vadd.f32 %v2382, %v2540
      %v2542 = vpop.f32.mrf.mxu0
      %2543 = vmatprep.mubr.f32.mxu0 %v2134
      %2544 = vmatmul.mubr.f32.gmra.mxu0 %v2133
      %v2545 = vpop.f32.mrf.mxu0
      %v2546 = vadd.f32 %v2382, %v2545
      %v2547 = vpop.f32.mrf.mxu0
      %2548 = vmatprep.mubr.f32.mxu0 %v2138
      %2549 = vmatmul.mubr.f32.gmra.mxu0 %v2137
      %v2550 = vpop.f32.mrf.mxu0
      %v2551 = vadd.f32 %v2382, %v2550
      %v2552 = vpop.f32.mrf.mxu0
      %2553 = vmatprep.mubr.f32.mxu0 %v2142
      %2554 = vmatmul.mubr.f32.gmra.mxu0 %v2141
      %v2555 = vpop.f32.mrf.mxu0
      %v2556 = vadd.f32 %v2382, %v2555
      %v2557 = vpop.f32.mrf.mxu0
      %2558 = vmatprep.mubr.f32.mxu0 %v2146
      %2559 = vmatmul.mubr.f32.gmra.mxu0 %v2145
      %v2560 = vpop.f32.mrf.mxu0
      %v2561 = vadd.f32 %v2382, %v2560
      %v2562 = vpop.f32.mrf.mxu0
      %2563 = vmatprep.mubr.f32.mxu0 %v2150
      %2564 = vmatmul.mubr.f32.gmra.mxu0 %v2149
      %v2565 = vpop.f32.mrf.mxu0
      %v2566 = vadd.f32 %v2382, %v2565
      %v2567 = vpop.f32.mrf.mxu0
      %2568 = vmatprep.mubr.f32.mxu0 %v2154
      %2569 = vmatmul.mubr.f32.gmra.mxu0 %v2153
      %v2570 = vpop.f32.mrf.mxu0
      %v2571 = vadd.f32 %v2382, %v2570
      %v2572 = vpop.f32.mrf.mxu0
      %2573 = vmatprep.mubr.f32.mxu0 %v2158
      %2574 = vmatmul.mubr.f32.gmra.mxu0 %v2157
      %v2575 = vpop.f32.mrf.mxu0
      %v2576 = vadd.f32 %v2382, %v2575
      %v2577 = vpop.f32.mrf.mxu0
      %2578 = vmatprep.mubr.f32.mxu0 %v2162
      %2579 = vmatmul.mubr.f32.gmra.mxu0 %v2161
      %v2580 = vpop.f32.mrf.mxu0
      %v2581 = vadd.f32 %v2382, %v2580
      %v2582 = vpop.f32.mrf.mxu0
      %2583 = vmatprep.mubr.f32.mxu0 %v2166
      %2584 = vmatmul.mubr.f32.gmra.mxu0 %v2165
      %v2585 = vpop.f32.mrf.mxu0
      %v2586 = vadd.f32 %v2382, %v2585
      %v2587 = vpop.f32.mrf.mxu0
      %2588 = vmatprep.mubr.f32.mxu0 %v2170
      %2589 = vmatmul.mubr.f32.gmra.mxu0 %v2169
      %v2590 = vpop.f32.mrf.mxu0
      %v2591 = vadd.f32 %v2382, %v2590
      %v2592 = vpop.f32.mrf.mxu0
      %2593 = vmatprep.mubr.f32.mxu0 %v2174
      %2594 = vmatmul.mubr.f32.gmra.mxu0 %v2173
      %v2595 = vpop.f32.mrf.mxu0
      %v2596 = vadd.f32 %v2382, %v2595
      %v2597 = vpop.f32.mrf.mxu0
      %2598 = vmatprep.mubr.f32.mxu0 %v2178
      %2599 = vmatmul.mubr.f32.gmra.mxu0 %v2177
      %v2600 = vpop.f32.mrf.mxu0
      %v2601 = vadd.f32 %v2382, %v2600
      %v2602 = vpop.f32.mrf.mxu0
      %2603 = vmatprep.mubr.f32.mxu0 %v2182
      %2604 = vmatmul.mubr.f32.gmra.mxu0 %v2181
      %v2605 = vpop.f32.mrf.mxu0
      %v2606 = vadd.f32 %v2382, %v2605
      %v2607 = vpop.f32.mrf.mxu0
      %2608 = vmatprep.mubr.f32.mxu0 %v2186
      %2609 = vmatmul.mubr.f32.gmra.mxu0 %v2185
      %v2610 = vpop.f32.mrf.mxu0
      %v2611 = vadd.f32 %v2382, %v2610
      %v2612 = vpop.f32.mrf.mxu0
      %2613 = vmatprep.mubr.f32.mxu0 %v2190
      %2614 = vmatmul.mubr.f32.gmra.mxu0 %v2189
      %v2615 = vpop.f32.mrf.mxu0
      %v2616 = vadd.f32 %v2382, %v2615
      %v2617 = vpop.f32.mrf.mxu0
      %2618 = vmatprep.mubr.f32.mxu0 %v2194
      %2619 = vmatmul.mubr.f32.gmra.mxu0 %v2193
      %v2620 = vpop.f32.mrf.mxu0
      %v2621 = vadd.f32 %v2382, %v2620
      %v2622 = vpop.f32.mrf.mxu0
      %2623 = vmatprep.mubr.f32.mxu0 %v2198
      %2624 = vmatmul.mubr.f32.gmra.mxu0 %v2197
      %v2625 = vpop.f32.mrf.mxu0
      %v2626 = vadd.f32 %v2382, %v2625
      %v2627 = vpop.f32.mrf.mxu0
      %2628 = vmatprep.mubr.f32.mxu0 %v2202
      %2629 = vmatmul.mubr.f32.gmra.mxu0 %v2201
      %v2630 = vpop.f32.mrf.mxu0
      %v2631 = vadd.f32 %v2382, %v2630
      %v2632 = vpop.f32.mrf.mxu0
      %2633 = vmatprep.mubr.f32.mxu0 %v2206
      %2634 = vmatmul.mubr.f32.gmra.mxu0 %v2205
      %v2635 = vpop.f32.mrf.mxu0
      %v2636 = vadd.f32 %v2382, %v2635
      %v2637 = vpop.f32.mrf.mxu0
      %2638 = vmatprep.mubr.f32.mxu0 %v2210
      %2639 = vmatmul.mubr.f32.gmra.mxu0 %v2209
      %v2640 = vpop.f32.mrf.mxu0
      %v2641 = vadd.f32 %v2382, %v2640
      %v2642 = vpop.f32.mrf.mxu0
      %2643 = vmatprep.mubr.f32.mxu0 %v2214
      %2644 = vmatmul.mubr.f32.gmra.mxu0 %v2213
      %v2645 = vpop.f32.mrf.mxu0
      %v2646 = vadd.f32 %v2382, %v2645
      %v2647 = vpop.f32.mrf.mxu0
      %2648 = vmatprep.mubr.f32.mxu0 %v2218
      %2649 = vmatmul.mubr.f32.gmra.mxu0 %v2217
      %v2650 = vpop.f32.mrf.mxu0
      %v2651 = vadd.f32 %v2382, %v2650
      %v2652 = vpop.f32.mrf.mxu0
      %2653 = vmatprep.mubr.f32.mxu0 %v2222
      %2654 = vmatmul.mubr.f32.gmra.mxu0 %v2221
      %v2655 = vpop.f32.mrf.mxu0
      %v2656 = vadd.f32 %v2382, %v2655
      %v2657 = vpop.f32.mrf.mxu0
      %2658 = vmatprep.mubr.f32.mxu0 %v2226
      %2659 = vmatmul.mubr.f32.gmra.mxu0 %v2225
      %v2660 = vpop.f32.mrf.mxu0
      %v2661 = vadd.f32 %v2382, %v2660
      %v2662 = vpop.f32.mrf.mxu0
      %2663 = vmatprep.mubr.f32.mxu0 %v2230
      %2664 = vmatmul.mubr.f32.gmra.mxu0 %v2229
      %v2665 = vpop.f32.mrf.mxu0
      %v2666 = vadd.f32 %v2382, %v2665
      %v2667 = vpop.f32.mrf.mxu0
      %2668 = vmatprep.mubr.f32.mxu0 %v2234
      %2669 = vmatmul.mubr.f32.gmra.mxu0 %v2233
      %v2670 = vpop.f32.mrf.mxu0
      %v2671 = vadd.f32 %v2382, %v2670
      %v2672 = vpop.f32.mrf.mxu0
      %2673 = vmatprep.mubr.f32.mxu0 %v2238
      %2674 = vmatmul.mubr.f32.gmra.mxu0 %v2237
      %v2675 = vpop.f32.mrf.mxu0
      %v2676 = vadd.f32 %v2382, %v2675
      %v2677 = vpop.f32.mrf.mxu0
      %2678 = vmatprep.mubr.f32.mxu0 %v2242
      %2679 = vmatmul.mubr.f32.gmra.mxu0 %v2241
      %v2680 = vpop.f32.mrf.mxu0
      %v2681 = vadd.f32 %v2382, %v2680
      %v2682 = vpop.f32.mrf.mxu0
      %2683 = vmatprep.mubr.f32.mxu0 %v2246
      %2684 = vmatmul.mubr.f32.gmra.mxu0 %v2245
      %v2685 = vpop.f32.mrf.mxu0
      %v2686 = vadd.f32 %v2382, %v2685
      %v2687 = vpop.f32.mrf.mxu0
      %2688 = vmatprep.mubr.f32.mxu0 %v2250
      %2689 = vmatmul.mubr.f32.gmra.mxu0 %v2249
      %v2690 = vpop.f32.mrf.mxu0
      %v2691 = vadd.f32 %v2382, %v2690
      %v2692 = vpop.f32.mrf.mxu0
      %2693 = vmatprep.mubr.f32.mxu0 %v2254
      %2694 = vmatmul.mubr.f32.gmra.mxu0 %v2253
      %v2695 = vpop.f32.mrf.mxu0
      %v2696 = vadd.f32 %v2382, %v2695
      %v2697 = vpop.f32.mrf.mxu0
      %2698 = vmatprep.mubr.f32.mxu0 %v2258
      %2699 = vmatmul.mubr.f32.gmra.mxu0 %v2257
      %v2700 = vpop.f32.mrf.mxu0
      %v2701 = vadd.f32 %v2382, %v2700
      %v2702 = vpop.f32.mrf.mxu0
      %2703 = vmatprep.mubr.f32.mxu0 %v2262
      %2704 = vmatmul.mubr.f32.gmra.mxu0 %v2261
      %v2705 = vpop.f32.mrf.mxu0
      %v2706 = vadd.f32 %v2382, %v2705
      %v2707 = vpop.f32.mrf.mxu0
      %2708 = vmatprep.mubr.f32.mxu0 %v2266
      %2709 = vmatmul.mubr.f32.gmra.mxu0 %v2265
      %v2710 = vpop.f32.mrf.mxu0
      %v2711 = vadd.f32 %v2382, %v2710
      %v2712 = vpop.f32.mrf.mxu0
      %2713 = vmatprep.mubr.f32.mxu0 %v2270
      %2714 = vmatmul.mubr.f32.gmra.mxu0 %v2269
      %v2715 = vpop.f32.mrf.mxu0
      %v2716 = vadd.f32 %v2382, %v2715
      %v2717 = vpop.f32.mrf.mxu0
      %2718 = vmatprep.mubr.f32.mxu0 %v2274
      %2719 = vmatmul.mubr.f32.gmra.mxu0 %v2273
      %v2720 = vpop.f32.mrf.mxu0
      %v2721 = vadd.f32 %v2382, %v2720
      %v2722 = vpop.f32.mrf.mxu0
      %2723 = vmatprep.mubr.f32.mxu0 %v2278
      %2724 = vmatmul.mubr.f32.gmra.mxu0 %v2277
      %v2725 = vpop.f32.mrf.mxu0
      %v2726 = vadd.f32 %v2382, %v2725
      %v2727 = vpop.f32.mrf.mxu0
      %2728 = vmatprep.mubr.f32.mxu0 %v2282
      %2729 = vmatmul.mubr.f32.gmra.mxu0 %v2281
      %v2730 = vpop.f32.mrf.mxu0
      %v2731 = vadd.f32 %v2382, %v2730
      %v2732 = vpop.f32.mrf.mxu0
      %2733 = vmatprep.mubr.f32.mxu0 %v2286
      %2734 = vmatmul.mubr.f32.gmra.mxu0 %v2285
      %v2735 = vpop.f32.mrf.mxu0
      %v2736 = vadd.f32 %v2382, %v2735
      %v2737 = vpop.f32.mrf.mxu0
      %2738 = vmatprep.mubr.f32.mxu0 %v2290
      %2739 = vmatmul.mubr.f32.gmra.mxu0 %v2289
      %v2740 = vpop.f32.mrf.mxu0
      %v2741 = vadd.f32 %v2382, %v2740
      %v2742 = vpop.f32.mrf.mxu0
      %2743 = vmatprep.mubr.f32.mxu0 %v2294
      %2744 = vmatmul.mubr.f32.gmra.mxu0 %v2293
      %v2745 = vpop.f32.mrf.mxu0
      %v2746 = vadd.f32 %v2382, %v2745
      %v2747 = vpop.f32.mrf.mxu0
      %2748 = vmatprep.mubr.f32.mxu0 %v2298
      %2749 = vmatmul.mubr.f32.gmra.mxu0 %v2297
      %v2750 = vpop.f32.mrf.mxu0
      %v2751 = vadd.f32 %v2382, %v2750
      %v2752 = vpop.f32.mrf.mxu0
      %2753 = vmatprep.mubr.f32.mxu0 %v2302
      %2754 = vmatmul.mubr.f32.gmra.mxu0 %v2301
      %v2755 = vpop.f32.mrf.mxu0
      %v2756 = vadd.f32 %v2382, %v2755
      %v2757 = vpop.f32.mrf.mxu0
      %2758 = vmatprep.mubr.f32.mxu0 %v2306
      %2759 = vmatmul.mubr.f32.gmra.mxu0 %v2305
      %v2760 = vpop.f32.mrf.mxu0
      %v2761 = vadd.f32 %v2382, %v2760
      %v2762 = vpop.f32.mrf.mxu0
      %2763 = vmatprep.mubr.f32.mxu0 %v2310
      %2764 = vmatmul.mubr.f32.gmra.mxu0 %v2309
      %v2765 = vpop.f32.mrf.mxu0
      %v2766 = vadd.f32 %v2382, %v2765
      %v2767 = vpop.f32.mrf.mxu0
      %2768 = vdwg.mxu0
      %2769 = vmatprep.subr.mxu0 0.0
      %2770 = vmatpush1.msra.mxu0 %v2360
      %2771 = vmatprep.subr.mxu0 0.0
      %2772 = vmatpush1.msra.mxu0 %v2359
      %2773 = vmatprep.subr.mxu0 0.0
      %2774 = vmatpush1.msra.mxu0 %v2358
      %2775 = vmatprep.subr.mxu0 0.0
      %2776 = vmatpush1.msra.mxu0 %v2357
      %2777 = vmatprep.subr.mxu0 0.0
      %2778 = vmatpush1.msra.mxu0 %v2356
      %2779 = vmatprep.subr.mxu0 0.0
      %2780 = vmatpush1.msra.mxu0 %v2355
      %2781 = vmatprep.subr.mxu0 0.0
      %2782 = vmatpush1.msra.mxu0 %v2354
      %2783 = vmatprep.subr.mxu0 0.0
      %2784 = vmatpush1.msra.mxu0 %v2353
      %2785 = vmatprep.subr.mxu0 0.0
      %2786 = vmatpush1.msra.mxu0 %v2352
      %2787 = vmatprep.subr.mxu0 0.0
      %2788 = vmatpush1.msra.mxu0 %v2351
      %2789 = vmatprep.subr.mxu0 0.0
      %2790 = vmatpush1.msra.mxu0 %v2350
      %2791 = vmatprep.subr.mxu0 0.0
      %2792 = vmatpush1.msra.mxu0 %v2349
      %2793 = vmatprep.subr.mxu0 0.0
      %2794 = vmatpush1.msra.mxu0 %v2348
      %2795 = vmatprep.subr.mxu0 0.0
      %2796 = vmatpush1.msra.mxu0 %v2347
      %2797 = vmatprep.subr.mxu0 0.0
      %2798 = vmatpush1.msra.mxu0 %v2346
      %2799 = vmatprep.subr.mxu0 0.0
      %2800 = vmatpush1.msra.mxu0 %v2345
      %2801 = vmatprep.subr.mxu0 0.0
      %2802 = vmatpush2.msra.mxu0 %v2376
      %2803 = vmatprep.subr.mxu0 0.0
      %2804 = vmatpush2.msra.mxu0 %v2375
      %2805 = vmatprep.subr.mxu0 0.0
      %2806 = vmatpush2.msra.mxu0 %v2374
      %2807 = vmatprep.subr.mxu0 0.0
      %2808 = vmatpush2.msra.mxu0 %v2373
      %2809 = vmatprep.subr.mxu0 0.0
      %2810 = vmatpush2.msra.mxu0 %v2372
      %2811 = vmatprep.subr.mxu0 0.0
      %2812 = vmatpush2.msra.mxu0 %v2371
      %2813 = vmatprep.subr.mxu0 0.0
      %2814 = vmatpush2.msra.mxu0 %v2370
      %2815 = vmatprep.subr.mxu0 0.0
      %2816 = vmatpush2.msra.mxu0 %v2369
      %2817 = vmatprep.subr.mxu0 0.0
      %2818 = vmatpush2.msra.mxu0 %v2368
      %2819 = vmatprep.subr.mxu0 0.0
      %2820 = vmatpush2.msra.mxu0 %v2367
      %2821 = vmatprep.subr.mxu0 0.0
      %2822 = vmatpush2.msra.mxu0 %v2366
      %2823 = vmatprep.subr.mxu0 0.0
      %2824 = vmatpush2.msra.mxu0 %v2365
      %2825 = vmatprep.subr.mxu0 0.0
      %2826 = vmatpush2.msra.mxu0 %v2364
      %2827 = vmatprep.subr.mxu0 0.0
      %2828 = vmatpush2.msra.mxu0 %v2363
      %2829 = vmatprep.subr.mxu0 0.0
      %2830 = vmatpush2.msra.mxu0 %v2362
      %2831 = vmatprep.subr.mxu0 0.0
      %2832 = vmatpush2.msra.mxu0 %v2361
      %2833 = vmatprep.mubr.f32.mxu0 %v2060
      %2834 = vmatmul.mubr.f32.gmra.mxu0 %v2059
      %v2835 = vpop.f32.mrf.mxu0
      %v2836 = vadd.f32 %v2451, %v2835
      %v2837 = vpop.f32.mrf.mxu0
      %2838 = vmatprep.mubr.f32.mxu0 %v2064
      %2839 = vmatmul.mubr.f32.gmra.mxu0 %v2063
      %v2840 = vpop.f32.mrf.mxu0
      %v2841 = vadd.f32 %v2456, %v2840
      %v2842 = vpop.f32.mrf.mxu0
      %2843 = vmatprep.mubr.f32.mxu0 %v2068
      %2844 = vmatmul.mubr.f32.gmra.mxu0 %v2067
      %v2845 = vpop.f32.mrf.mxu0
      %v2846 = vadd.f32 %v2461, %v2845
      %v2847 = vpop.f32.mrf.mxu0
      %2848 = vmatprep.mubr.f32.mxu0 %v2072
      %2849 = vmatmul.mubr.f32.gmra.mxu0 %v2071
      %v2850 = vpop.f32.mrf.mxu0
      %v2851 = vadd.f32 %v2466, %v2850
      %v2852 = vpop.f32.mrf.mxu0
      %2853 = vmatprep.mubr.f32.mxu0 %v2076
      %2854 = vmatmul.mubr.f32.gmra.mxu0 %v2075
      %v2855 = vpop.f32.mrf.mxu0
      %v2856 = vadd.f32 %v2471, %v2855
      %v2857 = vpop.f32.mrf.mxu0
      %2858 = vmatprep.mubr.f32.mxu0 %v2080
      %2859 = vmatmul.mubr.f32.gmra.mxu0 %v2079
      %v2860 = vpop.f32.mrf.mxu0
      %v2861 = vadd.f32 %v2476, %v2860
      %v2862 = vpop.f32.mrf.mxu0
      %2863 = vmatprep.mubr.f32.mxu0 %v2084
      %2864 = vmatmul.mubr.f32.gmra.mxu0 %v2083
      %v2865 = vpop.f32.mrf.mxu0
      %v2866 = vadd.f32 %v2481, %v2865
      %v2867 = vpop.f32.mrf.mxu0
      %2868 = vmatprep.mubr.f32.mxu0 %v2088
      %2869 = vmatmul.mubr.f32.gmra.mxu0 %v2087
      %v2870 = vpop.f32.mrf.mxu0
      %v2871 = vadd.f32 %v2486, %v2870
      %v2872 = vpop.f32.mrf.mxu0
      %2873 = vmatprep.mubr.f32.mxu0 %v2092
      %2874 = vmatmul.mubr.f32.gmra.mxu0 %v2091
      %v2875 = vpop.f32.mrf.mxu0
      %v2876 = vadd.f32 %v2491, %v2875
      %v2877 = vpop.f32.mrf.mxu0
      %2878 = vmatprep.mubr.f32.mxu0 %v2096
      %2879 = vmatmul.mubr.f32.gmra.mxu0 %v2095
      %v2880 = vpop.f32.mrf.mxu0
      %v2881 = vadd.f32 %v2496, %v2880
      %v2882 = vpop.f32.mrf.mxu0
      %2883 = vmatprep.mubr.f32.mxu0 %v2100
      %2884 = vmatmul.mubr.f32.gmra.mxu0 %v2099
      %v2885 = vpop.f32.mrf.mxu0
      %v2886 = vadd.f32 %v2501, %v2885
      %v2887 = vpop.f32.mrf.mxu0
      %2888 = vmatprep.mubr.f32.mxu0 %v2104
      %2889 = vmatmul.mubr.f32.gmra.mxu0 %v2103
      %v2890 = vpop.f32.mrf.mxu0
      %v2891 = vadd.f32 %v2506, %v2890
      %v2892 = vpop.f32.mrf.mxu0
      %2893 = vmatprep.mubr.f32.mxu0 %v2108
      %2894 = vmatmul.mubr.f32.gmra.mxu0 %v2107
      %v2895 = vpop.f32.mrf.mxu0
      %v2896 = vadd.f32 %v2511, %v2895
      %v2897 = vpop.f32.mrf.mxu0
      %2898 = vmatprep.mubr.f32.mxu0 %v2112
      %2899 = vmatmul.mubr.f32.gmra.mxu0 %v2111
      %v2900 = vpop.f32.mrf.mxu0
      %v2901 = vadd.f32 %v2516, %v2900
      %v2902 = vpop.f32.mrf.mxu0
      %2903 = vmatprep.mubr.f32.mxu0 %v2116
      %2904 = vmatmul.mubr.f32.gmra.mxu0 %v2115
      %v2905 = vpop.f32.mrf.mxu0
      %v2906 = vadd.f32 %v2521, %v2905
      %v2907 = vpop.f32.mrf.mxu0
      %2908 = vmatprep.mubr.f32.mxu0 %v2120
      %2909 = vmatmul.mubr.f32.gmra.mxu0 %v2119
      %v2910 = vpop.f32.mrf.mxu0
      %v2911 = vadd.f32 %v2526, %v2910
      %v2912 = vpop.f32.mrf.mxu0
      %2913 = vmatprep.mubr.f32.mxu0 %v2124
      %2914 = vmatmul.mubr.f32.gmra.mxu0 %v2123
      %v2915 = vpop.f32.mrf.mxu0
      %v2916 = vadd.f32 %v2531, %v2915
      %v2917 = vpop.f32.mrf.mxu0
      %2918 = vmatprep.mubr.f32.mxu0 %v2128
      %2919 = vmatmul.mubr.f32.gmra.mxu0 %v2127
      %v2920 = vpop.f32.mrf.mxu0
      %v2921 = vadd.f32 %v2536, %v2920
      %v2922 = vpop.f32.mrf.mxu0
      %2923 = vmatprep.mubr.f32.mxu0 %v2132
      %2924 = vmatmul.mubr.f32.gmra.mxu0 %v2131
      %v2925 = vpop.f32.mrf.mxu0
      %v2926 = vadd.f32 %v2541, %v2925
      %v2927 = vpop.f32.mrf.mxu0
      %2928 = vmatprep.mubr.f32.mxu0 %v2136
      %2929 = vmatmul.mubr.f32.gmra.mxu0 %v2135
      %v2930 = vpop.f32.mrf.mxu0
      %v2931 = vadd.f32 %v2546, %v2930
      %v2932 = vpop.f32.mrf.mxu0
      %2933 = vmatprep.mubr.f32.mxu0 %v2140
      %2934 = vmatmul.mubr.f32.gmra.mxu0 %v2139
      %v2935 = vpop.f32.mrf.mxu0
      %v2936 = vadd.f32 %v2551, %v2935
      %v2937 = vpop.f32.mrf.mxu0
      %2938 = vmatprep.mubr.f32.mxu0 %v2144
      %2939 = vmatmul.mubr.f32.gmra.mxu0 %v2143
      %v2940 = vpop.f32.mrf.mxu0
      %v2941 = vadd.f32 %v2556, %v2940
      %v2942 = vpop.f32.mrf.mxu0
      %2943 = vmatprep.mubr.f32.mxu0 %v2148
      %2944 = vmatmul.mubr.f32.gmra.mxu0 %v2147
      %v2945 = vpop.f32.mrf.mxu0
      %v2946 = vadd.f32 %v2561, %v2945
      %v2947 = vpop.f32.mrf.mxu0
      %2948 = vmatprep.mubr.f32.mxu0 %v2152
      %2949 = vmatmul.mubr.f32.gmra.mxu0 %v2151
      %v2950 = vpop.f32.mrf.mxu0
      %v2951 = vadd.f32 %v2566, %v2950
      %v2952 = vpop.f32.mrf.mxu0
      %2953 = vmatprep.mubr.f32.mxu0 %v2156
      %2954 = vmatmul.mubr.f32.gmra.mxu0 %v2155
      %v2955 = vpop.f32.mrf.mxu0
      %v2956 = vadd.f32 %v2571, %v2955
      %v2957 = vpop.f32.mrf.mxu0
      %2958 = vmatprep.mubr.f32.mxu0 %v2160
      %2959 = vmatmul.mubr.f32.gmra.mxu0 %v2159
      %v2960 = vpop.f32.mrf.mxu0
      %v2961 = vadd.f32 %v2576, %v2960
      %v2962 = vpop.f32.mrf.mxu0
      %2963 = vmatprep.mubr.f32.mxu0 %v2164
      %2964 = vmatmul.mubr.f32.gmra.mxu0 %v2163
      %v2965 = vpop.f32.mrf.mxu0
      %v2966 = vadd.f32 %v2581, %v2965
      %v2967 = vpop.f32.mrf.mxu0
      %2968 = vmatprep.mubr.f32.mxu0 %v2168
      %2969 = vmatmul.mubr.f32.gmra.mxu0 %v2167
      %v2970 = vpop.f32.mrf.mxu0
      %v2971 = vadd.f32 %v2586, %v2970
      %v2972 = vpop.f32.mrf.mxu0
      %2973 = vmatprep.mubr.f32.mxu0 %v2172
      %2974 = vmatmul.mubr.f32.gmra.mxu0 %v2171
      %v2975 = vpop.f32.mrf.mxu0
      %v2976 = vadd.f32 %v2591, %v2975
      %v2977 = vpop.f32.mrf.mxu0
      %2978 = vmatprep.mubr.f32.mxu0 %v2176
      %2979 = vmatmul.mubr.f32.gmra.mxu0 %v2175
      %v2980 = vpop.f32.mrf.mxu0
      %v2981 = vadd.f32 %v2596, %v2980
      %v2982 = vpop.f32.mrf.mxu0
      %2983 = vmatprep.mubr.f32.mxu0 %v2180
      %2984 = vmatmul.mubr.f32.gmra.mxu0 %v2179
      %v2985 = vpop.f32.mrf.mxu0
      %v2986 = vadd.f32 %v2601, %v2985
      %v2987 = vpop.f32.mrf.mxu0
      %2988 = vmatprep.mubr.f32.mxu0 %v2184
      %2989 = vmatmul.mubr.f32.gmra.mxu0 %v2183
      %v2990 = vpop.f32.mrf.mxu0
      %v2991 = vadd.f32 %v2606, %v2990
      %v2992 = vpop.f32.mrf.mxu0
      %2993 = vmatprep.mubr.f32.mxu0 %v2188
      %2994 = vmatmul.mubr.f32.gmra.mxu0 %v2187
      %v2995 = vpop.f32.mrf.mxu0
      %v2996 = vadd.f32 %v2611, %v2995
      %v2997 = vpop.f32.mrf.mxu0
      %2998 = vmatprep.mubr.f32.mxu0 %v2192
      %2999 = vmatmul.mubr.f32.gmra.mxu0 %v2191
      %v3000 = vpop.f32.mrf.mxu0
      %v3001 = vadd.f32 %v2616, %v3000
      %v3002 = vpop.f32.mrf.mxu0
      %3003 = vmatprep.mubr.f32.mxu0 %v2196
      %3004 = vmatmul.mubr.f32.gmra.mxu0 %v2195
      %v3005 = vpop.f32.mrf.mxu0
      %v3006 = vadd.f32 %v2621, %v3005
      %v3007 = vpop.f32.mrf.mxu0
      %3008 = vmatprep.mubr.f32.mxu0 %v2200
      %3009 = vmatmul.mubr.f32.gmra.mxu0 %v2199
      %v3010 = vpop.f32.mrf.mxu0
      %v3011 = vadd.f32 %v2626, %v3010
      %v3012 = vpop.f32.mrf.mxu0
      %3013 = vmatprep.mubr.f32.mxu0 %v2204
      %3014 = vmatmul.mubr.f32.gmra.mxu0 %v2203
      %v3015 = vpop.f32.mrf.mxu0
      %v3016 = vadd.f32 %v2631, %v3015
      %v3017 = vpop.f32.mrf.mxu0
      %3018 = vmatprep.mubr.f32.mxu0 %v2208
      %3019 = vmatmul.mubr.f32.gmra.mxu0 %v2207
      %v3020 = vpop.f32.mrf.mxu0
      %v3021 = vadd.f32 %v2636, %v3020
      %v3022 = vpop.f32.mrf.mxu0
      %3023 = vmatprep.mubr.f32.mxu0 %v2212
      %3024 = vmatmul.mubr.f32.gmra.mxu0 %v2211
      %v3025 = vpop.f32.mrf.mxu0
      %v3026 = vadd.f32 %v2641, %v3025
      %v3027 = vpop.f32.mrf.mxu0
      %3028 = vmatprep.mubr.f32.mxu0 %v2216
      %3029 = vmatmul.mubr.f32.gmra.mxu0 %v2215
      %v3030 = vpop.f32.mrf.mxu0
      %v3031 = vadd.f32 %v2646, %v3030
      %v3032 = vpop.f32.mrf.mxu0
      %3033 = vmatprep.mubr.f32.mxu0 %v2220
      %3034 = vmatmul.mubr.f32.gmra.mxu0 %v2219
      %v3035 = vpop.f32.mrf.mxu0
      %v3036 = vadd.f32 %v2651, %v3035
      %v3037 = vpop.f32.mrf.mxu0
      %3038 = vmatprep.mubr.f32.mxu0 %v2224
      %3039 = vmatmul.mubr.f32.gmra.mxu0 %v2223
      %v3040 = vpop.f32.mrf.mxu0
      %v3041 = vadd.f32 %v2656, %v3040
      %v3042 = vpop.f32.mrf.mxu0
      %3043 = vmatprep.mubr.f32.mxu0 %v2228
      %3044 = vmatmul.mubr.f32.gmra.mxu0 %v2227
      %v3045 = vpop.f32.mrf.mxu0
      %v3046 = vadd.f32 %v2661, %v3045
      %v3047 = vpop.f32.mrf.mxu0
      %3048 = vmatprep.mubr.f32.mxu0 %v2232
      %3049 = vmatmul.mubr.f32.gmra.mxu0 %v2231
      %v3050 = vpop.f32.mrf.mxu0
      %v3051 = vadd.f32 %v2666, %v3050
      %v3052 = vpop.f32.mrf.mxu0
      %3053 = vmatprep.mubr.f32.mxu0 %v2236
      %3054 = vmatmul.mubr.f32.gmra.mxu0 %v2235
      %v3055 = vpop.f32.mrf.mxu0
      %v3056 = vadd.f32 %v2671, %v3055
      %v3057 = vpop.f32.mrf.mxu0
      %3058 = vmatprep.mubr.f32.mxu0 %v2240
      %3059 = vmatmul.mubr.f32.gmra.mxu0 %v2239
      %v3060 = vpop.f32.mrf.mxu0
      %v3061 = vadd.f32 %v2676, %v3060
      %v3062 = vpop.f32.mrf.mxu0
      %3063 = vmatprep.mubr.f32.mxu0 %v2244
      %3064 = vmatmul.mubr.f32.gmra.mxu0 %v2243
      %v3065 = vpop.f32.mrf.mxu0
      %v3066 = vadd.f32 %v2681, %v3065
      %v3067 = vpop.f32.mrf.mxu0
      %3068 = vmatprep.mubr.f32.mxu0 %v2248
      %3069 = vmatmul.mubr.f32.gmra.mxu0 %v2247
      %v3070 = vpop.f32.mrf.mxu0
      %v3071 = vadd.f32 %v2686, %v3070
      %v3072 = vpop.f32.mrf.mxu0
      %3073 = vmatprep.mubr.f32.mxu0 %v2252
      %3074 = vmatmul.mubr.f32.gmra.mxu0 %v2251
      %v3075 = vpop.f32.mrf.mxu0
      %v3076 = vadd.f32 %v2691, %v3075
      %v3077 = vpop.f32.mrf.mxu0
      %3078 = vmatprep.mubr.f32.mxu0 %v2256
      %3079 = vmatmul.mubr.f32.gmra.mxu0 %v2255
      %v3080 = vpop.f32.mrf.mxu0
      %v3081 = vadd.f32 %v2696, %v3080
      %v3082 = vpop.f32.mrf.mxu0
      %3083 = vmatprep.mubr.f32.mxu0 %v2260
      %3084 = vmatmul.mubr.f32.gmra.mxu0 %v2259
      %v3085 = vpop.f32.mrf.mxu0
      %v3086 = vadd.f32 %v2701, %v3085
      %v3087 = vpop.f32.mrf.mxu0
      %3088 = vmatprep.mubr.f32.mxu0 %v2264
      %3089 = vmatmul.mubr.f32.gmra.mxu0 %v2263
      %v3090 = vpop.f32.mrf.mxu0
      %v3091 = vadd.f32 %v2706, %v3090
      %v3092 = vpop.f32.mrf.mxu0
      %3093 = vmatprep.mubr.f32.mxu0 %v2268
      %3094 = vmatmul.mubr.f32.gmra.mxu0 %v2267
      %v3095 = vpop.f32.mrf.mxu0
      %v3096 = vadd.f32 %v2711, %v3095
      %v3097 = vpop.f32.mrf.mxu0
      %3098 = vmatprep.mubr.f32.mxu0 %v2272
      %3099 = vmatmul.mubr.f32.gmra.mxu0 %v2271
      %v3100 = vpop.f32.mrf.mxu0
      %v3101 = vadd.f32 %v2716, %v3100
      %v3102 = vpop.f32.mrf.mxu0
      %3103 = vmatprep.mubr.f32.mxu0 %v2276
      %3104 = vmatmul.mubr.f32.gmra.mxu0 %v2275
      %v3105 = vpop.f32.mrf.mxu0
      %v3106 = vadd.f32 %v2721, %v3105
      %v3107 = vpop.f32.mrf.mxu0
      %3108 = vmatprep.mubr.f32.mxu0 %v2280
      %3109 = vmatmul.mubr.f32.gmra.mxu0 %v2279
      %v3110 = vpop.f32.mrf.mxu0
      %v3111 = vadd.f32 %v2726, %v3110
      %v3112 = vpop.f32.mrf.mxu0
      %3113 = vmatprep.mubr.f32.mxu0 %v2284
      %3114 = vmatmul.mubr.f32.gmra.mxu0 %v2283
      %v3115 = vpop.f32.mrf.mxu0
      %v3116 = vadd.f32 %v2731, %v3115
      %v3117 = vpop.f32.mrf.mxu0
      %3118 = vmatprep.mubr.f32.mxu0 %v2288
      %3119 = vmatmul.mubr.f32.gmra.mxu0 %v2287
      %v3120 = vpop.f32.mrf.mxu0
      %v3121 = vadd.f32 %v2736, %v3120
      %v3122 = vpop.f32.mrf.mxu0
      %3123 = vmatprep.mubr.f32.mxu0 %v2292
      %3124 = vmatmul.mubr.f32.gmra.mxu0 %v2291
      %v3125 = vpop.f32.mrf.mxu0
      %v3126 = vadd.f32 %v2741, %v3125
      %v3127 = vpop.f32.mrf.mxu0
      %3128 = vmatprep.mubr.f32.mxu0 %v2296
      %3129 = vmatmul.mubr.f32.gmra.mxu0 %v2295
      %v3130 = vpop.f32.mrf.mxu0
      %v3131 = vadd.f32 %v2746, %v3130
      %v3132 = vpop.f32.mrf.mxu0
      %3133 = vmatprep.mubr.f32.mxu0 %v2300
      %3134 = vmatmul.mubr.f32.gmra.mxu0 %v2299
      %v3135 = vpop.f32.mrf.mxu0
      %v3136 = vadd.f32 %v2751, %v3135
      %v3137 = vpop.f32.mrf.mxu0
      %3138 = vmatprep.mubr.f32.mxu0 %v2304
      %3139 = vmatmul.mubr.f32.gmra.mxu0 %v2303
      %v3140 = vpop.f32.mrf.mxu0
      %v3141 = vadd.f32 %v2756, %v3140
      %v3142 = vpop.f32.mrf.mxu0
      %3143 = vmatprep.mubr.f32.mxu0 %v2308
      %3144 = vmatmul.mubr.f32.gmra.mxu0 %v2307
      %v3145 = vpop.f32.mrf.mxu0
      %v3146 = vadd.f32 %v2761, %v3145
      %v3147 = vpop.f32.mrf.mxu0
      %3148 = vmatprep.mubr.f32.mxu0 %v2312
      %3149 = vmatmul.mubr.f32.gmra.mxu0 %v2311
      %v3150 = vpop.f32.mrf.mxu0
      %v3151 = vadd.f32 %v2766, %v3150
      %v3152 = vpop.f32.mrf.mxu0
      %3153 = vdwg.mxu0
      %vm3154 = vcmp.gt.f32.partialorder %v2836, 0.0
      %vm3155 = vcmp.gt.f32.partialorder %v2841, 0.0
      %vm3156 = vcmp.gt.f32.partialorder %v2846, 0.0
      %vm3157 = vcmp.gt.f32.partialorder %v2851, 0.0
      %vm3158 = vcmp.gt.f32.partialorder %v2856, 0.0
      %vm3159 = vcmp.gt.f32.partialorder %v2861, 0.0
      %vm3160 = vcmp.gt.f32.partialorder %v2866, 0.0
      %vm3161 = vcmp.gt.f32.partialorder %v2871, 0.0
      %vm3162 = vcmp.gt.f32.partialorder %v2876, 0.0
      %vm3163 = vcmp.gt.f32.partialorder %v2881, 0.0
      %vm3164 = vcmp.gt.f32.partialorder %v2886, 0.0
      %vm3165 = vcmp.gt.f32.partialorder %v2891, 0.0
      %vm3166 = vcmp.gt.f32.partialorder %v2896, 0.0
      %vm3167 = vcmp.gt.f32.partialorder %v2901, 0.0
      %vm3168 = vcmp.gt.f32.partialorder %v2906, 0.0
      %vm3169 = vcmp.gt.f32.partialorder %v2911, 0.0
      %vm3170 = vcmp.gt.f32.partialorder %v2916, 0.0
      %vm3171 = vcmp.gt.f32.partialorder %v2921, 0.0
      %vm3172 = vcmp.gt.f32.partialorder %v2926, 0.0
      %vm3173 = vcmp.gt.f32.partialorder %v2931, 0.0
      %vm3174 = vcmp.gt.f32.partialorder %v2936, 0.0
      %vm3175 = vcmp.gt.f32.partialorder %v2941, 0.0
      %vm3176 = vcmp.gt.f32.partialorder %v2946, 0.0
      %vm3177 = vcmp.gt.f32.partialorder %v2951, 0.0
      %vm3178 = vcmp.gt.f32.partialorder %v2956, 0.0
      %vm3179 = vcmp.gt.f32.partialorder %v2961, 0.0
      %vm3180 = vcmp.gt.f32.partialorder %v2966, 0.0
      %vm3181 = vcmp.gt.f32.partialorder %v2971, 0.0
      %vm3182 = vcmp.gt.f32.partialorder %v2976, 0.0
      %vm3183 = vcmp.gt.f32.partialorder %v2981, 0.0
      %vm3184 = vcmp.gt.f32.partialorder %v2986, 0.0
      %vm3185 = vcmp.gt.f32.partialorder %v2991, 0.0
      %vm3186 = vcmp.gt.f32.partialorder %v2996, 0.0
      %vm3187 = vcmp.gt.f32.partialorder %v3001, 0.0
      %vm3188 = vcmp.gt.f32.partialorder %v3006, 0.0
      %vm3189 = vcmp.gt.f32.partialorder %v3011, 0.0
      %vm3190 = vcmp.gt.f32.partialorder %v3016, 0.0
      %vm3191 = vcmp.gt.f32.partialorder %v3021, 0.0
      %vm3192 = vcmp.gt.f32.partialorder %v3026, 0.0
      %vm3193 = vcmp.gt.f32.partialorder %v3031, 0.0
      %vm3194 = vcmp.gt.f32.partialorder %v3036, 0.0
      %vm3195 = vcmp.gt.f32.partialorder %v3041, 0.0
      %vm3196 = vcmp.gt.f32.partialorder %v3046, 0.0
      %vm3197 = vcmp.gt.f32.partialorder %v3051, 0.0
      %vm3198 = vcmp.gt.f32.partialorder %v3056, 0.0
      %vm3199 = vcmp.gt.f32.partialorder %v3061, 0.0
      %vm3200 = vcmp.gt.f32.partialorder %v3066, 0.0
      %vm3201 = vcmp.gt.f32.partialorder %v3071, 0.0
      %vm3202 = vcmp.gt.f32.partialorder %v3076, 0.0
      %vm3203 = vcmp.gt.f32.partialorder %v3081, 0.0
      %vm3204 = vcmp.gt.f32.partialorder %v3086, 0.0
      %vm3205 = vcmp.gt.f32.partialorder %v3091, 0.0
      %vm3206 = vcmp.gt.f32.partialorder %v3096, 0.0
      %vm3207 = vcmp.gt.f32.partialorder %v3101, 0.0
      %vm3208 = vcmp.gt.f32.partialorder %v3106, 0.0
      %vm3209 = vcmp.gt.f32.partialorder %v3111, 0.0
      %vm3210 = vcmp.gt.f32.partialorder %v3116, 0.0
      %vm3211 = vcmp.gt.f32.partialorder %v3121, 0.0
      %vm3212 = vcmp.gt.f32.partialorder %v3126, 0.0
      %vm3213 = vcmp.gt.f32.partialorder %v3131, 0.0
      %vm3214 = vcmp.gt.f32.partialorder %v3136, 0.0
      %vm3215 = vcmp.gt.f32.partialorder %v3141, 0.0
      %vm3216 = vcmp.gt.f32.partialorder %v3146, 0.0
      %vm3217 = vcmp.gt.f32.partialorder %v3151, 0.0
      %v3218 = vmul.f32 %v2836, 0.01
      %v3219 = vmul.f32 %v2841, 0.01
      %v3220 = vmul.f32 %v2846, 0.01
      %v3221 = vmul.f32 %v2851, 0.01
      %v3222 = vmul.f32 %v2856, 0.01
      %v3223 = vmul.f32 %v2861, 0.01
      %v3224 = vmul.f32 %v2866, 0.01
      %v3225 = vmul.f32 %v2871, 0.01
      %v3226 = vmul.f32 %v2876, 0.01
      %v3227 = vmul.f32 %v2881, 0.01
      %v3228 = vmul.f32 %v2886, 0.01
      %v3229 = vmul.f32 %v2891, 0.01
      %v3230 = vmul.f32 %v2896, 0.01
      %v3231 = vmul.f32 %v2901, 0.01
      %v3232 = vmul.f32 %v2906, 0.01
      %v3233 = vmul.f32 %v2911, 0.01
      %v3234 = vmul.f32 %v2916, 0.01
      %v3235 = vmul.f32 %v2921, 0.01
      %v3236 = vmul.f32 %v2926, 0.01
      %v3237 = vmul.f32 %v2931, 0.01
      %v3238 = vmul.f32 %v2936, 0.01
      %v3239 = vmul.f32 %v2941, 0.01
      %v3240 = vmul.f32 %v2946, 0.01
      %v3241 = vmul.f32 %v2951, 0.01
      %v3242 = vmul.f32 %v2956, 0.01
      %v3243 = vmul.f32 %v2961, 0.01
      %v3244 = vmul.f32 %v2966, 0.01
      %v3245 = vmul.f32 %v2971, 0.01
      %v3246 = vmul.f32 %v2976, 0.01
      %v3247 = vmul.f32 %v2981, 0.01
      %v3248 = vmul.f32 %v2986, 0.01
      %v3249 = vmul.f32 %v2991, 0.01
      %v3250 = vmul.f32 %v2996, 0.01
      %v3251 = vmul.f32 %v3001, 0.01
      %v3252 = vmul.f32 %v3006, 0.01
      %v3253 = vmul.f32 %v3011, 0.01
      %v3254 = vmul.f32 %v3016, 0.01
      %v3255 = vmul.f32 %v3021, 0.01
      %v3256 = vmul.f32 %v3026, 0.01
      %v3257 = vmul.f32 %v3031, 0.01
      %v3258 = vmul.f32 %v3036, 0.01
      %v3259 = vmul.f32 %v3041, 0.01
      %v3260 = vmul.f32 %v3046, 0.01
      %v3261 = vmul.f32 %v3051, 0.01
      %v3262 = vmul.f32 %v3056, 0.01
      %v3263 = vmul.f32 %v3061, 0.01
      %v3264 = vmul.f32 %v3066, 0.01
      %v3265 = vmul.f32 %v3071, 0.01
      %v3266 = vmul.f32 %v3076, 0.01
      %v3267 = vmul.f32 %v3081, 0.01
      %v3268 = vmul.f32 %v3086, 0.01
      %v3269 = vmul.f32 %v3091, 0.01
      %v3270 = vmul.f32 %v3096, 0.01
      %v3271 = vmul.f32 %v3101, 0.01
      %v3272 = vmul.f32 %v3106, 0.01
      %v3273 = vmul.f32 %v3111, 0.01
      %v3274 = vmul.f32 %v3116, 0.01
      %v3275 = vmul.f32 %v3121, 0.01
      %v3276 = vmul.f32 %v3126, 0.01
      %v3277 = vmul.f32 %v3131, 0.01
      %v3278 = vmul.f32 %v3136, 0.01
      %v3279 = vmul.f32 %v3141, 0.01
      %v3280 = vmul.f32 %v3146, 0.01
      %v3281 = vmul.f32 %v3151, 0.01
      %v3282 = vsel %vm3154, %v2836, %v3218
      %v3283 = vsel %vm3155, %v2841, %v3219
      %v3284 = vsel %vm3156, %v2846, %v3220
      %v3285 = vsel %vm3157, %v2851, %v3221
      %v3286 = vsel %vm3158, %v2856, %v3222
      %v3287 = vsel %vm3159, %v2861, %v3223
      %v3288 = vsel %vm3160, %v2866, %v3224
      %v3289 = vsel %vm3161, %v2871, %v3225
      %v3290 = vsel %vm3162, %v2876, %v3226
      %v3291 = vsel %vm3163, %v2881, %v3227
      %v3292 = vsel %vm3164, %v2886, %v3228
      %v3293 = vsel %vm3165, %v2891, %v3229
      %v3294 = vsel %vm3166, %v2896, %v3230
      %v3295 = vsel %vm3167, %v2901, %v3231
      %v3296 = vsel %vm3168, %v2906, %v3232
      %v3297 = vsel %vm3169, %v2911, %v3233
      %v3298 = vsel %vm3170, %v2916, %v3234
      %v3299 = vsel %vm3171, %v2921, %v3235
      %v3300 = vsel %vm3172, %v2926, %v3236
      %v3301 = vsel %vm3173, %v2931, %v3237
      %v3302 = vsel %vm3174, %v2936, %v3238
      %v3303 = vsel %vm3175, %v2941, %v3239
      %v3304 = vsel %vm3176, %v2946, %v3240
      %v3305 = vsel %vm3177, %v2951, %v3241
      %v3306 = vsel %vm3178, %v2956, %v3242
      %v3307 = vsel %vm3179, %v2961, %v3243
      %v3308 = vsel %vm3180, %v2966, %v3244
      %v3309 = vsel %vm3181, %v2971, %v3245
      %v3310 = vsel %vm3182, %v2976, %v3246
      %v3311 = vsel %vm3183, %v2981, %v3247
      %v3312 = vsel %vm3184, %v2986, %v3248
      %v3313 = vsel %vm3185, %v2991, %v3249
      %v3314 = vsel %vm3186, %v2996, %v3250
      %v3315 = vsel %vm3187, %v3001, %v3251
      %v3316 = vsel %vm3188, %v3006, %v3252
      %v3317 = vsel %vm3189, %v3011, %v3253
      %v3318 = vsel %vm3190, %v3016, %v3254
      %v3319 = vsel %vm3191, %v3021, %v3255
      %v3320 = vsel %vm3192, %v3026, %v3256
      %v3321 = vsel %vm3193, %v3031, %v3257
      %v3322 = vsel %vm3194, %v3036, %v3258
      %v3323 = vsel %vm3195, %v3041, %v3259
      %v3324 = vsel %vm3196, %v3046, %v3260
      %v3325 = vsel %vm3197, %v3051, %v3261
      %v3326 = vsel %vm3198, %v3056, %v3262
      %v3327 = vsel %vm3199, %v3061, %v3263
      %v3328 = vsel %vm3200, %v3066, %v3264
      %v3329 = vsel %vm3201, %v3071, %v3265
      %v3330 = vsel %vm3202, %v3076, %v3266
      %v3331 = vsel %vm3203, %v3081, %v3267
      %v3332 = vsel %vm3204, %v3086, %v3268
      %v3333 = vsel %vm3205, %v3091, %v3269
      %v3334 = vsel %vm3206, %v3096, %v3270
      %v3335 = vsel %vm3207, %v3101, %v3271
      %v3336 = vsel %vm3208, %v3106, %v3272
      %v3337 = vsel %vm3209, %v3111, %v3273
      %v3338 = vsel %vm3210, %v3116, %v3274
      %v3339 = vsel %vm3211, %v3121, %v3275
      %v3340 = vsel %vm3212, %v3126, %v3276
      %v3341 = vsel %vm3213, %v3131, %v3277
      %v3342 = vsel %vm3214, %v3136, %v3278
      %v3343 = vsel %vm3215, %v3141, %v3279
      %v3344 = vsel %vm3216, %v3146, %v3280
      %v3345 = vsel %vm3217, %v3151, %v3281
      %v3346 = vld [vmem:[%s5] sm:$0xff]
      %v3347 = vld [vmem:[%s5 + $0x8] sm:$0xff]
      %v3348 = vld [vmem:[%s5 + $0x10] sm:$0xff]
      %v3349 = vld [vmem:[%s5 + $0x18] sm:$0xff]
      %v3350 = vld [vmem:[%s5 + $0x20] sm:$0xff]
      %v3351 = vld [vmem:[%s5 + $0x28] sm:$0xff]
      %v3352 = vld [vmem:[%s5 + $0x30] sm:$0xff]
      %v3353 = vld [vmem:[%s5 + $0x38] sm:$0xff]
      %v3354 = vld [vmem:[%s5 + $0x40] sm:$0xff]
      %v3355 = vld [vmem:[%s5 + $0x48] sm:$0xff]
      %v3356 = vld [vmem:[%s5 + $0x50] sm:$0xff]
      %v3357 = vld [vmem:[%s5 + $0x58] sm:$0xff]
      %v3358 = vld [vmem:[%s5 + $0x60] sm:$0xff]
      %v3359 = vld [vmem:[%s5 + $0x68] sm:$0xff]
      %v3360 = vld [vmem:[%s5 + $0x70] sm:$0xff]
      %v3361 = vld [vmem:[%s5 + $0x78] sm:$0xff]
      %v3362 = vld [vmem:[%s6] sm:$0x1]
      %v3364 = vlaneseq
      %v3365 = vshrl.u32 %v3364, 7
      %v3366 = vsub.s32 0, %v3365
      %v3367 = vrot.slane %v3362, %v3366
      %3369 = vmatprep.subr.mxu0 0.0
      %3370 = vmatpush1.msra.mxu0 %v3361
      %3371 = vmatprep.subr.mxu0 0.0
      %3372 = vmatpush1.msra.mxu0 %v3360
      %3373 = vmatprep.subr.mxu0 0.0
      %3374 = vmatpush1.msra.mxu0 %v3359
      %3375 = vmatprep.subr.mxu0 0.0
      %3376 = vmatpush1.msra.mxu0 %v3358
      %3377 = vmatprep.subr.mxu0 0.0
      %3378 = vmatpush1.msra.mxu0 %v3357
      %3379 = vmatprep.subr.mxu0 0.0
      %3380 = vmatpush1.msra.mxu0 %v3356
      %3381 = vmatprep.subr.mxu0 0.0
      %3382 = vmatpush1.msra.mxu0 %v3355
      %3383 = vmatprep.subr.mxu0 0.0
      %3384 = vmatpush1.msra.mxu0 %v3354
      %3385 = vmatprep.subr.mxu0 0.0
      %3386 = vmatpush1.msra.mxu0 %v3353
      %3387 = vmatprep.subr.mxu0 0.0
      %3388 = vmatpush1.msra.mxu0 %v3352
      %3389 = vmatprep.subr.mxu0 0.0
      %3390 = vmatpush1.msra.mxu0 %v3351
      %3391 = vmatprep.subr.mxu0 0.0
      %3392 = vmatpush1.msra.mxu0 %v3350
      %3393 = vmatprep.subr.mxu0 0.0
      %3394 = vmatpush1.msra.mxu0 %v3349
      %3395 = vmatprep.subr.mxu0 0.0
      %3396 = vmatpush1.msra.mxu0 %v3348
      %3397 = vmatprep.subr.mxu0 0.0
      %3398 = vmatpush1.msra.mxu0 %v3347
      %3399 = vmatprep.subr.mxu0 0.0
      %3400 = vmatpush1.msra.mxu0 %v3346
      %3401 = vmatprep.subr.mxu0 0.0
      %3402 = vmatpush2.msra.mxu0 0.0
      %3403 = vmatprep.subr.mxu0 0.0
      %3404 = vmatpush2.msra.mxu0 0.0
      %3405 = vmatprep.subr.mxu0 0.0
      %3406 = vmatpush2.msra.mxu0 0.0
      %3407 = vmatprep.subr.mxu0 0.0
      %3408 = vmatpush2.msra.mxu0 0.0
      %3409 = vmatprep.subr.mxu0 0.0
      %3410 = vmatpush2.msra.mxu0 0.0
      %3411 = vmatprep.subr.mxu0 0.0
      %3412 = vmatpush2.msra.mxu0 0.0
      %3413 = vmatprep.subr.mxu0 0.0
      %3414 = vmatpush2.msra.mxu0 0.0
      %3415 = vmatprep.subr.mxu0 0.0
      %3416 = vmatpush2.msra.mxu0 0.0
      %3417 = vmatprep.subr.mxu0 0.0
      %3418 = vmatpush2.msra.mxu0 0.0
      %3419 = vmatprep.subr.mxu0 0.0
      %3420 = vmatpush2.msra.mxu0 0.0
      %3421 = vmatprep.subr.mxu0 0.0
      %3422 = vmatpush2.msra.mxu0 0.0
      %3423 = vmatprep.subr.mxu0 0.0
      %3424 = vmatpush2.msra.mxu0 0.0
      %3425 = vmatprep.subr.mxu0 0.0
      %3426 = vmatpush2.msra.mxu0 0.0
      %3427 = vmatprep.subr.mxu0 0.0
      %3428 = vmatpush2.msra.mxu0 0.0
      %3429 = vmatprep.subr.mxu0 0.0
      %3430 = vmatpush2.msra.mxu0 0.0
      %3431 = vmatprep.subr.mxu0 0.0
      %3432 = vmatpush2.msra.mxu0 0.0
      %3433 = vmatprep.mubr.f32.mxu0 0.0
      %3434 = vmatmul.mubr.f32.gmra.mxu0 %v3282
      %v3435 = vpop.f32.mrf.mxu0
      %v3436 = vadd.f32 %v3367, %v3435
      %v3437 = vpop.f32.mrf.mxu0
      %3438 = vmatprep.mubr.f32.mxu0 0.0
      %3439 = vmatmul.mubr.f32.gmra.mxu0 %v3283
      %v3440 = vpop.f32.mrf.mxu0
      %v3441 = vadd.f32 %v3367, %v3440
      %v3442 = vpop.f32.mrf.mxu0
      %3443 = vmatprep.mubr.f32.mxu0 0.0
      %3444 = vmatmul.mubr.f32.gmra.mxu0 %v3284
      %v3445 = vpop.f32.mrf.mxu0
      %v3446 = vadd.f32 %v3367, %v3445
      %v3447 = vpop.f32.mrf.mxu0
      %3448 = vmatprep.mubr.f32.mxu0 0.0
      %3449 = vmatmul.mubr.f32.gmra.mxu0 %v3285
      %v3450 = vpop.f32.mrf.mxu0
      %v3451 = vadd.f32 %v3367, %v3450
      %v3452 = vpop.f32.mrf.mxu0
      %3453 = vmatprep.mubr.f32.mxu0 0.0
      %3454 = vmatmul.mubr.f32.gmra.mxu0 %v3286
      %v3455 = vpop.f32.mrf.mxu0
      %v3456 = vadd.f32 %v3367, %v3455
      %v3457 = vpop.f32.mrf.mxu0
      %3458 = vmatprep.mubr.f32.mxu0 0.0
      %3459 = vmatmul.mubr.f32.gmra.mxu0 %v3287
      %v3460 = vpop.f32.mrf.mxu0
      %v3461 = vadd.f32 %v3367, %v3460
      %v3462 = vpop.f32.mrf.mxu0
      %3463 = vmatprep.mubr.f32.mxu0 0.0
      %3464 = vmatmul.mubr.f32.gmra.mxu0 %v3288
      %v3465 = vpop.f32.mrf.mxu0
      %v3466 = vadd.f32 %v3367, %v3465
      %v3467 = vpop.f32.mrf.mxu0
      %3468 = vmatprep.mubr.f32.mxu0 0.0
      %3469 = vmatmul.mubr.f32.gmra.mxu0 %v3289
      %v3470 = vpop.f32.mrf.mxu0
      %v3471 = vadd.f32 %v3367, %v3470
      %v3472 = vpop.f32.mrf.mxu0
      %3473 = vmatprep.mubr.f32.mxu0 0.0
      %3474 = vmatmul.mubr.f32.gmra.mxu0 %v3290
      %v3475 = vpop.f32.mrf.mxu0
      %v3476 = vadd.f32 %v3367, %v3475
      %v3477 = vpop.f32.mrf.mxu0
      %3478 = vmatprep.mubr.f32.mxu0 0.0
      %3479 = vmatmul.mubr.f32.gmra.mxu0 %v3291
      %v3480 = vpop.f32.mrf.mxu0
      %v3481 = vadd.f32 %v3367, %v3480
      %v3482 = vpop.f32.mrf.mxu0
      %3483 = vmatprep.mubr.f32.mxu0 0.0
      %3484 = vmatmul.mubr.f32.gmra.mxu0 %v3292
      %v3485 = vpop.f32.mrf.mxu0
      %v3486 = vadd.f32 %v3367, %v3485
      %v3487 = vpop.f32.mrf.mxu0
      %3488 = vmatprep.mubr.f32.mxu0 0.0
      %3489 = vmatmul.mubr.f32.gmra.mxu0 %v3293
      %v3490 = vpop.f32.mrf.mxu0
      %v3491 = vadd.f32 %v3367, %v3490
      %v3492 = vpop.f32.mrf.mxu0
      %3493 = vmatprep.mubr.f32.mxu0 0.0
      %3494 = vmatmul.mubr.f32.gmra.mxu0 %v3294
      %v3495 = vpop.f32.mrf.mxu0
      %v3496 = vadd.f32 %v3367, %v3495
      %v3497 = vpop.f32.mrf.mxu0
      %3498 = vmatprep.mubr.f32.mxu0 0.0
      %3499 = vmatmul.mubr.f32.gmra.mxu0 %v3295
      %v3500 = vpop.f32.mrf.mxu0
      %v3501 = vadd.f32 %v3367, %v3500
      %v3502 = vpop.f32.mrf.mxu0
      %3503 = vmatprep.mubr.f32.mxu0 0.0
      %3504 = vmatmul.mubr.f32.gmra.mxu0 %v3296
      %v3505 = vpop.f32.mrf.mxu0
      %v3506 = vadd.f32 %v3367, %v3505
      %v3507 = vpop.f32.mrf.mxu0
      %3508 = vmatprep.mubr.f32.mxu0 0.0
      %3509 = vmatmul.mubr.f32.gmra.mxu0 %v3297
      %v3510 = vpop.f32.mrf.mxu0
      %v3511 = vadd.f32 %v3367, %v3510
      %v3512 = vpop.f32.mrf.mxu0
      %3513 = vmatprep.mubr.f32.mxu0 0.0
      %3514 = vmatmul.mubr.f32.gmra.mxu0 %v3298
      %v3515 = vpop.f32.mrf.mxu0
      %v3516 = vadd.f32 %v3367, %v3515
      %v3517 = vpop.f32.mrf.mxu0
      %3518 = vmatprep.mubr.f32.mxu0 0.0
      %3519 = vmatmul.mubr.f32.gmra.mxu0 %v3299
      %v3520 = vpop.f32.mrf.mxu0
      %v3521 = vadd.f32 %v3367, %v3520
      %v3522 = vpop.f32.mrf.mxu0
      %3523 = vmatprep.mubr.f32.mxu0 0.0
      %3524 = vmatmul.mubr.f32.gmra.mxu0 %v3300
      %v3525 = vpop.f32.mrf.mxu0
      %v3526 = vadd.f32 %v3367, %v3525
      %v3527 = vpop.f32.mrf.mxu0
      %3528 = vmatprep.mubr.f32.mxu0 0.0
      %3529 = vmatmul.mubr.f32.gmra.mxu0 %v3301
      %v3530 = vpop.f32.mrf.mxu0
      %v3531 = vadd.f32 %v3367, %v3530
      %v3532 = vpop.f32.mrf.mxu0
      %3533 = vmatprep.mubr.f32.mxu0 0.0
      %3534 = vmatmul.mubr.f32.gmra.mxu0 %v3302
      %v3535 = vpop.f32.mrf.mxu0
      %v3536 = vadd.f32 %v3367, %v3535
      %v3537 = vpop.f32.mrf.mxu0
      %3538 = vmatprep.mubr.f32.mxu0 0.0
      %3539 = vmatmul.mubr.f32.gmra.mxu0 %v3303
      %v3540 = vpop.f32.mrf.mxu0
      %v3541 = vadd.f32 %v3367, %v3540
      %v3542 = vpop.f32.mrf.mxu0
      %3543 = vmatprep.mubr.f32.mxu0 0.0
      %3544 = vmatmul.mubr.f32.gmra.mxu0 %v3304
      %v3545 = vpop.f32.mrf.mxu0
      %v3546 = vadd.f32 %v3367, %v3545
      %v3547 = vpop.f32.mrf.mxu0
      %3548 = vmatprep.mubr.f32.mxu0 0.0
      %3549 = vmatmul.mubr.f32.gmra.mxu0 %v3305
      %v3550 = vpop.f32.mrf.mxu0
      %v3551 = vadd.f32 %v3367, %v3550
      %v3552 = vpop.f32.mrf.mxu0
      %3553 = vmatprep.mubr.f32.mxu0 0.0
      %3554 = vmatmul.mubr.f32.gmra.mxu0 %v3306
      %v3555 = vpop.f32.mrf.mxu0
      %v3556 = vadd.f32 %v3367, %v3555
      %v3557 = vpop.f32.mrf.mxu0
      %3558 = vmatprep.mubr.f32.mxu0 0.0
      %3559 = vmatmul.mubr.f32.gmra.mxu0 %v3307
      %v3560 = vpop.f32.mrf.mxu0
      %v3561 = vadd.f32 %v3367, %v3560
      %v3562 = vpop.f32.mrf.mxu0
      %3563 = vmatprep.mubr.f32.mxu0 0.0
      %3564 = vmatmul.mubr.f32.gmra.mxu0 %v3308
      %v3565 = vpop.f32.mrf.mxu0
      %v3566 = vadd.f32 %v3367, %v3565
      %v3567 = vpop.f32.mrf.mxu0
      %3568 = vmatprep.mubr.f32.mxu0 0.0
      %3569 = vmatmul.mubr.f32.gmra.mxu0 %v3309
      %v3570 = vpop.f32.mrf.mxu0
      %v3571 = vadd.f32 %v3367, %v3570
      %v3572 = vpop.f32.mrf.mxu0
      %3573 = vmatprep.mubr.f32.mxu0 0.0
      %3574 = vmatmul.mubr.f32.gmra.mxu0 %v3310
      %v3575 = vpop.f32.mrf.mxu0
      %v3576 = vadd.f32 %v3367, %v3575
      %v3577 = vpop.f32.mrf.mxu0
      %3578 = vmatprep.mubr.f32.mxu0 0.0
      %3579 = vmatmul.mubr.f32.gmra.mxu0 %v3311
      %v3580 = vpop.f32.mrf.mxu0
      %v3581 = vadd.f32 %v3367, %v3580
      %v3582 = vpop.f32.mrf.mxu0
      %3583 = vmatprep.mubr.f32.mxu0 0.0
      %3584 = vmatmul.mubr.f32.gmra.mxu0 %v3312
      %v3585 = vpop.f32.mrf.mxu0
      %v3586 = vadd.f32 %v3367, %v3585
      %v3587 = vpop.f32.mrf.mxu0
      %3588 = vmatprep.mubr.f32.mxu0 0.0
      %3589 = vmatmul.mubr.f32.gmra.mxu0 %v3313
      %v3590 = vpop.f32.mrf.mxu0
      %v3591 = vadd.f32 %v3367, %v3590
      %v3592 = vpop.f32.mrf.mxu0
      %3593 = vmatprep.mubr.f32.mxu0 0.0
      %3594 = vmatmul.mubr.f32.gmra.mxu0 %v3314
      %v3595 = vpop.f32.mrf.mxu0
      %v3596 = vadd.f32 %v3367, %v3595
      %v3597 = vpop.f32.mrf.mxu0
      %3598 = vmatprep.mubr.f32.mxu0 0.0
      %3599 = vmatmul.mubr.f32.gmra.mxu0 %v3315
      %v3600 = vpop.f32.mrf.mxu0
      %v3601 = vadd.f32 %v3367, %v3600
      %v3602 = vpop.f32.mrf.mxu0
      %3603 = vmatprep.mubr.f32.mxu0 0.0
      %3604 = vmatmul.mubr.f32.gmra.mxu0 %v3316
      %v3605 = vpop.f32.mrf.mxu0
      %v3606 = vadd.f32 %v3367, %v3605
      %v3607 = vpop.f32.mrf.mxu0
      %3608 = vmatprep.mubr.f32.mxu0 0.0
      %3609 = vmatmul.mubr.f32.gmra.mxu0 %v3317
      %v3610 = vpop.f32.mrf.mxu0
      %v3611 = vadd.f32 %v3367, %v3610
      %v3612 = vpop.f32.mrf.mxu0
      %3613 = vmatprep.mubr.f32.mxu0 0.0
      %3614 = vmatmul.mubr.f32.gmra.mxu0 %v3318
      %v3615 = vpop.f32.mrf.mxu0
      %v3616 = vadd.f32 %v3367, %v3615
      %v3617 = vpop.f32.mrf.mxu0
      %3618 = vmatprep.mubr.f32.mxu0 0.0
      %3619 = vmatmul.mubr.f32.gmra.mxu0 %v3319
      %v3620 = vpop.f32.mrf.mxu0
      %v3621 = vadd.f32 %v3367, %v3620
      %v3622 = vpop.f32.mrf.mxu0
      %3623 = vmatprep.mubr.f32.mxu0 0.0
      %3624 = vmatmul.mubr.f32.gmra.mxu0 %v3320
      %v3625 = vpop.f32.mrf.mxu0
      %v3626 = vadd.f32 %v3367, %v3625
      %v3627 = vpop.f32.mrf.mxu0
      %3628 = vmatprep.mubr.f32.mxu0 0.0
      %3629 = vmatmul.mubr.f32.gmra.mxu0 %v3321
      %v3630 = vpop.f32.mrf.mxu0
      %v3631 = vadd.f32 %v3367, %v3630
      %v3632 = vpop.f32.mrf.mxu0
      %3633 = vmatprep.mubr.f32.mxu0 0.0
      %3634 = vmatmul.mubr.f32.gmra.mxu0 %v3322
      %v3635 = vpop.f32.mrf.mxu0
      %v3636 = vadd.f32 %v3367, %v3635
      %v3637 = vpop.f32.mrf.mxu0
      %3638 = vmatprep.mubr.f32.mxu0 0.0
      %3639 = vmatmul.mubr.f32.gmra.mxu0 %v3323
      %v3640 = vpop.f32.mrf.mxu0
      %v3641 = vadd.f32 %v3367, %v3640
      %v3642 = vpop.f32.mrf.mxu0
      %3643 = vmatprep.mubr.f32.mxu0 0.0
      %3644 = vmatmul.mubr.f32.gmra.mxu0 %v3324
      %v3645 = vpop.f32.mrf.mxu0
      %v3646 = vadd.f32 %v3367, %v3645
      %v3647 = vpop.f32.mrf.mxu0
      %3648 = vmatprep.mubr.f32.mxu0 0.0
      %3649 = vmatmul.mubr.f32.gmra.mxu0 %v3325
      %v3650 = vpop.f32.mrf.mxu0
      %v3651 = vadd.f32 %v3367, %v3650
      %v3652 = vpop.f32.mrf.mxu0
      %3653 = vmatprep.mubr.f32.mxu0 0.0
      %3654 = vmatmul.mubr.f32.gmra.mxu0 %v3326
      %v3655 = vpop.f32.mrf.mxu0
      %v3656 = vadd.f32 %v3367, %v3655
      %v3657 = vpop.f32.mrf.mxu0
      %3658 = vmatprep.mubr.f32.mxu0 0.0
      %3659 = vmatmul.mubr.f32.gmra.mxu0 %v3327
      %v3660 = vpop.f32.mrf.mxu0
      %v3661 = vadd.f32 %v3367, %v3660
      %v3662 = vpop.f32.mrf.mxu0
      %3663 = vmatprep.mubr.f32.mxu0 0.0
      %3664 = vmatmul.mubr.f32.gmra.mxu0 %v3328
      %v3665 = vpop.f32.mrf.mxu0
      %v3666 = vadd.f32 %v3367, %v3665
      %v3667 = vpop.f32.mrf.mxu0
      %3668 = vmatprep.mubr.f32.mxu0 0.0
      %3669 = vmatmul.mubr.f32.gmra.mxu0 %v3329
      %v3670 = vpop.f32.mrf.mxu0
      %v3671 = vadd.f32 %v3367, %v3670
      %v3672 = vpop.f32.mrf.mxu0
      %3673 = vmatprep.mubr.f32.mxu0 0.0
      %3674 = vmatmul.mubr.f32.gmra.mxu0 %v3330
      %v3675 = vpop.f32.mrf.mxu0
      %v3676 = vadd.f32 %v3367, %v3675
      %v3677 = vpop.f32.mrf.mxu0
      %3678 = vmatprep.mubr.f32.mxu0 0.0
      %3679 = vmatmul.mubr.f32.gmra.mxu0 %v3331
      %v3680 = vpop.f32.mrf.mxu0
      %v3681 = vadd.f32 %v3367, %v3680
      %v3682 = vpop.f32.mrf.mxu0
      %3683 = vmatprep.mubr.f32.mxu0 0.0
      %3684 = vmatmul.mubr.f32.gmra.mxu0 %v3332
      %v3685 = vpop.f32.mrf.mxu0
      %v3686 = vadd.f32 %v3367, %v3685
      %v3687 = vpop.f32.mrf.mxu0
      %3688 = vmatprep.mubr.f32.mxu0 0.0
      %3689 = vmatmul.mubr.f32.gmra.mxu0 %v3333
      %v3690 = vpop.f32.mrf.mxu0
      %v3691 = vadd.f32 %v3367, %v3690
      %v3692 = vpop.f32.mrf.mxu0
      %3693 = vmatprep.mubr.f32.mxu0 0.0
      %3694 = vmatmul.mubr.f32.gmra.mxu0 %v3334
      %v3695 = vpop.f32.mrf.mxu0
      %v3696 = vadd.f32 %v3367, %v3695
      %v3697 = vpop.f32.mrf.mxu0
      %3698 = vmatprep.mubr.f32.mxu0 0.0
      %3699 = vmatmul.mubr.f32.gmra.mxu0 %v3335
      %v3700 = vpop.f32.mrf.mxu0
      %v3701 = vadd.f32 %v3367, %v3700
      %v3702 = vpop.f32.mrf.mxu0
      %3703 = vmatprep.mubr.f32.mxu0 0.0
      %3704 = vmatmul.mubr.f32.gmra.mxu0 %v3336
      %v3705 = vpop.f32.mrf.mxu0
      %v3706 = vadd.f32 %v3367, %v3705
      %v3707 = vpop.f32.mrf.mxu0
      %3708 = vmatprep.mubr.f32.mxu0 0.0
      %3709 = vmatmul.mubr.f32.gmra.mxu0 %v3337
      %v3710 = vpop.f32.mrf.mxu0
      %v3711 = vadd.f32 %v3367, %v3710
      %v3712 = vpop.f32.mrf.mxu0
      %3713 = vmatprep.mubr.f32.mxu0 0.0
      %3714 = vmatmul.mubr.f32.gmra.mxu0 %v3338
      %v3715 = vpop.f32.mrf.mxu0
      %v3716 = vadd.f32 %v3367, %v3715
      %v3717 = vpop.f32.mrf.mxu0
      %3718 = vmatprep.mubr.f32.mxu0 0.0
      %3719 = vmatmul.mubr.f32.gmra.mxu0 %v3339
      %v3720 = vpop.f32.mrf.mxu0
      %v3721 = vadd.f32 %v3367, %v3720
      %v3722 = vpop.f32.mrf.mxu0
      %3723 = vmatprep.mubr.f32.mxu0 0.0
      %3724 = vmatmul.mubr.f32.gmra.mxu0 %v3340
      %v3725 = vpop.f32.mrf.mxu0
      %v3726 = vadd.f32 %v3367, %v3725
      %v3727 = vpop.f32.mrf.mxu0
      %3728 = vmatprep.mubr.f32.mxu0 0.0
      %3729 = vmatmul.mubr.f32.gmra.mxu0 %v3341
      %v3730 = vpop.f32.mrf.mxu0
      %v3731 = vadd.f32 %v3367, %v3730
      %v3732 = vpop.f32.mrf.mxu0
      %3733 = vmatprep.mubr.f32.mxu0 0.0
      %3734 = vmatmul.mubr.f32.gmra.mxu0 %v3342
      %v3735 = vpop.f32.mrf.mxu0
      %v3736 = vadd.f32 %v3367, %v3735
      %v3737 = vpop.f32.mrf.mxu0
      %3738 = vmatprep.mubr.f32.mxu0 0.0
      %3739 = vmatmul.mubr.f32.gmra.mxu0 %v3343
      %v3740 = vpop.f32.mrf.mxu0
      %v3741 = vadd.f32 %v3367, %v3740
      %v3742 = vpop.f32.mrf.mxu0
      %3743 = vmatprep.mubr.f32.mxu0 0.0
      %3744 = vmatmul.mubr.f32.gmra.mxu0 %v3344
      %v3745 = vpop.f32.mrf.mxu0
      %v3746 = vadd.f32 %v3367, %v3745
      %v3747 = vpop.f32.mrf.mxu0
      %3748 = vmatprep.mubr.f32.mxu0 0.0
      %3749 = vmatmul.mubr.f32.gmra.mxu0 %v3345
      %v3750 = vpop.f32.mrf.mxu0
      %v3751 = vadd.f32 %v3367, %v3750
      %v3752 = vpop.f32.mrf.mxu0
      %3753 = vdwg.mxu0
      %vm3754 = vcmp.gt.f32.partialorder %v3436, 0.0
      %vm3755 = vcmp.gt.f32.partialorder %v3441, 0.0
      %vm3756 = vcmp.gt.f32.partialorder %v3446, 0.0
      %vm3757 = vcmp.gt.f32.partialorder %v3451, 0.0
      %vm3758 = vcmp.gt.f32.partialorder %v3456, 0.0
      %vm3759 = vcmp.gt.f32.partialorder %v3461, 0.0
      %vm3760 = vcmp.gt.f32.partialorder %v3466, 0.0
      %vm3761 = vcmp.gt.f32.partialorder %v3471, 0.0
      %vm3762 = vcmp.gt.f32.partialorder %v3476, 0.0
      %vm3763 = vcmp.gt.f32.partialorder %v3481, 0.0
      %vm3764 = vcmp.gt.f32.partialorder %v3486, 0.0
      %vm3765 = vcmp.gt.f32.partialorder %v3491, 0.0
      %vm3766 = vcmp.gt.f32.partialorder %v3496, 0.0
      %vm3767 = vcmp.gt.f32.partialorder %v3501, 0.0
      %vm3768 = vcmp.gt.f32.partialorder %v3506, 0.0
      %vm3769 = vcmp.gt.f32.partialorder %v3511, 0.0
      %vm3770 = vcmp.gt.f32.partialorder %v3516, 0.0
      %vm3771 = vcmp.gt.f32.partialorder %v3521, 0.0
      %vm3772 = vcmp.gt.f32.partialorder %v3526, 0.0
      %vm3773 = vcmp.gt.f32.partialorder %v3531, 0.0
      %vm3774 = vcmp.gt.f32.partialorder %v3536, 0.0
      %vm3775 = vcmp.gt.f32.partialorder %v3541, 0.0
      %vm3776 = vcmp.gt.f32.partialorder %v3546, 0.0
      %vm3777 = vcmp.gt.f32.partialorder %v3551, 0.0
      %vm3778 = vcmp.gt.f32.partialorder %v3556, 0.0
      %vm3779 = vcmp.gt.f32.partialorder %v3561, 0.0
      %vm3780 = vcmp.gt.f32.partialorder %v3566, 0.0
      %vm3781 = vcmp.gt.f32.partialorder %v3571, 0.0
      %vm3782 = vcmp.gt.f32.partialorder %v3576, 0.0
      %vm3783 = vcmp.gt.f32.partialorder %v3581, 0.0
      %vm3784 = vcmp.gt.f32.partialorder %v3586, 0.0
      %vm3785 = vcmp.gt.f32.partialorder %v3591, 0.0
      %vm3786 = vcmp.gt.f32.partialorder %v3596, 0.0
      %vm3787 = vcmp.gt.f32.partialorder %v3601, 0.0
      %vm3788 = vcmp.gt.f32.partialorder %v3606, 0.0
      %vm3789 = vcmp.gt.f32.partialorder %v3611, 0.0
      %vm3790 = vcmp.gt.f32.partialorder %v3616, 0.0
      %vm3791 = vcmp.gt.f32.partialorder %v3621, 0.0
      %vm3792 = vcmp.gt.f32.partialorder %v3626, 0.0
      %vm3793 = vcmp.gt.f32.partialorder %v3631, 0.0
      %vm3794 = vcmp.gt.f32.partialorder %v3636, 0.0
      %vm3795 = vcmp.gt.f32.partialorder %v3641, 0.0
      %vm3796 = vcmp.gt.f32.partialorder %v3646, 0.0
      %vm3797 = vcmp.gt.f32.partialorder %v3651, 0.0
      %vm3798 = vcmp.gt.f32.partialorder %v3656, 0.0
      %vm3799 = vcmp.gt.f32.partialorder %v3661, 0.0
      %vm3800 = vcmp.gt.f32.partialorder %v3666, 0.0
      %vm3801 = vcmp.gt.f32.partialorder %v3671, 0.0
      %vm3802 = vcmp.gt.f32.partialorder %v3676, 0.0
      %vm3803 = vcmp.gt.f32.partialorder %v3681, 0.0
      %vm3804 = vcmp.gt.f32.partialorder %v3686, 0.0
      %vm3805 = vcmp.gt.f32.partialorder %v3691, 0.0
      %vm3806 = vcmp.gt.f32.partialorder %v3696, 0.0
      %vm3807 = vcmp.gt.f32.partialorder %v3701, 0.0
      %vm3808 = vcmp.gt.f32.partialorder %v3706, 0.0
      %vm3809 = vcmp.gt.f32.partialorder %v3711, 0.0
      %vm3810 = vcmp.gt.f32.partialorder %v3716, 0.0
      %vm3811 = vcmp.gt.f32.partialorder %v3721, 0.0
      %vm3812 = vcmp.gt.f32.partialorder %v3726, 0.0
      %vm3813 = vcmp.gt.f32.partialorder %v3731, 0.0
      %vm3814 = vcmp.gt.f32.partialorder %v3736, 0.0
      %vm3815 = vcmp.gt.f32.partialorder %v3741, 0.0
      %vm3816 = vcmp.gt.f32.partialorder %v3746, 0.0
      %vm3817 = vcmp.gt.f32.partialorder %v3751, 0.0
      %v3818 = vmul.f32 %v3436, 0.01
      %v3819 = vmul.f32 %v3441, 0.01
      %v3820 = vmul.f32 %v3446, 0.01
      %v3821 = vmul.f32 %v3451, 0.01
      %v3822 = vmul.f32 %v3456, 0.01
      %v3823 = vmul.f32 %v3461, 0.01
      %v3824 = vmul.f32 %v3466, 0.01
      %v3825 = vmul.f32 %v3471, 0.01
      %v3826 = vmul.f32 %v3476, 0.01
      %v3827 = vmul.f32 %v3481, 0.01
      %v3828 = vmul.f32 %v3486, 0.01
      %v3829 = vmul.f32 %v3491, 0.01
      %v3830 = vmul.f32 %v3496, 0.01
      %v3831 = vmul.f32 %v3501, 0.01
      %v3832 = vmul.f32 %v3506, 0.01
      %v3833 = vmul.f32 %v3511, 0.01
      %v3834 = vmul.f32 %v3516, 0.01
      %v3835 = vmul.f32 %v3521, 0.01
      %v3836 = vmul.f32 %v3526, 0.01
      %v3837 = vmul.f32 %v3531, 0.01
      %v3838 = vmul.f32 %v3536, 0.01
      %v3839 = vmul.f32 %v3541, 0.01
      %v3840 = vmul.f32 %v3546, 0.01
      %v3841 = vmul.f32 %v3551, 0.01
      %v3842 = vmul.f32 %v3556, 0.01
      %v3843 = vmul.f32 %v3561, 0.01
      %v3844 = vmul.f32 %v3566, 0.01
      %v3845 = vmul.f32 %v3571, 0.01
      %v3846 = vmul.f32 %v3576, 0.01
      %v3847 = vmul.f32 %v3581, 0.01
      %v3848 = vmul.f32 %v3586, 0.01
      %v3849 = vmul.f32 %v3591, 0.01
      %v3850 = vmul.f32 %v3596, 0.01
      %v3851 = vmul.f32 %v3601, 0.01
      %v3852 = vmul.f32 %v3606, 0.01
      %v3853 = vmul.f32 %v3611, 0.01
      %v3854 = vmul.f32 %v3616, 0.01
      %v3855 = vmul.f32 %v3621, 0.01
      %v3856 = vmul.f32 %v3626, 0.01
      %v3857 = vmul.f32 %v3631, 0.01
      %v3858 = vmul.f32 %v3636, 0.01
      %v3859 = vmul.f32 %v3641, 0.01
      %v3860 = vmul.f32 %v3646, 0.01
      %v3861 = vmul.f32 %v3651, 0.01
      %v3862 = vmul.f32 %v3656, 0.01
      %v3863 = vmul.f32 %v3661, 0.01
      %v3864 = vmul.f32 %v3666, 0.01
      %v3865 = vmul.f32 %v3671, 0.01
      %v3866 = vmul.f32 %v3676, 0.01
      %v3867 = vmul.f32 %v3681, 0.01
      %v3868 = vmul.f32 %v3686, 0.01
      %v3869 = vmul.f32 %v3691, 0.01
      %v3870 = vmul.f32 %v3696, 0.01
      %v3871 = vmul.f32 %v3701, 0.01
      %v3872 = vmul.f32 %v3706, 0.01
      %v3873 = vmul.f32 %v3711, 0.01
      %v3874 = vmul.f32 %v3716, 0.01
      %v3875 = vmul.f32 %v3721, 0.01
      %v3876 = vmul.f32 %v3726, 0.01
      %v3877 = vmul.f32 %v3731, 0.01
      %v3878 = vmul.f32 %v3736, 0.01
      %v3879 = vmul.f32 %v3741, 0.01
      %v3880 = vmul.f32 %v3746, 0.01
      %v3881 = vmul.f32 %v3751, 0.01
      %v3882 = vsel %vm3754, %v3436, %v3818
      %v3883 = vsel %vm3755, %v3441, %v3819
      %v3884 = vsel %vm3756, %v3446, %v3820
      %v3885 = vsel %vm3757, %v3451, %v3821
      %v3886 = vsel %vm3758, %v3456, %v3822
      %v3887 = vsel %vm3759, %v3461, %v3823
      %v3888 = vsel %vm3760, %v3466, %v3824
      %v3889 = vsel %vm3761, %v3471, %v3825
      %v3890 = vsel %vm3762, %v3476, %v3826
      %v3891 = vsel %vm3763, %v3481, %v3827
      %v3892 = vsel %vm3764, %v3486, %v3828
      %v3893 = vsel %vm3765, %v3491, %v3829
      %v3894 = vsel %vm3766, %v3496, %v3830
      %v3895 = vsel %vm3767, %v3501, %v3831
      %v3896 = vsel %vm3768, %v3506, %v3832
      %v3897 = vsel %vm3769, %v3511, %v3833
      %v3898 = vsel %vm3770, %v3516, %v3834
      %v3899 = vsel %vm3771, %v3521, %v3835
      %v3900 = vsel %vm3772, %v3526, %v3836
      %v3901 = vsel %vm3773, %v3531, %v3837
      %v3902 = vsel %vm3774, %v3536, %v3838
      %v3903 = vsel %vm3775, %v3541, %v3839
      %v3904 = vsel %vm3776, %v3546, %v3840
      %v3905 = vsel %vm3777, %v3551, %v3841
      %v3906 = vsel %vm3778, %v3556, %v3842
      %v3907 = vsel %vm3779, %v3561, %v3843
      %v3908 = vsel %vm3780, %v3566, %v3844
      %v3909 = vsel %vm3781, %v3571, %v3845
      %v3910 = vsel %vm3782, %v3576, %v3846
      %v3911 = vsel %vm3783, %v3581, %v3847
      %v3912 = vsel %vm3784, %v3586, %v3848
      %v3913 = vsel %vm3785, %v3591, %v3849
      %v3914 = vsel %vm3786, %v3596, %v3850
      %v3915 = vsel %vm3787, %v3601, %v3851
      %v3916 = vsel %vm3788, %v3606, %v3852
      %v3917 = vsel %vm3789, %v3611, %v3853
      %v3918 = vsel %vm3790, %v3616, %v3854
      %v3919 = vsel %vm3791, %v3621, %v3855
      %v3920 = vsel %vm3792, %v3626, %v3856
      %v3921 = vsel %vm3793, %v3631, %v3857
      %v3922 = vsel %vm3794, %v3636, %v3858
      %v3923 = vsel %vm3795, %v3641, %v3859
      %v3924 = vsel %vm3796, %v3646, %v3860
      %v3925 = vsel %vm3797, %v3651, %v3861
      %v3926 = vsel %vm3798, %v3656, %v3862
      %v3927 = vsel %vm3799, %v3661, %v3863
      %v3928 = vsel %vm3800, %v3666, %v3864
      %v3929 = vsel %vm3801, %v3671, %v3865
      %v3930 = vsel %vm3802, %v3676, %v3866
      %v3931 = vsel %vm3803, %v3681, %v3867
      %v3932 = vsel %vm3804, %v3686, %v3868
      %v3933 = vsel %vm3805, %v3691, %v3869
      %v3934 = vsel %vm3806, %v3696, %v3870
      %v3935 = vsel %vm3807, %v3701, %v3871
      %v3936 = vsel %vm3808, %v3706, %v3872
      %v3937 = vsel %vm3809, %v3711, %v3873
      %v3938 = vsel %vm3810, %v3716, %v3874
      %v3939 = vsel %vm3811, %v3721, %v3875
      %v3940 = vsel %vm3812, %v3726, %v3876
      %v3941 = vsel %vm3813, %v3731, %v3877
      %v3942 = vsel %vm3814, %v3736, %v3878
      %v3943 = vsel %vm3815, %v3741, %v3879
      %v3944 = vsel %vm3816, %v3746, %v3880
      %v3945 = vsel %vm3817, %v3751, %v3881
      %v3946 = vld [vmem:[%s7] sm:$0xff]
      %v3947 = vld [vmem:[%s7 + $0x8] sm:$0xff]
      %v3948 = vld [vmem:[%s7 + $0x10] sm:$0xff]
      %v3949 = vld [vmem:[%s7 + $0x18] sm:$0xff]
      %v3950 = vld [vmem:[%s8] sm:$0x1]
      %v3952 = vlaneseq
      %v3953 = vshrl.u32 %v3952, 7
      %v3954 = vsub.s32 0, %v3953
      %v3955 = vrot.slane %v3950, %v3954
      %vm3957 = vcmask 261120
      %v3959 = vsel %vm3957, %v3882, 0
      %v3962 = vsel %vm3957, %v3883, 0
      %v3965 = vsel %vm3957, %v3884, 0
      %v3968 = vsel %vm3957, %v3885, 0
      %v3971 = vsel %vm3957, %v3886, 0
      %v3974 = vsel %vm3957, %v3887, 0
      %v3977 = vsel %vm3957, %v3888, 0
      %v3980 = vsel %vm3957, %v3889, 0
      %v3983 = vsel %vm3957, %v3890, 0
      %v3986 = vsel %vm3957, %v3891, 0
      %v3989 = vsel %vm3957, %v3892, 0
      %v3992 = vsel %vm3957, %v3893, 0
      %v3995 = vsel %vm3957, %v3894, 0
      %v3998 = vsel %vm3957, %v3895, 0
      %v4001 = vsel %vm3957, %v3896, 0
      %v4004 = vsel %vm3957, %v3897, 0
      %v4007 = vsel %vm3957, %v3898, 0
      %v4010 = vsel %vm3957, %v3899, 0
      %v4013 = vsel %vm3957, %v3900, 0
      %v4016 = vsel %vm3957, %v3901, 0
      %v4019 = vsel %vm3957, %v3902, 0
      %v4022 = vsel %vm3957, %v3903, 0
      %v4025 = vsel %vm3957, %v3904, 0
      %v4028 = vsel %vm3957, %v3905, 0
      %v4031 = vsel %vm3957, %v3906, 0
      %v4034 = vsel %vm3957, %v3907, 0
      %v4037 = vsel %vm3957, %v3908, 0
      %v4040 = vsel %vm3957, %v3909, 0
      %v4043 = vsel %vm3957, %v3910, 0
      %v4046 = vsel %vm3957, %v3911, 0
      %v4049 = vsel %vm3957, %v3912, 0
      %v4052 = vsel %vm3957, %v3913, 0
      %v4055 = vsel %vm3957, %v3914, 0
      %v4058 = vsel %vm3957, %v3915, 0
      %v4061 = vsel %vm3957, %v3916, 0
      %v4064 = vsel %vm3957, %v3917, 0
      %v4067 = vsel %vm3957, %v3918, 0
      %v4070 = vsel %vm3957, %v3919, 0
      %v4073 = vsel %vm3957, %v3920, 0
      %v4076 = vsel %vm3957, %v3921, 0
      %v4079 = vsel %vm3957, %v3922, 0
      %v4082 = vsel %vm3957, %v3923, 0
      %v4085 = vsel %vm3957, %v3924, 0
      %v4088 = vsel %vm3957, %v3925, 0
      %v4091 = vsel %vm3957, %v3926, 0
      %v4094 = vsel %vm3957, %v3927, 0
      %v4097 = vsel %vm3957, %v3928, 0
      %v4100 = vsel %vm3957, %v3929, 0
      %v4103 = vsel %vm3957, %v3930, 0
      %v4106 = vsel %vm3957, %v3931, 0
      %v4109 = vsel %vm3957, %v3932, 0
      %v4112 = vsel %vm3957, %v3933, 0
      %v4115 = vsel %vm3957, %v3934, 0
      %v4118 = vsel %vm3957, %v3935, 0
      %v4121 = vsel %vm3957, %v3936, 0
      %v4124 = vsel %vm3957, %v3937, 0
      %v4127 = vsel %vm3957, %v3938, 0
      %v4130 = vsel %vm3957, %v3939, 0
      %v4133 = vsel %vm3957, %v3940, 0
      %v4136 = vsel %vm3957, %v3941, 0
      %v4139 = vsel %vm3957, %v3942, 0
      %v4142 = vsel %vm3957, %v3943, 0
      %v4145 = vsel %vm3957, %v3944, 0
      %v4148 = vsel %vm3957, %v3945, 0
      %4150 = vmatprep.subr.mxu0 0.0
      %4151 = vmatpush1.msra.mxu0 0.0
      %4152 = vmatprep.subr.mxu0 0.0
      %4153 = vmatpush1.msra.mxu0 0.0
      %4154 = vmatprep.subr.mxu0 0.0
      %4155 = vmatpush1.msra.mxu0 0.0
      %4156 = vmatprep.subr.mxu0 0.0
      %4157 = vmatpush1.msra.mxu0 0.0
      %4158 = vmatprep.subr.mxu0 0.0
      %4159 = vmatpush1.msra.mxu0 0.0
      %4160 = vmatprep.subr.mxu0 0.0
      %4161 = vmatpush1.msra.mxu0 0.0
      %4162 = vmatprep.subr.mxu0 0.0
      %4163 = vmatpush1.msra.mxu0 0.0
      %4164 = vmatprep.subr.mxu0 0.0
      %4165 = vmatpush1.msra.mxu0 0.0
      %4166 = vmatprep.subr.mxu0 0.0
      %4167 = vmatpush1.msra.mxu0 0.0
      %4168 = vmatprep.subr.mxu0 0.0
      %4169 = vmatpush1.msra.mxu0 0.0
      %4170 = vmatprep.subr.mxu0 0.0
      %4171 = vmatpush1.msra.mxu0 0.0
      %4172 = vmatprep.subr.mxu0 0.0
      %4173 = vmatpush1.msra.mxu0 0.0
      %4174 = vmatprep.subr.mxu0 0.0
      %4175 = vmatpush1.msra.mxu0 %v3949
      %4176 = vmatprep.subr.mxu0 0.0
      %4177 = vmatpush1.msra.mxu0 %v3948
      %4178 = vmatprep.subr.mxu0 0.0
      %4179 = vmatpush1.msra.mxu0 %v3947
      %4180 = vmatprep.subr.mxu0 0.0
      %4181 = vmatpush1.msra.mxu0 %v3946
      %4182 = vmatprep.subr.mxu0 0.0
      %4183 = vmatpush2.msra.mxu0 0.0
      %4184 = vmatprep.subr.mxu0 0.0
      %4185 = vmatpush2.msra.mxu0 0.0
      %4186 = vmatprep.subr.mxu0 0.0
      %4187 = vmatpush2.msra.mxu0 0.0
      %4188 = vmatprep.subr.mxu0 0.0
      %4189 = vmatpush2.msra.mxu0 0.0
      %4190 = vmatprep.subr.mxu0 0.0
      %4191 = vmatpush2.msra.mxu0 0.0
      %4192 = vmatprep.subr.mxu0 0.0
      %4193 = vmatpush2.msra.mxu0 0.0
      %4194 = vmatprep.subr.mxu0 0.0
      %4195 = vmatpush2.msra.mxu0 0.0
      %4196 = vmatprep.subr.mxu0 0.0
      %4197 = vmatpush2.msra.mxu0 0.0
      %4198 = vmatprep.subr.mxu0 0.0
      %4199 = vmatpush2.msra.mxu0 0.0
      %4200 = vmatprep.subr.mxu0 0.0
      %4201 = vmatpush2.msra.mxu0 0.0
      %4202 = vmatprep.subr.mxu0 0.0
      %4203 = vmatpush2.msra.mxu0 0.0
      %4204 = vmatprep.subr.mxu0 0.0
      %4205 = vmatpush2.msra.mxu0 0.0
      %4206 = vmatprep.subr.mxu0 0.0
      %4207 = vmatpush2.msra.mxu0 0.0
      %4208 = vmatprep.subr.mxu0 0.0
      %4209 = vmatpush2.msra.mxu0 0.0
      %4210 = vmatprep.subr.mxu0 0.0
      %4211 = vmatpush2.msra.mxu0 0.0
      %4212 = vmatprep.subr.mxu0 0.0
      %4213 = vmatpush2.msra.mxu0 0.0
      %4214 = vmatprep.mubr.f32.mxu0 0.0
      %4215 = vmatmul.mubr.f32.gmra.mxu0 %v3959
      %v4216 = vpop.f32.mrf.mxu0
      %v4217 = vadd.f32 %v3955, %v4216
      %v4218 = vpop.f32.mrf.mxu0
      %4219 = vmatprep.mubr.f32.mxu0 0.0
      %4220 = vmatmul.mubr.f32.gmra.mxu0 %v3962
      %v4221 = vpop.f32.mrf.mxu0
      %v4222 = vadd.f32 %v3955, %v4221
      %v4223 = vpop.f32.mrf.mxu0
      %4224 = vmatprep.mubr.f32.mxu0 0.0
      %4225 = vmatmul.mubr.f32.gmra.mxu0 %v3965
      %v4226 = vpop.f32.mrf.mxu0
      %v4227 = vadd.f32 %v3955, %v4226
      %v4228 = vpop.f32.mrf.mxu0
      %4229 = vmatprep.mubr.f32.mxu0 0.0
      %4230 = vmatmul.mubr.f32.gmra.mxu0 %v3968
      %v4231 = vpop.f32.mrf.mxu0
      %v4232 = vadd.f32 %v3955, %v4231
      %v4233 = vpop.f32.mrf.mxu0
      %4234 = vmatprep.mubr.f32.mxu0 0.0
      %4235 = vmatmul.mubr.f32.gmra.mxu0 %v3971
      %v4236 = vpop.f32.mrf.mxu0
      %v4237 = vadd.f32 %v3955, %v4236
      %v4238 = vpop.f32.mrf.mxu0
      %4239 = vmatprep.mubr.f32.mxu0 0.0
      %4240 = vmatmul.mubr.f32.gmra.mxu0 %v3974
      %v4241 = vpop.f32.mrf.mxu0
      %v4242 = vadd.f32 %v3955, %v4241
      %v4243 = vpop.f32.mrf.mxu0
      %4244 = vmatprep.mubr.f32.mxu0 0.0
      %4245 = vmatmul.mubr.f32.gmra.mxu0 %v3977
      %v4246 = vpop.f32.mrf.mxu0
      %v4247 = vadd.f32 %v3955, %v4246
      %v4248 = vpop.f32.mrf.mxu0
      %4249 = vmatprep.mubr.f32.mxu0 0.0
      %4250 = vmatmul.mubr.f32.gmra.mxu0 %v3980
      %v4251 = vpop.f32.mrf.mxu0
      %v4252 = vadd.f32 %v3955, %v4251
      %v4253 = vpop.f32.mrf.mxu0
      %4254 = vmatprep.mubr.f32.mxu0 0.0
      %4255 = vmatmul.mubr.f32.gmra.mxu0 %v3983
      %v4256 = vpop.f32.mrf.mxu0
      %v4257 = vadd.f32 %v3955, %v4256
      %v4258 = vpop.f32.mrf.mxu0
      %4259 = vmatprep.mubr.f32.mxu0 0.0
      %4260 = vmatmul.mubr.f32.gmra.mxu0 %v3986
      %v4261 = vpop.f32.mrf.mxu0
      %v4262 = vadd.f32 %v3955, %v4261
      %v4263 = vpop.f32.mrf.mxu0
      %4264 = vmatprep.mubr.f32.mxu0 0.0
      %4265 = vmatmul.mubr.f32.gmra.mxu0 %v3989
      %v4266 = vpop.f32.mrf.mxu0
      %v4267 = vadd.f32 %v3955, %v4266
      %v4268 = vpop.f32.mrf.mxu0
      %4269 = vmatprep.mubr.f32.mxu0 0.0
      %4270 = vmatmul.mubr.f32.gmra.mxu0 %v3992
      %v4271 = vpop.f32.mrf.mxu0
      %v4272 = vadd.f32 %v3955, %v4271
      %v4273 = vpop.f32.mrf.mxu0
      %4274 = vmatprep.mubr.f32.mxu0 0.0
      %4275 = vmatmul.mubr.f32.gmra.mxu0 %v3995
      %v4276 = vpop.f32.mrf.mxu0
      %v4277 = vadd.f32 %v3955, %v4276
      %v4278 = vpop.f32.mrf.mxu0
      %4279 = vmatprep.mubr.f32.mxu0 0.0
      %4280 = vmatmul.mubr.f32.gmra.mxu0 %v3998
      %v4281 = vpop.f32.mrf.mxu0
      %v4282 = vadd.f32 %v3955, %v4281
      %v4283 = vpop.f32.mrf.mxu0
      %4284 = vmatprep.mubr.f32.mxu0 0.0
      %4285 = vmatmul.mubr.f32.gmra.mxu0 %v4001
      %v4286 = vpop.f32.mrf.mxu0
      %v4287 = vadd.f32 %v3955, %v4286
      %v4288 = vpop.f32.mrf.mxu0
      %4289 = vmatprep.mubr.f32.mxu0 0.0
      %4290 = vmatmul.mubr.f32.gmra.mxu0 %v4004
      %v4291 = vpop.f32.mrf.mxu0
      %v4292 = vadd.f32 %v3955, %v4291
      %v4293 = vpop.f32.mrf.mxu0
      %4294 = vmatprep.mubr.f32.mxu0 0.0
      %4295 = vmatmul.mubr.f32.gmra.mxu0 %v4007
      %v4296 = vpop.f32.mrf.mxu0
      %v4297 = vadd.f32 %v3955, %v4296
      %v4298 = vpop.f32.mrf.mxu0
      %4299 = vmatprep.mubr.f32.mxu0 0.0
      %4300 = vmatmul.mubr.f32.gmra.mxu0 %v4010
      %v4301 = vpop.f32.mrf.mxu0
      %v4302 = vadd.f32 %v3955, %v4301
      %v4303 = vpop.f32.mrf.mxu0
      %4304 = vmatprep.mubr.f32.mxu0 0.0
      %4305 = vmatmul.mubr.f32.gmra.mxu0 %v4013
      %v4306 = vpop.f32.mrf.mxu0
      %v4307 = vadd.f32 %v3955, %v4306
      %v4308 = vpop.f32.mrf.mxu0
      %4309 = vmatprep.mubr.f32.mxu0 0.0
      %4310 = vmatmul.mubr.f32.gmra.mxu0 %v4016
      %v4311 = vpop.f32.mrf.mxu0
      %v4312 = vadd.f32 %v3955, %v4311
      %v4313 = vpop.f32.mrf.mxu0
      %4314 = vmatprep.mubr.f32.mxu0 0.0
      %4315 = vmatmul.mubr.f32.gmra.mxu0 %v4019
      %v4316 = vpop.f32.mrf.mxu0
      %v4317 = vadd.f32 %v3955, %v4316
      %v4318 = vpop.f32.mrf.mxu0
      %4319 = vmatprep.mubr.f32.mxu0 0.0
      %4320 = vmatmul.mubr.f32.gmra.mxu0 %v4022
      %v4321 = vpop.f32.mrf.mxu0
      %v4322 = vadd.f32 %v3955, %v4321
      %v4323 = vpop.f32.mrf.mxu0
      %4324 = vmatprep.mubr.f32.mxu0 0.0
      %4325 = vmatmul.mubr.f32.gmra.mxu0 %v4025
      %v4326 = vpop.f32.mrf.mxu0
      %v4327 = vadd.f32 %v3955, %v4326
      %v4328 = vpop.f32.mrf.mxu0
      %4329 = vmatprep.mubr.f32.mxu0 0.0
      %4330 = vmatmul.mubr.f32.gmra.mxu0 %v4028
      %v4331 = vpop.f32.mrf.mxu0
      %v4332 = vadd.f32 %v3955, %v4331
      %v4333 = vpop.f32.mrf.mxu0
      %4334 = vmatprep.mubr.f32.mxu0 0.0
      %4335 = vmatmul.mubr.f32.gmra.mxu0 %v4031
      %v4336 = vpop.f32.mrf.mxu0
      %v4337 = vadd.f32 %v3955, %v4336
      %v4338 = vpop.f32.mrf.mxu0
      %4339 = vmatprep.mubr.f32.mxu0 0.0
      %4340 = vmatmul.mubr.f32.gmra.mxu0 %v4034
      %v4341 = vpop.f32.mrf.mxu0
      %v4342 = vadd.f32 %v3955, %v4341
      %v4343 = vpop.f32.mrf.mxu0
      %4344 = vmatprep.mubr.f32.mxu0 0.0
      %4345 = vmatmul.mubr.f32.gmra.mxu0 %v4037
      %v4346 = vpop.f32.mrf.mxu0
      %v4347 = vadd.f32 %v3955, %v4346
      %v4348 = vpop.f32.mrf.mxu0
      %4349 = vmatprep.mubr.f32.mxu0 0.0
      %4350 = vmatmul.mubr.f32.gmra.mxu0 %v4040
      %v4351 = vpop.f32.mrf.mxu0
      %v4352 = vadd.f32 %v3955, %v4351
      %v4353 = vpop.f32.mrf.mxu0
      %4354 = vmatprep.mubr.f32.mxu0 0.0
      %4355 = vmatmul.mubr.f32.gmra.mxu0 %v4043
      %v4356 = vpop.f32.mrf.mxu0
      %v4357 = vadd.f32 %v3955, %v4356
      %v4358 = vpop.f32.mrf.mxu0
      %4359 = vmatprep.mubr.f32.mxu0 0.0
      %4360 = vmatmul.mubr.f32.gmra.mxu0 %v4046
      %v4361 = vpop.f32.mrf.mxu0
      %v4362 = vadd.f32 %v3955, %v4361
      %v4363 = vpop.f32.mrf.mxu0
      %4364 = vmatprep.mubr.f32.mxu0 0.0
      %4365 = vmatmul.mubr.f32.gmra.mxu0 %v4049
      %v4366 = vpop.f32.mrf.mxu0
      %v4367 = vadd.f32 %v3955, %v4366
      %v4368 = vpop.f32.mrf.mxu0
      %4369 = vmatprep.mubr.f32.mxu0 0.0
      %4370 = vmatmul.mubr.f32.gmra.mxu0 %v4052
      %v4371 = vpop.f32.mrf.mxu0
      %v4372 = vadd.f32 %v3955, %v4371
      %v4373 = vpop.f32.mrf.mxu0
      %4374 = vmatprep.mubr.f32.mxu0 0.0
      %4375 = vmatmul.mubr.f32.gmra.mxu0 %v4055
      %v4376 = vpop.f32.mrf.mxu0
      %v4377 = vadd.f32 %v3955, %v4376
      %v4378 = vpop.f32.mrf.mxu0
      %4379 = vmatprep.mubr.f32.mxu0 0.0
      %4380 = vmatmul.mubr.f32.gmra.mxu0 %v4058
      %v4381 = vpop.f32.mrf.mxu0
      %v4382 = vadd.f32 %v3955, %v4381
      %v4383 = vpop.f32.mrf.mxu0
      %4384 = vmatprep.mubr.f32.mxu0 0.0
      %4385 = vmatmul.mubr.f32.gmra.mxu0 %v4061
      %v4386 = vpop.f32.mrf.mxu0
      %v4387 = vadd.f32 %v3955, %v4386
      %v4388 = vpop.f32.mrf.mxu0
      %4389 = vmatprep.mubr.f32.mxu0 0.0
      %4390 = vmatmul.mubr.f32.gmra.mxu0 %v4064
      %v4391 = vpop.f32.mrf.mxu0
      %v4392 = vadd.f32 %v3955, %v4391
      %v4393 = vpop.f32.mrf.mxu0
      %4394 = vmatprep.mubr.f32.mxu0 0.0
      %4395 = vmatmul.mubr.f32.gmra.mxu0 %v4067
      %v4396 = vpop.f32.mrf.mxu0
      %v4397 = vadd.f32 %v3955, %v4396
      %v4398 = vpop.f32.mrf.mxu0
      %4399 = vmatprep.mubr.f32.mxu0 0.0
      %4400 = vmatmul.mubr.f32.gmra.mxu0 %v4070
      %v4401 = vpop.f32.mrf.mxu0
      %v4402 = vadd.f32 %v3955, %v4401
      %v4403 = vpop.f32.mrf.mxu0
      %4404 = vmatprep.mubr.f32.mxu0 0.0
      %4405 = vmatmul.mubr.f32.gmra.mxu0 %v4073
      %v4406 = vpop.f32.mrf.mxu0
      %v4407 = vadd.f32 %v3955, %v4406
      %v4408 = vpop.f32.mrf.mxu0
      %4409 = vmatprep.mubr.f32.mxu0 0.0
      %4410 = vmatmul.mubr.f32.gmra.mxu0 %v4076
      %v4411 = vpop.f32.mrf.mxu0
      %v4412 = vadd.f32 %v3955, %v4411
      %v4413 = vpop.f32.mrf.mxu0
      %4414 = vmatprep.mubr.f32.mxu0 0.0
      %4415 = vmatmul.mubr.f32.gmra.mxu0 %v4079
      %v4416 = vpop.f32.mrf.mxu0
      %v4417 = vadd.f32 %v3955, %v4416
      %v4418 = vpop.f32.mrf.mxu0
      %4419 = vmatprep.mubr.f32.mxu0 0.0
      %4420 = vmatmul.mubr.f32.gmra.mxu0 %v4082
      %v4421 = vpop.f32.mrf.mxu0
      %v4422 = vadd.f32 %v3955, %v4421
      %v4423 = vpop.f32.mrf.mxu0
      %4424 = vmatprep.mubr.f32.mxu0 0.0
      %4425 = vmatmul.mubr.f32.gmra.mxu0 %v4085
      %v4426 = vpop.f32.mrf.mxu0
      %v4427 = vadd.f32 %v3955, %v4426
      %v4428 = vpop.f32.mrf.mxu0
      %4429 = vmatprep.mubr.f32.mxu0 0.0
      %4430 = vmatmul.mubr.f32.gmra.mxu0 %v4088
      %v4431 = vpop.f32.mrf.mxu0
      %v4432 = vadd.f32 %v3955, %v4431
      %v4433 = vpop.f32.mrf.mxu0
      %4434 = vmatprep.mubr.f32.mxu0 0.0
      %4435 = vmatmul.mubr.f32.gmra.mxu0 %v4091
      %v4436 = vpop.f32.mrf.mxu0
      %v4437 = vadd.f32 %v3955, %v4436
      %v4438 = vpop.f32.mrf.mxu0
      %4439 = vmatprep.mubr.f32.mxu0 0.0
      %4440 = vmatmul.mubr.f32.gmra.mxu0 %v4094
      %v4441 = vpop.f32.mrf.mxu0
      %v4442 = vadd.f32 %v3955, %v4441
      %v4443 = vpop.f32.mrf.mxu0
      %4444 = vmatprep.mubr.f32.mxu0 0.0
      %4445 = vmatmul.mubr.f32.gmra.mxu0 %v4097
      %v4446 = vpop.f32.mrf.mxu0
      %v4447 = vadd.f32 %v3955, %v4446
      %v4448 = vpop.f32.mrf.mxu0
      %4449 = vmatprep.mubr.f32.mxu0 0.0
      %4450 = vmatmul.mubr.f32.gmra.mxu0 %v4100
      %v4451 = vpop.f32.mrf.mxu0
      %v4452 = vadd.f32 %v3955, %v4451
      %v4453 = vpop.f32.mrf.mxu0
      %4454 = vmatprep.mubr.f32.mxu0 0.0
      %4455 = vmatmul.mubr.f32.gmra.mxu0 %v4103
      %v4456 = vpop.f32.mrf.mxu0
      %v4457 = vadd.f32 %v3955, %v4456
      %v4458 = vpop.f32.mrf.mxu0
      %4459 = vmatprep.mubr.f32.mxu0 0.0
      %4460 = vmatmul.mubr.f32.gmra.mxu0 %v4106
      %v4461 = vpop.f32.mrf.mxu0
      %v4462 = vadd.f32 %v3955, %v4461
      %v4463 = vpop.f32.mrf.mxu0
      %4464 = vmatprep.mubr.f32.mxu0 0.0
      %4465 = vmatmul.mubr.f32.gmra.mxu0 %v4109
      %v4466 = vpop.f32.mrf.mxu0
      %v4467 = vadd.f32 %v3955, %v4466
      %v4468 = vpop.f32.mrf.mxu0
      %4469 = vmatprep.mubr.f32.mxu0 0.0
      %4470 = vmatmul.mubr.f32.gmra.mxu0 %v4112
      %v4471 = vpop.f32.mrf.mxu0
      %v4472 = vadd.f32 %v3955, %v4471
      %v4473 = vpop.f32.mrf.mxu0
      %4474 = vmatprep.mubr.f32.mxu0 0.0
      %4475 = vmatmul.mubr.f32.gmra.mxu0 %v4115
      %v4476 = vpop.f32.mrf.mxu0
      %v4477 = vadd.f32 %v3955, %v4476
      %v4478 = vpop.f32.mrf.mxu0
      %4479 = vmatprep.mubr.f32.mxu0 0.0
      %4480 = vmatmul.mubr.f32.gmra.mxu0 %v4118
      %v4481 = vpop.f32.mrf.mxu0
      %v4482 = vadd.f32 %v3955, %v4481
      %v4483 = vpop.f32.mrf.mxu0
      %4484 = vmatprep.mubr.f32.mxu0 0.0
      %4485 = vmatmul.mubr.f32.gmra.mxu0 %v4121
      %v4486 = vpop.f32.mrf.mxu0
      %v4487 = vadd.f32 %v3955, %v4486
      %v4488 = vpop.f32.mrf.mxu0
      %4489 = vmatprep.mubr.f32.mxu0 0.0
      %4490 = vmatmul.mubr.f32.gmra.mxu0 %v4124
      %v4491 = vpop.f32.mrf.mxu0
      %v4492 = vadd.f32 %v3955, %v4491
      %v4493 = vpop.f32.mrf.mxu0
      %4494 = vmatprep.mubr.f32.mxu0 0.0
      %4495 = vmatmul.mubr.f32.gmra.mxu0 %v4127
      %v4496 = vpop.f32.mrf.mxu0
      %v4497 = vadd.f32 %v3955, %v4496
      %v4498 = vpop.f32.mrf.mxu0
      %4499 = vmatprep.mubr.f32.mxu0 0.0
      %4500 = vmatmul.mubr.f32.gmra.mxu0 %v4130
      %v4501 = vpop.f32.mrf.mxu0
      %v4502 = vadd.f32 %v3955, %v4501
      %v4503 = vpop.f32.mrf.mxu0
      %4504 = vmatprep.mubr.f32.mxu0 0.0
      %4505 = vmatmul.mubr.f32.gmra.mxu0 %v4133
      %v4506 = vpop.f32.mrf.mxu0
      %v4507 = vadd.f32 %v3955, %v4506
      %v4508 = vpop.f32.mrf.mxu0
      %4509 = vmatprep.mubr.f32.mxu0 0.0
      %4510 = vmatmul.mubr.f32.gmra.mxu0 %v4136
      %v4511 = vpop.f32.mrf.mxu0
      %v4512 = vadd.f32 %v3955, %v4511
      %v4513 = vpop.f32.mrf.mxu0
      %4514 = vmatprep.mubr.f32.mxu0 0.0
      %4515 = vmatmul.mubr.f32.gmra.mxu0 %v4139
      %v4516 = vpop.f32.mrf.mxu0
      %v4517 = vadd.f32 %v3955, %v4516
      %v4518 = vpop.f32.mrf.mxu0
      %4519 = vmatprep.mubr.f32.mxu0 0.0
      %4520 = vmatmul.mubr.f32.gmra.mxu0 %v4142
      %v4521 = vpop.f32.mrf.mxu0
      %v4522 = vadd.f32 %v3955, %v4521
      %v4523 = vpop.f32.mrf.mxu0
      %4524 = vmatprep.mubr.f32.mxu0 0.0
      %4525 = vmatmul.mubr.f32.gmra.mxu0 %v4145
      %v4526 = vpop.f32.mrf.mxu0
      %v4527 = vadd.f32 %v3955, %v4526
      %v4528 = vpop.f32.mrf.mxu0
      %4529 = vmatprep.mubr.f32.mxu0 0.0
      %4530 = vmatmul.mubr.f32.gmra.mxu0 %v4148
      %v4531 = vpop.f32.mrf.mxu0
      %v4532 = vadd.f32 %v3955, %v4531
      %v4533 = vpop.f32.mrf.mxu0
      %4534 = vdwg.mxu0
      %v4535 = vsub.f32 0.0, %v4217
      %v4536 = vsub.f32 0.0, %v4222
      %v4537 = vsub.f32 0.0, %v4227
      %v4538 = vsub.f32 0.0, %v4232
      %v4539 = vsub.f32 0.0, %v4237
      %v4540 = vsub.f32 0.0, %v4242
      %v4541 = vsub.f32 0.0, %v4247
      %v4542 = vsub.f32 0.0, %v4252
      %v4543 = vsub.f32 0.0, %v4257
      %v4544 = vsub.f32 0.0, %v4262
      %v4545 = vsub.f32 0.0, %v4267
      %v4546 = vsub.f32 0.0, %v4272
      %v4547 = vsub.f32 0.0, %v4277
      %v4548 = vsub.f32 0.0, %v4282
      %v4549 = vsub.f32 0.0, %v4287
      %v4550 = vsub.f32 0.0, %v4292
      %v4551 = vsub.f32 0.0, %v4297
      %v4552 = vsub.f32 0.0, %v4302
      %v4553 = vsub.f32 0.0, %v4307
      %v4554 = vsub.f32 0.0, %v4312
      %v4555 = vsub.f32 0.0, %v4317
      %v4556 = vsub.f32 0.0, %v4322
      %v4557 = vsub.f32 0.0, %v4327
      %v4558 = vsub.f32 0.0, %v4332
      %v4559 = vsub.f32 0.0, %v4337
      %v4560 = vsub.f32 0.0, %v4342
      %v4561 = vsub.f32 0.0, %v4347
      %v4562 = vsub.f32 0.0, %v4352
      %v4563 = vsub.f32 0.0, %v4357
      %v4564 = vsub.f32 0.0, %v4362
      %v4565 = vsub.f32 0.0, %v4367
      %v4566 = vsub.f32 0.0, %v4372
      %v4567 = vsub.f32 0.0, %v4377
      %v4568 = vsub.f32 0.0, %v4382
      %v4569 = vsub.f32 0.0, %v4387
      %v4570 = vsub.f32 0.0, %v4392
      %v4571 = vsub.f32 0.0, %v4397
      %v4572 = vsub.f32 0.0, %v4402
      %v4573 = vsub.f32 0.0, %v4407
      %v4574 = vsub.f32 0.0, %v4412
      %v4575 = vsub.f32 0.0, %v4417
      %v4576 = vsub.f32 0.0, %v4422
      %v4577 = vsub.f32 0.0, %v4427
      %v4578 = vsub.f32 0.0, %v4432
      %v4579 = vsub.f32 0.0, %v4437
      %v4580 = vsub.f32 0.0, %v4442
      %v4581 = vsub.f32 0.0, %v4447
      %v4582 = vsub.f32 0.0, %v4452
      %v4583 = vsub.f32 0.0, %v4457
      %v4584 = vsub.f32 0.0, %v4462
      %v4585 = vsub.f32 0.0, %v4467
      %v4586 = vsub.f32 0.0, %v4472
      %v4587 = vsub.f32 0.0, %v4477
      %v4588 = vsub.f32 0.0, %v4482
      %v4589 = vsub.f32 0.0, %v4487
      %v4590 = vsub.f32 0.0, %v4492
      %v4591 = vsub.f32 0.0, %v4497
      %v4592 = vsub.f32 0.0, %v4502
      %v4593 = vsub.f32 0.0, %v4507
      %v4594 = vsub.f32 0.0, %v4512
      %v4595 = vsub.f32 0.0, %v4517
      %v4596 = vsub.f32 0.0, %v4522
      %v4597 = vsub.f32 0.0, %v4527
      %v4598 = vsub.f32 0.0, %v4532
      %v4599 = vmul.f32 %v4535, 1.442695
      %v4600 = vpow.pop %v4599
      %v4601 = vmul.f32 %v4536, 1.442695
      %v4602 = vpow.pop %v4601
      %v4603 = vmul.f32 %v4537, 1.442695
      %v4604 = vpow.pop %v4603
      %v4605 = vmul.f32 %v4538, 1.442695
      %v4606 = vpow.pop %v4605
      %v4607 = vmul.f32 %v4539, 1.442695
      %v4608 = vpow.pop %v4607
      %v4609 = vmul.f32 %v4540, 1.442695
      %v4610 = vpow.pop %v4609
      %v4611 = vmul.f32 %v4541, 1.442695
      %v4612 = vpow.pop %v4611
      %v4613 = vmul.f32 %v4542, 1.442695
      %v4614 = vpow.pop %v4613
      %v4615 = vmul.f32 %v4543, 1.442695
      %v4616 = vpow.pop %v4615
      %v4617 = vmul.f32 %v4544, 1.442695
      %v4618 = vpow.pop %v4617
      %v4619 = vmul.f32 %v4545, 1.442695
      %v4620 = vpow.pop %v4619
      %v4621 = vmul.f32 %v4546, 1.442695
      %v4622 = vpow.pop %v4621
      %v4623 = vmul.f32 %v4547, 1.442695
      %v4624 = vpow.pop %v4623
      %v4625 = vmul.f32 %v4548, 1.442695
      %v4626 = vpow.pop %v4625
      %v4627 = vmul.f32 %v4549, 1.442695
      %v4628 = vpow.pop %v4627
      %v4629 = vmul.f32 %v4550, 1.442695
      %v4630 = vpow.pop %v4629
      %v4631 = vmul.f32 %v4551, 1.442695
      %v4632 = vpow.pop %v4631
      %v4633 = vmul.f32 %v4552, 1.442695
      %v4634 = vpow.pop %v4633
      %v4635 = vmul.f32 %v4553, 1.442695
      %v4636 = vpow.pop %v4635
      %v4637 = vmul.f32 %v4554, 1.442695
      %v4638 = vpow.pop %v4637
      %v4639 = vmul.f32 %v4555, 1.442695
      %v4640 = vpow.pop %v4639
      %v4641 = vmul.f32 %v4556, 1.442695
      %v4642 = vpow.pop %v4641
      %v4643 = vmul.f32 %v4557, 1.442695
      %v4644 = vpow.pop %v4643
      %v4645 = vmul.f32 %v4558, 1.442695
      %v4646 = vpow.pop %v4645
      %v4647 = vmul.f32 %v4559, 1.442695
      %v4648 = vpow.pop %v4647
      %v4649 = vmul.f32 %v4560, 1.442695
      %v4650 = vpow.pop %v4649
      %v4651 = vmul.f32 %v4561, 1.442695
      %v4652 = vpow.pop %v4651
      %v4653 = vmul.f32 %v4562, 1.442695
      %v4654 = vpow.pop %v4653
      %v4655 = vmul.f32 %v4563, 1.442695
      %v4656 = vpow.pop %v4655
      %v4657 = vmul.f32 %v4564, 1.442695
      %v4658 = vpow.pop %v4657
      %v4659 = vmul.f32 %v4565, 1.442695
      %v4660 = vpow.pop %v4659
      %v4661 = vmul.f32 %v4566, 1.442695
      %v4662 = vpow.pop %v4661
      %v4663 = vmul.f32 %v4567, 1.442695
      %v4664 = vpow.pop %v4663
      %v4665 = vmul.f32 %v4568, 1.442695
      %v4666 = vpow.pop %v4665
      %v4667 = vmul.f32 %v4569, 1.442695
      %v4668 = vpow.pop %v4667
      %v4669 = vmul.f32 %v4570, 1.442695
      %v4670 = vpow.pop %v4669
      %v4671 = vmul.f32 %v4571, 1.442695
      %v4672 = vpow.pop %v4671
      %v4673 = vmul.f32 %v4572, 1.442695
      %v4674 = vpow.pop %v4673
      %v4675 = vmul.f32 %v4573, 1.442695
      %v4676 = vpow.pop %v4675
      %v4677 = vmul.f32 %v4574, 1.442695
      %v4678 = vpow.pop %v4677
      %v4679 = vmul.f32 %v4575, 1.442695
      %v4680 = vpow.pop %v4679
      %v4681 = vmul.f32 %v4576, 1.442695
      %v4682 = vpow.pop %v4681
      %v4683 = vmul.f32 %v4577, 1.442695
      %v4684 = vpow.pop %v4683
      %v4685 = vmul.f32 %v4578, 1.442695
      %v4686 = vpow.pop %v4685
      %v4687 = vmul.f32 %v4579, 1.442695
      %v4688 = vpow.pop %v4687
      %v4689 = vmul.f32 %v4580, 1.442695
      %v4690 = vpow.pop %v4689
      %v4691 = vmul.f32 %v4581, 1.442695
      %v4692 = vpow.pop %v4691
      %v4693 = vmul.f32 %v4582, 1.442695
      %v4694 = vpow.pop %v4693
      %v4695 = vmul.f32 %v4583, 1.442695
      %v4696 = vpow.pop %v4695
      %v4697 = vmul.f32 %v4584, 1.442695
      %v4698 = vpow.pop %v4697
      %v4699 = vmul.f32 %v4585, 1.442695
      %v4700 = vpow.pop %v4699
      %v4701 = vmul.f32 %v4586, 1.442695
      %v4702 = vpow.pop %v4701
      %v4703 = vmul.f32 %v4587, 1.442695
      %v4704 = vpow.pop %v4703
      %v4705 = vmul.f32 %v4588, 1.442695
      %v4706 = vpow.pop %v4705
      %v4707 = vmul.f32 %v4589, 1.442695
      %v4708 = vpow.pop %v4707
      %v4709 = vmul.f32 %v4590, 1.442695
      %v4710 = vpow.pop %v4709
      %v4711 = vmul.f32 %v4591, 1.442695
      %v4712 = vpow.pop %v4711
      %v4713 = vmul.f32 %v4592, 1.442695
      %v4714 = vpow.pop %v4713
      %v4715 = vmul.f32 %v4593, 1.442695
      %v4716 = vpow.pop %v4715
      %v4717 = vmul.f32 %v4594, 1.442695
      %v4718 = vpow.pop %v4717
      %v4719 = vmul.f32 %v4595, 1.442695
      %v4720 = vpow.pop %v4719
      %v4721 = vmul.f32 %v4596, 1.442695
      %v4722 = vpow.pop %v4721
      %v4723 = vmul.f32 %v4597, 1.442695
      %v4724 = vpow.pop %v4723
      %v4725 = vmul.f32 %v4598, 1.442695
      %v4726 = vpow.pop %v4725
      %v4727 = vadd.f32 %v4600, 1.0
      %v4728 = vadd.f32 %v4602, 1.0
      %v4729 = vadd.f32 %v4604, 1.0
      %v4730 = vadd.f32 %v4606, 1.0
      %v4731 = vadd.f32 %v4608, 1.0
      %v4732 = vadd.f32 %v4610, 1.0
      %v4733 = vadd.f32 %v4612, 1.0
      %v4734 = vadd.f32 %v4614, 1.0
      %v4735 = vadd.f32 %v4616, 1.0
      %v4736 = vadd.f32 %v4618, 1.0
      %v4737 = vadd.f32 %v4620, 1.0
      %v4738 = vadd.f32 %v4622, 1.0
      %v4739 = vadd.f32 %v4624, 1.0
      %v4740 = vadd.f32 %v4626, 1.0
      %v4741 = vadd.f32 %v4628, 1.0
      %v4742 = vadd.f32 %v4630, 1.0
      %v4743 = vadd.f32 %v4632, 1.0
      %v4744 = vadd.f32 %v4634, 1.0
      %v4745 = vadd.f32 %v4636, 1.0
      %v4746 = vadd.f32 %v4638, 1.0
      %v4747 = vadd.f32 %v4640, 1.0
      %v4748 = vadd.f32 %v4642, 1.0
      %v4749 = vadd.f32 %v4644, 1.0
      %v4750 = vadd.f32 %v4646, 1.0
      %v4751 = vadd.f32 %v4648, 1.0
      %v4752 = vadd.f32 %v4650, 1.0
      %v4753 = vadd.f32 %v4652, 1.0
      %v4754 = vadd.f32 %v4654, 1.0
      %v4755 = vadd.f32 %v4656, 1.0
      %v4756 = vadd.f32 %v4658, 1.0
      %v4757 = vadd.f32 %v4660, 1.0
      %v4758 = vadd.f32 %v4662, 1.0
      %v4759 = vadd.f32 %v4664, 1.0
      %v4760 = vadd.f32 %v4666, 1.0
      %v4761 = vadd.f32 %v4668, 1.0
      %v4762 = vadd.f32 %v4670, 1.0
      %v4763 = vadd.f32 %v4672, 1.0
      %v4764 = vadd.f32 %v4674, 1.0
      %v4765 = vadd.f32 %v4676, 1.0
      %v4766 = vadd.f32 %v4678, 1.0
      %v4767 = vadd.f32 %v4680, 1.0
      %v4768 = vadd.f32 %v4682, 1.0
      %v4769 = vadd.f32 %v4684, 1.0
      %v4770 = vadd.f32 %v4686, 1.0
      %v4771 = vadd.f32 %v4688, 1.0
      %v4772 = vadd.f32 %v4690, 1.0
      %v4773 = vadd.f32 %v4692, 1.0
      %v4774 = vadd.f32 %v4694, 1.0
      %v4775 = vadd.f32 %v4696, 1.0
      %v4776 = vadd.f32 %v4698, 1.0
      %v4777 = vadd.f32 %v4700, 1.0
      %v4778 = vadd.f32 %v4702, 1.0
      %v4779 = vadd.f32 %v4704, 1.0
      %v4780 = vadd.f32 %v4706, 1.0
      %v4781 = vadd.f32 %v4708, 1.0
      %v4782 = vadd.f32 %v4710, 1.0
      %v4783 = vadd.f32 %v4712, 1.0
      %v4784 = vadd.f32 %v4714, 1.0
      %v4785 = vadd.f32 %v4716, 1.0
      %v4786 = vadd.f32 %v4718, 1.0
      %v4787 = vadd.f32 %v4720, 1.0
      %v4788 = vadd.f32 %v4722, 1.0
      %v4789 = vadd.f32 %v4724, 1.0
      %v4790 = vadd.f32 %v4726, 1.0
      %v4791 = vrcp.pop %v4727
      %v4792 = vrcp.pop %v4728
      %v4793 = vrcp.pop %v4729
      %v4794 = vrcp.pop %v4730
      %v4795 = vrcp.pop %v4731
      %v4796 = vrcp.pop %v4732
      %v4797 = vrcp.pop %v4733
      %v4798 = vrcp.pop %v4734
      %v4799 = vrcp.pop %v4735
      %v4800 = vrcp.pop %v4736
      %v4801 = vrcp.pop %v4737
      %v4802 = vrcp.pop %v4738
      %v4803 = vrcp.pop %v4739
      %v4804 = vrcp.pop %v4740
      %v4805 = vrcp.pop %v4741
      %v4806 = vrcp.pop %v4742
      %v4807 = vrcp.pop %v4743
      %v4808 = vrcp.pop %v4744
      %v4809 = vrcp.pop %v4745
      %v4810 = vrcp.pop %v4746
      %v4811 = vrcp.pop %v4747
      %v4812 = vrcp.pop %v4748
      %v4813 = vrcp.pop %v4749
      %v4814 = vrcp.pop %v4750
      %v4815 = vrcp.pop %v4751
      %v4816 = vrcp.pop %v4752
      %v4817 = vrcp.pop %v4753
      %v4818 = vrcp.pop %v4754
      %v4819 = vrcp.pop %v4755
      %v4820 = vrcp.pop %v4756
      %v4821 = vrcp.pop %v4757
      %v4822 = vrcp.pop %v4758
      %v4823 = vrcp.pop %v4759
      %v4824 = vrcp.pop %v4760
      %v4825 = vrcp.pop %v4761
      %v4826 = vrcp.pop %v4762
      %v4827 = vrcp.pop %v4763
      %v4828 = vrcp.pop %v4764
      %v4829 = vrcp.pop %v4765
      %v4830 = vrcp.pop %v4766
      %v4831 = vrcp.pop %v4767
      %v4832 = vrcp.pop %v4768
      %v4833 = vrcp.pop %v4769
      %v4834 = vrcp.pop %v4770
      %v4835 = vrcp.pop %v4771
      %v4836 = vrcp.pop %v4772
      %v4837 = vrcp.pop %v4773
      %v4838 = vrcp.pop %v4774
      %v4839 = vrcp.pop %v4775
      %v4840 = vrcp.pop %v4776
      %v4841 = vrcp.pop %v4777
      %v4842 = vrcp.pop %v4778
      %v4843 = vrcp.pop %v4779
      %v4844 = vrcp.pop %v4780
      %v4845 = vrcp.pop %v4781
      %v4846 = vrcp.pop %v4782
      %v4847 = vrcp.pop %v4783
      %v4848 = vrcp.pop %v4784
      %v4849 = vrcp.pop %v4785
      %v4850 = vrcp.pop %v4786
      %v4851 = vrcp.pop %v4787
      %v4852 = vrcp.pop %v4788
      %v4853 = vrcp.pop %v4789
      %v4854 = vrcp.pop %v4790
      %4855 = vst [vmem:[%s334] sm:$0xff] %v4791
      %4856 = vst [vmem:[%s334 + $0x8] sm:$0xff] %v4792
      %4857 = vst [vmem:[%s334 + $0x10] sm:$0xff] %v4793
      %4858 = vst [vmem:[%s334 + $0x18] sm:$0xff] %v4794
      %4859 = vst [vmem:[%s334 + $0x20] sm:$0xff] %v4795
      %4860 = vst [vmem:[%s334 + $0x28] sm:$0xff] %v4796
      %4861 = vst [vmem:[%s334 + $0x30] sm:$0xff] %v4797
      %4862 = vst [vmem:[%s334 + $0x38] sm:$0xff] %v4798
      %4863 = vst [vmem:[%s334 + $0x40] sm:$0xff] %v4799
      %4864 = vst [vmem:[%s334 + $0x48] sm:$0xff] %v4800
      %4865 = vst [vmem:[%s334 + $0x50] sm:$0xff] %v4801
      %4866 = vst [vmem:[%s334 + $0x58] sm:$0xff] %v4802
      %4867 = vst [vmem:[%s334 + $0x60] sm:$0xff] %v4803
      %4868 = vst [vmem:[%s334 + $0x68] sm:$0xff] %v4804
      %4869 = vst [vmem:[%s334 + $0x70] sm:$0xff] %v4805
      %4870 = vst [vmem:[%s334 + $0x78] sm:$0xff] %v4806
      %4871 = vst [vmem:[%s334 + $0x80] sm:$0xff] %v4807
      %4872 = vst [vmem:[%s334 + $0x88] sm:$0xff] %v4808
      %4873 = vst [vmem:[%s334 + $0x90] sm:$0xff] %v4809
      %4874 = vst [vmem:[%s334 + $0x98] sm:$0xff] %v4810
      %4875 = vst [vmem:[%s334 + $0xa0] sm:$0xff] %v4811
      %4876 = vst [vmem:[%s334 + $0xa8] sm:$0xff] %v4812
      %4877 = vst [vmem:[%s334 + $0xb0] sm:$0xff] %v4813
      %4878 = vst [vmem:[%s334 + $0xb8] sm:$0xff] %v4814
      %4879 = vst [vmem:[%s334 + $0xc0] sm:$0xff] %v4815
      %4880 = vst [vmem:[%s334 + $0xc8] sm:$0xff] %v4816
      %4881 = vst [vmem:[%s334 + $0xd0] sm:$0xff] %v4817
      %4882 = vst [vmem:[%s334 + $0xd8] sm:$0xff] %v4818
      %4883 = vst [vmem:[%s334 + $0xe0] sm:$0xff] %v4819
      %4884 = vst [vmem:[%s334 + $0xe8] sm:$0xff] %v4820
      %4885 = vst [vmem:[%s334 + $0xf0] sm:$0xff] %v4821
      %4886 = vst [vmem:[%s334 + $0xf8] sm:$0xff] %v4822
      %4887 = vst [vmem:[%s334 + $0x100] sm:$0xff] %v4823
      %4888 = vst [vmem:[%s334 + $0x108] sm:$0xff] %v4824
      %4889 = vst [vmem:[%s334 + $0x110] sm:$0xff] %v4825
      %4890 = vst [vmem:[%s334 + $0x118] sm:$0xff] %v4826
      %4891 = vst [vmem:[%s334 + $0x120] sm:$0xff] %v4827
      %4892 = vst [vmem:[%s334 + $0x128] sm:$0xff] %v4828
      %4893 = vst [vmem:[%s334 + $0x130] sm:$0xff] %v4829
      %4894 = vst [vmem:[%s334 + $0x138] sm:$0xff] %v4830
      %4895 = vst [vmem:[%s334 + $0x140] sm:$0xff] %v4831
      %4896 = vst [vmem:[%s334 + $0x148] sm:$0xff] %v4832
      %4897 = vst [vmem:[%s334 + $0x150] sm:$0xff] %v4833
      %4898 = vst [vmem:[%s334 + $0x158] sm:$0xff] %v4834
      %4899 = vst [vmem:[%s334 + $0x160] sm:$0xff] %v4835
      %4900 = vst [vmem:[%s334 + $0x168] sm:$0xff] %v4836
      %4901 = vst [vmem:[%s334 + $0x170] sm:$0xff] %v4837
      %4902 = vst [vmem:[%s334 + $0x178] sm:$0xff] %v4838
      %4903 = vst [vmem:[%s334 + $0x180] sm:$0xff] %v4839
      %4904 = vst [vmem:[%s334 + $0x188] sm:$0xff] %v4840
      %4905 = vst [vmem:[%s334 + $0x190] sm:$0xff] %v4841
      %4906 = vst [vmem:[%s334 + $0x198] sm:$0xff] %v4842
      %4907 = vst [vmem:[%s334 + $0x1a0] sm:$0xff] %v4843
      %4908 = vst [vmem:[%s334 + $0x1a8] sm:$0xff] %v4844
      %4909 = vst [vmem:[%s334 + $0x1b0] sm:$0xff] %v4845
      %4910 = vst [vmem:[%s334 + $0x1b8] sm:$0xff] %v4846
      %4911 = vst [vmem:[%s334 + $0x1c0] sm:$0xff] %v4847
      %4912 = vst [vmem:[%s334 + $0x1c8] sm:$0xff] %v4848
      %4913 = vst [vmem:[%s334 + $0x1d0] sm:$0xff] %v4849
      %4914 = vst [vmem:[%s334 + $0x1d8] sm:$0xff] %v4850
      %4915 = vst [vmem:[%s334 + $0x1e0] sm:$0xff] %v4851
      %4916 = vst [vmem:[%s334 + $0x1e8] sm:$0xff] %v4852
      %4917 = vst [vmem:[%s334 + $0x1f0] sm:$0xff] %v4853
      %4918 = vst [vmem:[%s334 + $0x1f8] sm:$0xff] %v4854
      %s4919 = smul.u32 64, %s20
      %p4920 = scmp.lt.s32.totalorder %s4919, 127
      %s4921 = scalar_select %p4920, %s4919, 127
      %s4922 = smul.addr %s4921, 8
      %s4923 = scalar_lea.vmem %s9, %s4922
      // Predicated region
      $region57: #{classifier_new_forward.1} parent=55 // pred_check
        %p4924 = pneg %p232
      $region58: #{classifier_new_forward.1} parent=55 // pred_check_branch
        %4926 = sbr.rel (%p4924) target = $region60
      $region59: #{classifier_new_forward.1} parent=55 // pred_region
        %s4927 = smul.u32 64, %s20
      $region60: #{classifier_new_forward.1} parent=55 // pred_fallthru
        _
    $region56: #{classifier_new_forward.1} parent=5 // pred_fallthru
      _
    %p4928 = scmp.le.s32.totalorder 2, %s15
    // Predicated region
    $region61: #{classifier_new_forward.1} parent=5 // pred_check
      %p4929 = pneg %p4928
    $region62: #{classifier_new_forward.1} parent=5 // pred_check_branch
      %4931 = sbr.rel (%p4929) target = $region64
    $region63: #{classifier_new_forward.1} parent=5 // pred_region
      %s4932 = ssub.s32 %s15, 2
      // Predicated region
      $region65: #{classifier_new_forward.1} parent=63 // pred_check
        %p4933 = pneg %p238
      $region66: #{classifier_new_forward.1} parent=63 // pred_check_branch
        %4935 = sbr.rel (%p4933) target = $region68
      $region67: #{classifier_new_forward.1} parent=63 // pred_region
        %s4936 = smul.u32 64, %s21
        %p4937 = scmp.lt.s32.totalorder %s4936, 127
        %s4938 = scalar_select %p4937, %s4936, 127
        %s4939 = smul.addr %s4938, 8
        %s4940 = scalar_lea.vmem %s9, %s4939
      $region68: #{classifier_new_forward.1} parent=63 // pred_fallthru
        _
    $region64: #{classifier_new_forward.1} parent=5 // pred_fallthru
      _
  $region6: #{classifier_new_forward.1} parent=0 // loop_footer
    %s19 = sadd.s32 1, %s15
  $region7: #{classifier_new_forward.1} parent=0 // loop_footer_branch
    %14 = sbr.rel target = $region3
  $region8: #{classifier_new_forward.1} parent=0 // loop_exit
    _

</llo_original>
